<compile_context>
chip_gen: v6e
topology: v6e:2x2x1
jax: 0.10.0
libtpu: 0.0.40
codegen_flags: <defaults>
</compile_context>

<pallas_src>
import functools

import jax
import jax.numpy as jnp
from jax.experimental import pallas as pl
from jax.experimental.pallas import tpu as pltpu

_EPS = 1e-6
_INV_SQRT2 = 0.7071067811865476


# -------------------------- small helpers ---------------------------------- #

@functools.lru_cache(maxsize=None)
def _vmem_limit_bytes():
    """Generation-aware VMEM limit (~3/4 of physical VMEM, capped)."""
    try:
        info = pltpu.get_tpu_info()
        cap = int(getattr(info, "vmem_capacity_bytes", 64 * 1024 * 1024))
    except Exception:
        cap = 64 * 1024 * 1024          # conservative (v7x-like) fallback
    return int(min(cap * 3 // 4, 110 * 1024 * 1024))


def _gelu(x, approx=False):
    if approx:
        # tanh-approximate GELU on bf16: runs on the EUP slot (big win on v6e/v7x),
        # but diverges slightly from torch.nn.GELU's exact erf -> OFF by default.
        return jax.nn.gelu(x.astype(jnp.bfloat16), approximate=True)
    return 0.5 * x * (1.0 + jax.lax.erf(x * _INV_SQRT2))


def _ln(v, g, b):
    mu = jnp.mean(v, axis=-1, keepdims=True)
    var = jnp.mean(jnp.square(v - mu), axis=-1, keepdims=True)
    return (v - mu) * jax.lax.rsqrt(var + _EPS) * g + b


def _replicated_spec(shape, single_buffer):
    """Full-array block, same block every grid step (loaded once, stays VMEM-resident).
    single_buffer=True avoids duplicating the weights in a second pipeline buffer."""
    index_map = lambda *_: (0,) * len(shape)
    if single_buffer:
        return pl.BlockSpec(shape, index_map, pipeline_mode=pl.Buffered(1))
    return pl.BlockSpec(shape, index_map)


def _compiler_params():
    return pltpu.CompilerParams(dimension_semantics=("parallel",),
                                vmem_limit_bytes=_vmem_limit_bytes())


# -------------------------- Pallas kernels --------------------------------- #

def _stem_kernel(p_ref, w_ref, b_ref, o_ref):
    # p: (tb, N, K) bf16 patches, w: (K, D) bf16, b: (1, D) f32 -> (tb, N, D) f32
    tb, N, K = p_ref.shape
    D = w_ref.shape[1]
    p2 = p_ref[...].reshape(tb * N, K)
    o = jnp.dot(p2, w_ref[...], preferred_element_type=jnp.float32) + b_ref[...]
    o_ref[...] = o.reshape(tb, N, D)


def _block_math(x, refs, approx_gelu):
    """One MixerBlock on a (tb, N, C) f32 tile.  Token mixing is a batched MXU matmul
    against pre-transposed weights; channel mixing folds to (tb*N, C) 2-D matmuls."""
    (g1_ref, b1_ref, wt1t_ref, bt1_ref, wt2t_ref, bt2_ref,
     g2_ref, b2_ref, wc1_ref, bc1_ref, wc2_ref, bc2_ref) = refs
    tb, N, C = x.shape
    T = wt1t_ref.shape[0]
    bf16 = jnp.bfloat16

    # hoist weight/bias loads and the batched-weight broadcasts once
    bt1, bt2 = bt1_ref[...], bt2_ref[...]                        # (T,1) / (N,1)
    wt1t = jnp.broadcast_to(wt1t_ref[...], (tb, T, N))           # bf16
    wt2t = jnp.broadcast_to(wt2t_ref[...], (tb, N, T))           # bf16
    wc1, bc1 = wc1_ref[...], bc1_ref[...]
    wc2, bc2 = wc2_ref[...], bc2_ref[...]

    # ---- token mixing: norm1 -> MLP over the token axis ----
    y = _ln(x, g1_ref[...], b1_ref[...]).astype(bf16)            # (tb, N, C)
    h = jnp.einsum('btn,bnc->btc', wt1t, y,
                   preferred_element_type=jnp.float32) + bt1     # (tb, T, C)
    a = _gelu(h, approx_gelu).astype(bf16)
    t = jnp.einsum('bnt,btc->bnc', wt2t, a,
                   preferred_element_type=jnp.float32) + bt2     # (tb, N, C)
    x = x + t                                                    # residual 1 (f32)

    # ---- channel mixing: norm2 -> MLP over channels (flat 2-D matmuls) ----
    y = _ln(x, g2_ref[...], b2_ref[...]).reshape(tb * N, C).astype(bf16)
    h = jnp.dot(y, wc1, preferred_element_type=jnp.float32) + bc1    # (tb*N, Hc)
    a = _gelu(h, approx_gelu).astype(bf16)
    t = jnp.dot(a, wc2, preferred_element_type=jnp.float32) + bc2    # (tb*N, C)
    return x + t.reshape(tb, N, C)                                   # residual 2


def _mixer_block_kernel(x_ref, g1, b1, wt1t, bt1, wt2t, bt2, g2, b2,
                        wc1, bc1, wc2, bc2, o_ref, *, approx_gelu):
    o_ref[...] = _block_math(
        x_ref[...], (g1, b1, wt1t, bt1, wt2t, bt2, g2, b2, wc1, bc1, wc2, bc2),
        approx_gelu)


def _mixer_block_head_kernel(x_ref, g1, b1, wt1t, bt1, wt2t, bt2, g2, b2,
                             wc1, bc1, wc2, bc2, gf, bf_, hw, hb, o_ref,
                             *, approx_gelu):
    # last mixer block fused with final norm + mean-pool + classifier matmul
    xo = _block_math(
        x_ref[...], (g1, b1, wt1t, bt1, wt2t, bt2, g2, b2, wc1, bc1, wc2, bc2),
        approx_gelu)
    y = _ln(xo, gf[...], bf_[...])                               # final norm
    pooled = jnp.mean(y, axis=1)                                 # (tb, C) f32
    o_ref[...] = (jnp.dot(pooled.astype(jnp.bfloat16), hw[...],
                          preferred_element_type=jnp.float32) + hb[...])


def _head_kernel(x_ref, g_ref, b_ref, hw_ref, hb_ref, o_ref):
    y = _ln(x_ref[...], g_ref[...], b_ref[...])
    pooled = jnp.mean(y, axis=1)                                 # (tb, C)
    o_ref[...] = (jnp.dot(pooled.astype(jnp.bfloat16), hw_ref[...],
                          preferred_element_type=jnp.float32) + hb_ref[...])


# -------------------------- pallas_call wrappers ---------------------------- #

def stem_pallas(patches_bf16, w, b, *, tb, single_buffer_weights):
    B, N, K = patches_bf16.shape
    D = w.shape[1]
    return pl.pallas_call(
        _stem_kernel,
        out_shape=jax.ShapeDtypeStruct((B, N, D), jnp.float32),
        grid=(B // tb,),
        in_specs=[pl.BlockSpec((tb, N, K), lambda i: (i, 0, 0)),
                  _replicated_spec(w.shape, single_buffer_weights),
                  _replicated_spec(b.shape, single_buffer_weights)],
        out_specs=pl.BlockSpec((tb, N, D), lambda i: (i, 0, 0)),
        compiler_params=_compiler_params(),
    )(patches_bf16, w, b)


def _block_weights(blk):
    return (blk['g1'], blk['b1'], blk['wt1t'], blk['bt1'], blk['wt2t'], blk['bt2'],
            blk['g2'], blk['b2'], blk['wc1'], blk['bc1'], blk['wc2'], blk['bc2'])


def mixer_block_pallas(x, blk, *, tb, single_buffer_weights, approx_gelu, head=None):
    """One MixerBlock over (B, N, C) activations, tb batch elements per grid step.
    If `head` = (norm_g, norm_b, head_w, head_b) is given, the final norm + pool +
    classifier are fused in and (B, Kpad) logits are returned instead."""
    B, N, C = x.shape
    T = blk['wt1t'].shape[0]
    Hc = blk['wc1'].shape[1]
    weights = _block_weights(blk)
    fused = head is not None

    if fused:
        weights = weights + tuple(head)
        Kpad = head[2].shape[1]
        out_shape = jax.ShapeDtypeStruct((B, Kpad), jnp.float32)
        out_specs = pl.BlockSpec((tb, Kpad), lambda i: (i, 0))
        kernel = functools.partial(_mixer_block_head_kernel, approx_gelu=approx_gelu)
        aliases = {}
    else:
        out_shape = jax.ShapeDtypeStruct((B, N, C), jnp.float32)
        out_specs = pl.BlockSpec((tb, N, C), lambda i: (i, 0, 0))
        kernel = functools.partial(_mixer_block_kernel, approx_gelu=approx_gelu)
        aliases = {0: 0}        # reuse the activation HBM buffer across blocks

    flops = 4 * B * N * C * (T + Hc)
    gelu_elems = B * (T * C + N * Hc)
    cost = pl.CostEstimate(
        flops=int(flops),
        # exact erf lowers to a VALU polynomial (no EUP op); only count when tanh-approx
        transcendentals=int(gelu_elems if approx_gelu else 0),
        bytes_accessed=int(2 * B * N * C * 4
                           + sum(int(w.size) * w.dtype.itemsize for w in weights)))

    return pl.pallas_call(
        kernel,
        out_shape=out_shape,
        grid=(B // tb,),
        in_specs=[pl.BlockSpec((tb, N, C), lambda i: (i, 0, 0))]
                 + [_replicated_spec(w.shape, single_buffer_weights) for w in weights],
        out_specs=out_specs,
        input_output_aliases=aliases,
        compiler_params=_compiler_params(),
        cost_estimate=cost,
    )(x, *weights)


def head_pallas(x, g, b, hw, hb, *, single_buffer_weights):
    """Standalone final-norm + pool + classifier (only used when head fusion is off
    or illegal).  Uses a bounded, sublane-clean batch tile and internal batch padding."""
    B, N, C = x.shape
    Kpad = hw.shape[1]
    if B <= 8:
        tb = B
    else:
        per_elem = 2 * N * C * 4 + 2 * Kpad * 4
        cap = max(8, (int(_vmem_limit_bytes() * 0.5) // per_elem) // 8 * 8)
        tb = min(cap, 32)
    B_pad = -(-B // tb) * tb
    if B_pad != B:
        x = jnp.pad(x, ((0, B_pad - B), (0, 0), (0, 0)))
    out = pl.pallas_call(
        _head_kernel,
        out_shape=jax.ShapeDtypeStruct((B_pad, Kpad), jnp.float32),
        grid=(B_pad // tb,),
        in_specs=[pl.BlockSpec((tb, N, C), lambda i: (i, 0, 0)),
                  _replicated_spec(g.shape, single_buffer_weights),
                  _replicated_spec(b.shape, single_buffer_weights),
                  _replicated_spec(hw.shape, single_buffer_weights),
                  _replicated_spec(hb.shape, single_buffer_weights)],
        out_specs=pl.BlockSpec((tb, Kpad), lambda i: (i, 0)),
        compiler_params=_compiler_params(),
    )(x, g, b, hw, hb)
    return out[:B]


# -------------------------- glue / model ----------------------------------- #

def patchify(x, p):
    """NCHW image -> (B, num_patches, in_chans*p*p), row-major patch order,
    flat order (Cin, ph, pw) matching Conv2d weight layout (D, Cin, p, p)."""
    B, C, H, W = x.shape
    Hn, Wn = H // p, W // p
    x = x.reshape(B, C, Hn, p, Wn, p)
    x = x.transpose(0, 2, 4, 1, 3, 5)                    # (B, Hn, Wn, C, p, p)
    return x.reshape(B, Hn * Wn, C * p * p)


def _choose_block_tb(B, N, C, T, Hc, weight_bytes, single_buffer_weights):
    """Batch elements per grid step, sized against the generation-aware VMEM budget
    (so v5e/v6e land near 8 and v7x near 2-4 for large models)."""
    f32, bf16 = 4, 2
    per_elem = (
        4 * N * C * f32                 # in + out activation blocks, double-buffered
        + N * C * (f32 + 2 * bf16)      # LN temporaries / residual temp
        + T * C * (f32 + bf16)          # token-MLP hidden (f32) + gelu (bf16)
        + N * Hc * (f32 + bf16)         # channel-MLP hidden (f32) + gelu (bf16)
        + 2 * T * N * bf16              # broadcast copies of wt1t / wt2t
    )
    w_bytes = weight_bytes * (1 if single_buffer_weights else 2)
    budget = _vmem_limit_bytes() - w_bytes - (6 << 20)
    cap = max(1, min(8, budget // per_elem))
    if B <= cap:
        return int(B)                   # one grid step covers the whole batch
    # keep tb a multiple of 8 when possible so the fused-head logits block is
    # sublane-clean; otherwise head fusion falls back to the standalone head kernel.
    return 8 if cap >= 8 else int(cap)


def prepare_params(params):
    """Logical (PyTorch-layout, f32) params -> kernel-ready params:
    bf16 MXU weights, pre-transposed token-MLP weights, column biases for the
    token phase, and a lane-dense (128-padded) classifier head."""
    bf16 = jnp.bfloat16
    C, ncls = params['head_w'].shape
    kpad = ((ncls + 127) // 128) * 128
    head_w = jnp.zeros((C, kpad), bf16).at[:, :ncls].set(params['head_w'].astype(bf16))
    head_b = jnp.zeros((1, kpad), jnp.float32).at[:, :ncls].set(params['head_b'])
    kp = {
        'stem_w': params['stem_w'].astype(bf16),
        'stem_b': params['stem_b'],
        'norm_g': params['norm_g'],
        'norm_b': params['norm_b'],
        'head_w': head_w,
        'head_b': head_b,
        'blocks': [],
    }
    for blk in params['blocks']:
        kp['blocks'].append({
            'g1': blk['g1'], 'b1': blk['b1'],
            'wt1t': blk['wt1'].T.astype(bf16),       # (T, N)
            'bt1': blk['bt1'].reshape(-1, 1),        # (T, 1)
            'wt2t': blk['wt2'].T.astype(bf16),       # (N, T)
            'bt2': blk['bt2'].reshape(-1, 1),        # (N, 1)
            'g2': blk['g2'], 'b2': blk['b2'],
            'wc1': blk['wc1'].astype(bf16), 'bc1': blk['bc1'],
            'wc2': blk['wc2'].astype(bf16), 'bc2': blk['bc2'],
        })
    return kp


def mlp_mixer_forward(kparams, x, *, patch_size, single_buffer_weights=True,
                      approx_gelu=False, fuse_head=True):
    # TODO(synk): num_patches padding (e.g. 196->256 for MXU fill on v5e) not applied;
    # it needs masked token rows + pool-count correction and is left as follow-up.
    patches = patchify(x, patch_size).astype(jnp.bfloat16)       # (B, N, Cin*p*p)
    B, N, _ = patches.shape
    C = kparams['stem_w'].shape[1]
    blocks = kparams['blocks']

    if blocks:
        T = blocks[0]['wt1t'].shape[0]
        Hc = blocks[0]['wc1'].shape[1]
        weight_bytes = sum(int(w.size) * w.dtype.itemsize
                           for w in _block_weights(blocks[0]))
        tb = _choose_block_tb(B, N, C, T, Hc, weight_bytes, single_buffer_weights)
    else:
        tb = B if B <= 8 else 8

    B_pad = -(-B // tb) * tb
    if B_pad != B:
        patches = jnp.pad(patches, ((0, B_pad - B), (0, 0), (0, 0)))

    tok = stem_pallas(patches, kparams['stem_w'], kparams['stem_b'],
                      tb=tb, single_buffer_weights=single_buffer_weights)

    head = (kparams['norm_g'], kparams['norm_b'],
            kparams['head_w'], kparams['head_b'])
    # the fused logits block needs a sublane-clean first dim (tb % 8 == 0) unless it
    # spans the whole (padded) batch in a single grid step
    can_fuse = fuse_head and bool(blocks) and (tb % 8 == 0 or tb == B_pad)

    for bi, blk in enumerate(blocks):
        is_last = bi == len(blocks) - 1
        tok = mixer_block_pallas(
            tok, blk, tb=tb, single_buffer_weights=single_buffer_weights,
            approx_gelu=approx_gelu,
            head=head if (is_last and can_fuse) else None)

    if can_fuse:
        logits = tok
    else:
        logits = head_pallas(tok, *head, single_buffer_weights=single_buffer_weights)
    # returns lane-dense padded logits (B, Kpad); caller slices to num_classes
    return logits[:B]


# ---------------------- pure-JAX references -------------------------------- #

def mlp_mixer_reference_bf16(params, x, patch_size):
    """Mirrors the kernel numerics (bf16 MXU operands, f32 accumulation, exact GELU)."""
    bf16, f32 = jnp.bfloat16, jnp.float32
    patches = patchify(x, patch_size).astype(bf16)
    tok = jnp.einsum('bnk,kd->bnd', patches, params['stem_w'].astype(bf16),
                     preferred_element_type=f32) + params['stem_b']
    for blk in params['blocks']:
        y = _ln(tok, blk['g1'], blk['b1'])
        yt = jnp.swapaxes(y, 1, 2).astype(bf16)                  # (B, C, N)
        h = jnp.einsum('bcn,nt->bct', yt, blk['wt1'].astype(bf16),
                       preferred_element_type=f32) + blk['bt1']
        h = _gelu(h).astype(bf16)
        t = jnp.einsum('bct,tn->bcn', h, blk['wt2'].astype(bf16),
                       preferred_element_type=f32) + blk['bt2']
        tok = tok + jnp.swapaxes(t, 1, 2)
        y = _ln(tok, blk['g2'], blk['b2']).astype(bf16)
        h = jnp.einsum('bnc,ch->bnh', y, blk['wc1'].astype(bf16),
                       preferred_element_type=f32) + blk['bc1']
        h = _gelu(h).astype(bf16)
        tok = tok + jnp.einsum('bnh,hc->bnc', h, blk['wc2'].astype(bf16),
                               preferred_element_type=f32) + blk['bc2']
    y = _ln(tok, params['norm_g'], params['norm_b'])
    pooled = y.mean(axis=1).astype(bf16)
    return jnp.einsum('bc,ck->bk', pooled, params['head_w'].astype(bf16),
                      preferred_element_type=f32) + params['head_b']


def mlp_mixer_reference_f32(params, x, patch_size):
    """Full-precision reference matching the original module semantics."""
    def gelu(v):
        return jax.nn.gelu(v, approximate=False)

    B = x.shape[0]
    patches = patchify(x, patch_size)
    N = patches.shape[1]
    tok = patches.reshape(B * N, -1) @ params['stem_w'] + params['stem_b']
    tok = tok.reshape(B, N, -1)
    for blk in params['blocks']:
        y = _ln(tok, blk['g1'], blk['b1'])
        yt = jnp.swapaxes(y, 1, 2)
        h = gelu(yt @ blk['wt1'] + blk['bt1'])
        t = h @ blk['wt2'] + blk['bt2']
        tok = tok + jnp.swapaxes(t, 1, 2)
        y = _ln(tok, blk['g2'], blk['b2'])
        h = gelu(y @ blk['wc1'] + blk['bc1'])
        tok = tok + (h @ blk['wc2'] + blk['bc2'])
    y = _ln(tok, params['norm_g'], params['norm_b'])
    pooled = y.mean(axis=1)
    return pooled @ params['head_w'] + params['head_b']


def init_params(key, *, in_chans, patch_size, embed_dim, num_patches,
                num_blocks, mlp_ratio, num_classes):
    tokens_dim = int(mlp_ratio[0] * embed_dim)
    channels_dim = int(mlp_ratio[1] * embed_dim)

    def xavier(k, fin, fout):
        lim = (6.0 / (fin + fout)) ** 0.5
        return jax.random.uniform(k, (fin, fout), jnp.float32, -lim, lim)

    def vec(k, n, scale=0.01):
        return scale * jax.random.normal(k, (1, n), jnp.float32)

    keys = iter(jax.random.split(key, 8 + 16 * num_blocks))
    p = {
        'stem_w': xavier(next(keys), in_chans * patch_size * patch_size, embed_dim),
        'stem_b': vec(next(keys), embed_dim),
        'norm_g': 1.0 + vec(next(keys), embed_dim),
        'norm_b': vec(next(keys), embed_dim),
        # NOTE: timm's _init_weights zeros the head; random init used here so the
        # numerical check is non-trivial (semantics unchanged).
        'head_w': xavier(next(keys), embed_dim, num_classes),
        'head_b': vec(next(keys), num_classes),
        'blocks': [],
    }
    for _ in range(num_blocks):
        blk = {
            'g1': 1.0 + vec(next(keys), embed_dim),
            'b1': vec(next(keys), embed_dim),
            'wt1': xavier(next(keys), num_patches, tokens_dim),
            'bt1': vec(next(keys), tokens_dim),
            'wt2': xavier(next(keys), tokens_dim, num_patches),
            'bt2': vec(next(keys), num_patches),
            'g2': 1.0 + vec(next(keys), embed_dim),
            'b2': vec(next(keys), embed_dim),
            'wc1': xavier(next(keys), embed_dim, channels_dim),
            'bc1': vec(next(keys), channels_dim),
            'wc2': xavier(next(keys), channels_dim, embed_dim),
            'bc2': vec(next(keys), embed_dim),
        }
        p['blocks'].append(blk)
    return p


if __name__ == "__main__":
    # small MlpMixer config: img 16x16, patch 4 -> 16 tokens, embed 32, 2 blocks
    B, in_chans, img_size, patch_size = 2, 3, 16, 4
    embed_dim, num_blocks, num_classes = 32, 2, 10
    mlp_ratio = (0.5, 4.0)
    num_patches = (img_size // patch_size) ** 2

    key = jax.random.PRNGKey(0)
    kx, kp = jax.random.split(key)
    x = jax.random.normal(kx, (B, in_chans, img_size, img_size), jnp.float32)
    params = init_params(kp, in_chans=in_chans, patch_size=patch_size,
                         embed_dim=embed_dim, num_patches=num_patches,
                         num_blocks=num_blocks, mlp_ratio=mlp_ratio,
                         num_classes=num_classes)
    kparams = prepare_params(params)

    def run(single_buffer_weights):
        fwd = jax.jit(functools.partial(
            mlp_mixer_forward, patch_size=patch_size,
            single_buffer_weights=single_buffer_weights))
        return jax.block_until_ready(fwd(kparams, x))

    try:
        out_padded = run(True)
    except Exception:
        # Fallback: this jax/Mosaic version rejects pl.Buffered(1) single-buffered
        # weight specs; rebuild with default double-buffered weight blocks.
        out_padded = run(False)

    out = out_padded[:, :num_classes]

    ref_bf16 = mlp_mixer_reference_bf16(params, x, patch_size)
    ref_f32 = mlp_mixer_reference_f32(params, x, patch_size)

    assert out.shape == (B, num_classes), out.shape
    # strict check vs a reference that mirrors the kernel's bf16/f32 numerics
    assert jnp.allclose(out, ref_bf16, atol=5e-3, rtol=5e-3), (out, ref_bf16)
    # loose sanity check vs the full-f32 module semantics
    assert jnp.allclose(out, ref_f32, atol=1e-1, rtol=1e-1), (out, ref_f32)

    print("KERNEL_OK")
</pallas_src>

<mosaic_0001>
module attributes {stable_mosaic.version = 11 : i64} {
  func.func @_stem_kernel(%arg0: i32, %arg1: memref<2x16x48xbf16, #tpu.memory_space<vmem>>, %arg2: memref<48x32xbf16, #tpu.memory_space<vmem>>, %arg3: memref<1x32xf32, #tpu.memory_space<vmem>>, %arg4: memref<2x16x32xf32, #tpu.memory_space<vmem>>) attributes {dimension_semantics = [#tpu.dimension_semantics<parallel>], iteration_bounds = array<i64: 1>, scalar_prefetch = 0 : i64, scratch_operands = 0 : i64, tpu.core_type = #tpu.core_type<tc>, window_params = [{transform_indices = @transform_0, window_bounds = array<i64: 2, 16, 48>}, {pipeline_mode = #tpu.pipeline_mode<synchronous>, transform_indices = @transform_1, window_bounds = array<i64: 48, 32>}, {pipeline_mode = #tpu.pipeline_mode<synchronous>, transform_indices = @transform_2, window_bounds = array<i64: 1, 32>}, {transform_indices = @transform_3, window_bounds = array<i64: 2, 16, 32>}]} {
    %c0 = arith.constant 0 : index
    %c0_0 = arith.constant 0 : index
    %c0_1 = arith.constant 0 : index
    %0 = vector.load %arg1[%c0, %c0_0, %c0_1] : memref<2x16x48xbf16, #tpu.memory_space<vmem>>, vector<2x16x48xbf16>
    %1 = vector.shape_cast %0 : vector<2x16x48xbf16> to vector<32x48xbf16>
    %c0_2 = arith.constant 0 : index
    %c0_3 = arith.constant 0 : index
    %2 = vector.load %arg2[%c0_2, %c0_3] : memref<48x32xbf16, #tpu.memory_space<vmem>>, vector<48x32xbf16>
    %cst = arith.constant dense<0.000000e+00> : vector<32x32xf32>
    %3 = tpu.matmul %1, %2, %cst {dimension_numbers = #tpu.dot_dimension_numbers<[1], [0], [0], [1], [0, 0, 1, 1], [], []>} : vector<32x48xbf16>, vector<48x32xbf16>, vector<32x32xf32> -> vector<32x32xf32>
    %c0_4 = arith.constant 0 : index
    %c0_5 = arith.constant 0 : index
    %4 = vector.load %arg3[%c0_4, %c0_5] : memref<1x32xf32, #tpu.memory_space<vmem>>, vector<1x32xf32>
    %5 = vector.broadcast %4 : vector<1x32xf32> to vector<32x32xf32>
    %6 = arith.addf %3, %5 : vector<32x32xf32>
    %7 = vector.shape_cast %6 : vector<32x32xf32> to vector<2x16x32xf32>
    %c0_6 = arith.constant 0 : index
    %c0_7 = arith.constant 0 : index
    %c0_8 = arith.constant 0 : index
    %8 = vector.load %arg4[%c0_6, %c0_7, %c0_8] : memref<2x16x32xf32, #tpu.memory_space<vmem>>, vector<2x16x32xf32>
    tpu.vector_store %arg4[%c0_6, %c0_7, %c0_8], %7 {strides = array<i32>} : memref<2x16x32xf32, #tpu.memory_space<vmem>>, vector<2x16x32xf32>,
    return
  }
  func.func @transform_0(%arg0: i32) -> (i32, i32, i32) {
    %c0_i32 = arith.constant 0 : i32
    %c0_i32_0 = arith.constant 0 : i32
    %c0_i32_1 = arith.constant 0 : i32
    return %arg0, %c0_i32, %c0_i32_0 : i32, i32, i32
  }
  func.func @transform_1(%arg0: i32) -> (i32, i32) {
    %c0_i32 = arith.constant 0 : i32
    %c0_i32_0 = arith.constant 0 : i32
    %c0_i32_1 = arith.constant 0 : i32
    return %c0_i32, %c0_i32_0 : i32, i32
  }
  func.func @transform_2(%arg0: i32) -> (i32, i32) {
    %c0_i32 = arith.constant 0 : i32
    %c0_i32_0 = arith.constant 0 : i32
    %c0_i32_1 = arith.constant 0 : i32
    return %c0_i32, %c0_i32_0 : i32, i32
  }
  func.func @transform_3(%arg0: i32) -> (i32, i32, i32) {
    %c0_i32 = arith.constant 0 : i32
    %c0_i32_0 = arith.constant 0 : i32
    %c0_i32_1 = arith.constant 0 : i32
    return %arg0, %c0_i32, %c0_i32_0 : i32, i32, i32
  }
}

module attributes {stable_mosaic.version = 11 : i64} {
  func.func @_mixer_block_kernel(%arg0: i32, %arg1: memref<2x16x32xf32, #tpu.memory_space<vmem>>, %arg2: memref<1x32xf32, #tpu.memory_space<vmem>>, %arg3: memref<1x32xf32, #tpu.memory_space<vmem>>, %arg4: memref<16x16xbf16, #tpu.memory_space<vmem>>, %arg5: memref<16x1xf32, #tpu.memory_space<vmem>>, %arg6: memref<16x16xbf16, #tpu.memory_space<vmem>>, %arg7: memref<16x1xf32, #tpu.memory_space<vmem>>, %arg8: memref<1x32xf32, #tpu.memory_space<vmem>>, %arg9: memref<1x32xf32, #tpu.memory_space<vmem>>, %arg10: memref<32x128xbf16, #tpu.memory_space<vmem>>, %arg11: memref<1x128xf32, #tpu.memory_space<vmem>>, %arg12: memref<128x32xbf16, #tpu.memory_space<vmem>>, %arg13: memref<1x32xf32, #tpu.memory_space<vmem>>, %arg14: memref<2x16x32xf32, #tpu.memory_space<vmem>>) attributes {dimension_semantics = [#tpu.dimension_semantics<parallel>], iteration_bounds = array<i64: 1>, scalar_prefetch = 0 : i64, scratch_operands = 0 : i64, tpu.core_type = #tpu.core_type<tc>, window_params = [{transform_indices = @transform_0, window_bounds = array<i64: 2, 16, 32>}, {pipeline_mode = #tpu.pipeline_mode<synchronous>, transform_indices = @transform_1, window_bounds = array<i64: 1, 32>}, {pipeline_mode = #tpu.pipeline_mode<synchronous>, transform_indices = @transform_2, window_bounds = array<i64: 1, 32>}, {pipeline_mode = #tpu.pipeline_mode<synchronous>, transform_indices = @transform_3, window_bounds = array<i64: 16, 16>}, {pipeline_mode = #tpu.pipeline_mode<synchronous>, transform_indices = @transform_4, window_bounds = array<i64: 16, 1>}, {pipeline_mode = #tpu.pipeline_mode<synchronous>, transform_indices = @transform_5, window_bounds = array<i64: 16, 16>}, {pipeline_mode = #tpu.pipeline_mode<synchronous>, transform_indices = @transform_6, window_bounds = array<i64: 16, 1>}, {pipeline_mode = #tpu.pipeline_mode<synchronous>, transform_indices = @transform_7, window_bounds = array<i64: 1, 32>}, {pipeline_mode = #tpu.pipeline_mode<synchronous>, transform_indices = @transform_8, window_bounds = array<i64: 1, 32>}, {pipeline_mode = #tpu.pipeline_mode<synchronous>, transform_indices = @transform_9, window_bounds = array<i64: 32, 128>}, {pipeline_mode = #tpu.pipeline_mode<synchronous>, transform_indices = @transform_10, window_bounds = array<i64: 1, 128>}, {pipeline_mode = #tpu.pipeline_mode<synchronous>, transform_indices = @transform_11, window_bounds = array<i64: 128, 32>}, {pipeline_mode = #tpu.pipeline_mode<synchronous>, transform_indices = @transform_12, window_bounds = array<i64: 1, 32>}, {transform_indices = @transform_13, window_bounds = array<i64: 2, 16, 32>}]} {
    %c0 = arith.constant 0 : index
    %c0_0 = arith.constant 0 : index
    %c0_1 = arith.constant 0 : index
    %0 = vector.load %arg1[%c0, %c0_0, %c0_1] : memref<2x16x32xf32, #tpu.memory_space<vmem>>, vector<2x16x32xf32>
    %c0_2 = arith.constant 0 : index
    %c0_3 = arith.constant 0 : index
    %1 = vector.load %arg5[%c0_2, %c0_3] : memref<16x1xf32, #tpu.memory_space<vmem>>, vector<16x1xf32>
    %c0_4 = arith.constant 0 : index
    %c0_5 = arith.constant 0 : index
    %2 = vector.load %arg7[%c0_4, %c0_5] : memref<16x1xf32, #tpu.memory_space<vmem>>, vector<16x1xf32>
    %c0_6 = arith.constant 0 : index
    %c0_7 = arith.constant 0 : index
    %3 = vector.load %arg4[%c0_6, %c0_7] : memref<16x16xbf16, #tpu.memory_space<vmem>>, vector<16x16xbf16>
    %4 = vector.shape_cast %3 : vector<16x16xbf16> to vector<1x16x16xbf16>
    %5 = vector.broadcast %4 : vector<1x16x16xbf16> to vector<2x16x16xbf16>
    %c0_8 = arith.constant 0 : index
    %c0_9 = arith.constant 0 : index
    %6 = vector.load %arg6[%c0_8, %c0_9] : memref<16x16xbf16, #tpu.memory_space<vmem>>, vector<16x16xbf16>
    %7 = vector.shape_cast %6 : vector<16x16xbf16> to vector<1x16x16xbf16>
    %8 = vector.broadcast %7 : vector<1x16x16xbf16> to vector<2x16x16xbf16>
    %c0_10 = arith.constant 0 : index
    %c0_11 = arith.constant 0 : index
    %9 = vector.load %arg10[%c0_10, %c0_11] : memref<32x128xbf16, #tpu.memory_space<vmem>>, vector<32x128xbf16>
    %c0_12 = arith.constant 0 : index
    %c0_13 = arith.constant 0 : index
    %10 = vector.load %arg11[%c0_12, %c0_13] : memref<1x128xf32, #tpu.memory_space<vmem>>, vector<1x128xf32>
    %c0_14 = arith.constant 0 : index
    %c0_15 = arith.constant 0 : index
    %11 = vector.load %arg12[%c0_14, %c0_15] : memref<128x32xbf16, #tpu.memory_space<vmem>>, vector<128x32xbf16>
    %c0_16 = arith.constant 0 : index
    %c0_17 = arith.constant 0 : index
    %12 = vector.load %arg13[%c0_16, %c0_17] : memref<1x32xf32, #tpu.memory_space<vmem>>, vector<1x32xf32>
    %c0_18 = arith.constant 0 : index
    %c0_19 = arith.constant 0 : index
    %13 = vector.load %arg2[%c0_18, %c0_19] : memref<1x32xf32, #tpu.memory_space<vmem>>, vector<1x32xf32>
    %c0_20 = arith.constant 0 : index
    %c0_21 = arith.constant 0 : index
    %14 = vector.load %arg3[%c0_20, %c0_21] : memref<1x32xf32, #tpu.memory_space<vmem>>, vector<1x32xf32>
    %cst = arith.constant dense<0.000000e+00> : vector<2x16xf32>
    %15 = vector.multi_reduction <add>, %0, %cst [2] : vector<2x16x32xf32> to vector<2x16xf32>
    %16 = vector.shape_cast %15 : vector<2x16xf32> to vector<2x16x1xf32>
    %cst_22 = arith.constant 3.200000e+01 : f32
    %17 = vector.broadcast %cst_22 : f32 to vector<2x16x1xf32>
    %18 = arith.divf %16, %17 : vector<2x16x1xf32>
    %19 = vector.broadcast %18 : vector<2x16x1xf32> to vector<2x16x32xf32>
    %20 = arith.subf %0, %19 : vector<2x16x32xf32>
    %21 = arith.mulf %20, %20 : vector<2x16x32xf32>
    %cst_23 = arith.constant dense<0.000000e+00> : vector<2x16xf32>
    %22 = vector.multi_reduction <add>, %21, %cst_23 [2] : vector<2x16x32xf32> to vector<2x16xf32>
    %23 = vector.shape_cast %22 : vector<2x16xf32> to vector<2x16x1xf32>
    %cst_24 = arith.constant 3.200000e+01 : f32
    %24 = vector.broadcast %cst_24 : f32 to vector<2x16x1xf32>
    %25 = arith.divf %23, %24 : vector<2x16x1xf32>
    %26 = vector.broadcast %18 : vector<2x16x1xf32> to vector<2x16x32xf32>
    %27 = arith.subf %0, %26 : vector<2x16x32xf32>
    %cst_25 = arith.constant 9.99999997E-7 : f32
    %28 = vector.broadcast %cst_25 : f32 to vector<2x16x1xf32>
    %29 = arith.addf %25, %28 : vector<2x16x1xf32>
    %30 = math.rsqrt %29 : vector<2x16x1xf32>
    %31 = vector.broadcast %30 : vector<2x16x1xf32> to vector<2x16x32xf32>
    %32 = arith.mulf %27, %31 : vector<2x16x32xf32>
    %33 = vector.shape_cast %13 : vector<1x32xf32> to vector<1x1x32xf32>
    %34 = vector.broadcast %33 : vector<1x1x32xf32> to vector<2x16x32xf32>
    %35 = arith.mulf %32, %34 : vector<2x16x32xf32>
    %36 = vector.shape_cast %14 : vector<1x32xf32> to vector<1x1x32xf32>
    %37 = vector.broadcast %36 : vector<1x1x32xf32> to vector<2x16x32xf32>
    %38 = arith.addf %35, %37 : vector<2x16x32xf32>
    %39 = arith.truncf %38 : vector<2x16x32xf32> to vector<2x16x32xbf16>
    "tpu.trace_start"() <{level = 10 : i32, message = "btn,bnc->btc"}> : () -> ()
    %cst_26 = arith.constant dense<0.000000e+00> : vector<2x16x32xf32>
    %40 = tpu.matmul %5, %39, %cst_26 {dimension_numbers = #tpu.dot_dimension_numbers<[2], [1], [1], [2], [0, 0, 0, 1, 1, 2], [0], [0]>} : vector<2x16x16xbf16>, vector<2x16x32xbf16>, vector<2x16x32xf32> -> vector<2x16x32xf32>
    "tpu.trace_stop"() : () -> ()
    %41 = vector.shape_cast %1 : vector<16x1xf32> to vector<1x16x1xf32>
    %42 = vector.broadcast %41 : vector<1x16x1xf32> to vector<2x16x32xf32>
    %43 = arith.addf %40, %42 : vector<2x16x32xf32>
    %cst_27 = arith.constant 5.000000e-01 : f32
    %44 = vector.broadcast %cst_27 : f32 to vector<2x16x32xf32>
    %45 = arith.mulf %44, %43 : vector<2x16x32xf32>
    %cst_28 = arith.constant 0.707106769 : f32
    %46 = vector.broadcast %cst_28 : f32 to vector<2x16x32xf32>
    %47 = arith.mulf %43, %46 : vector<2x16x32xf32>
    %48 = math.erf %47 : vector<2x16x32xf32>
    %cst_29 = arith.constant 1.000000e+00 : f32
    %49 = vector.broadcast %cst_29 : f32 to vector<2x16x32xf32>
    %50 = arith.addf %49, %48 : vector<2x16x32xf32>
    %51 = arith.mulf %45, %50 : vector<2x16x32xf32>
    %52 = arith.truncf %51 : vector<2x16x32xf32> to vector<2x16x32xbf16>
    "tpu.trace_start"() <{level = 10 : i32, message = "bnt,btc->bnc"}> : () -> ()
    %cst_30 = arith.constant dense<0.000000e+00> : vector<2x16x32xf32>
    %53 = tpu.matmul %8, %52, %cst_30 {dimension_numbers = #tpu.dot_dimension_numbers<[2], [1], [1], [2], [0, 0, 0, 1, 1, 2], [0], [0]>} : vector<2x16x16xbf16>, vector<2x16x32xbf16>, vector<2x16x32xf32> -> vector<2x16x32xf32>
    "tpu.trace_stop"() : () -> ()
    %54 = vector.shape_cast %2 : vector<16x1xf32> to vector<1x16x1xf32>
    %55 = vector.broadcast %54 : vector<1x16x1xf32> to vector<2x16x32xf32>
    %56 = arith.addf %53, %55 : vector<2x16x32xf32>
    %57 = arith.addf %0, %56 : vector<2x16x32xf32>
    %c0_31 = arith.constant 0 : index
    %c0_32 = arith.constant 0 : index
    %58 = vector.load %arg8[%c0_31, %c0_32] : memref<1x32xf32, #tpu.memory_space<vmem>>, vector<1x32xf32>
    %c0_33 = arith.constant 0 : index
    %c0_34 = arith.constant 0 : index
    %59 = vector.load %arg9[%c0_33, %c0_34] : memref<1x32xf32, #tpu.memory_space<vmem>>, vector<1x32xf32>
    %cst_35 = arith.constant dense<0.000000e+00> : vector<2x16xf32>
    %60 = vector.multi_reduction <add>, %57, %cst_35 [2] : vector<2x16x32xf32> to vector<2x16xf32>
    %61 = vector.shape_cast %60 : vector<2x16xf32> to vector<2x16x1xf32>
    %cst_36 = arith.constant 3.200000e+01 : f32
    %62 = vector.broadcast %cst_36 : f32 to vector<2x16x1xf32>
    %63 = arith.divf %61, %62 : vector<2x16x1xf32>
    %64 = vector.broadcast %63 : vector<2x16x1xf32> to vector<2x16x32xf32>
    %65 = arith.subf %57, %64 : vector<2x16x32xf32>
    %66 = arith.mulf %65, %65 : vector<2x16x32xf32>
    %cst_37 = arith.constant dense<0.000000e+00> : vector<2x16xf32>
    %67 = vector.multi_reduction <add>, %66, %cst_37 [2] : vector<2x16x32xf32> to vector<2x16xf32>
    %68 = vector.shape_cast %67 : vector<2x16xf32> to vector<2x16x1xf32>
    %cst_38 = arith.constant 3.200000e+01 : f32
    %69 = vector.broadcast %cst_38 : f32 to vector<2x16x1xf32>
    %70 = arith.divf %68, %69 : vector<2x16x1xf32>
    %71 = vector.broadcast %63 : vector<2x16x1xf32> to vector<2x16x32xf32>
    %72 = arith.subf %57, %71 : vector<2x16x32xf32>
    %cst_39 = arith.constant 9.99999997E-7 : f32
    %73 = vector.broadcast %cst_39 : f32 to vector<2x16x1xf32>
    %74 = arith.addf %70, %73 : vector<2x16x1xf32>
    %75 = math.rsqrt %74 : vector<2x16x1xf32>
    %76 = vector.broadcast %75 : vector<2x16x1xf32> to vector<2x16x32xf32>
    %77 = arith.mulf %72, %76 : vector<2x16x32xf32>
    %78 = vector.shape_cast %58 : vector<1x32xf32> to vector<1x1x32xf32>
    %79 = vector.broadcast %78 : vector<1x1x32xf32> to vector<2x16x32xf32>
    %80 = arith.mulf %77, %79 : vector<2x16x32xf32>
    %81 = vector.shape_cast %59 : vector<1x32xf32> to vector<1x1x32xf32>
    %82 = vector.broadcast %81 : vector<1x1x32xf32> to vector<2x16x32xf32>
    %83 = arith.addf %80, %82 : vector<2x16x32xf32>
    %84 = vector.shape_cast %83 : vector<2x16x32xf32> to vector<32x32xf32>
    %85 = arith.truncf %84 : vector<32x32xf32> to vector<32x32xbf16>
    %cst_40 = arith.constant dense<0.000000e+00> : vector<32x128xf32>
    %86 = tpu.matmul %85, %9, %cst_40 {dimension_numbers = #tpu.dot_dimension_numbers<[1], [0], [0], [1], [0, 0, 1, 1], [], []>} : vector<32x32xbf16>, vector<32x128xbf16>, vector<32x128xf32> -> vector<32x128xf32>
    %87 = vector.broadcast %10 : vector<1x128xf32> to vector<32x128xf32>
    %88 = arith.addf %86, %87 : vector<32x128xf32>
    %cst_41 = arith.constant 5.000000e-01 : f32
    %89 = vector.broadcast %cst_41 : f32 to vector<32x128xf32>
    %90 = arith.mulf %89, %88 : vector<32x128xf32>
    %cst_42 = arith.constant 0.707106769 : f32
    %91 = vector.broadcast %cst_42 : f32 to vector<32x128xf32>
    %92 = arith.mulf %88, %91 : vector<32x128xf32>
    %93 = math.erf %92 : vector<32x128xf32>
    %cst_43 = arith.constant 1.000000e+00 : f32
    %94 = vector.broadcast %cst_43 : f32 to vector<32x128xf32>
    %95 = arith.addf %94, %93 : vector<32x128xf32>
    %96 = arith.mulf %90, %95 : vector<32x128xf32>
    %97 = arith.truncf %96 : vector<32x128xf32> to vector<32x128xbf16>
    %cst_44 = arith.constant dense<0.000000e+00> : vector<32x32xf32>
    %98 = tpu.matmul %97, %11, %cst_44 {dimension_numbers = #tpu.dot_dimension_numbers<[1], [0], [0], [1], [0, 0, 1, 1], [], []>} : vector<32x128xbf16>, vector<128x32xbf16>, vector<32x32xf32> -> vector<32x32xf32>
    %99 = vector.broadcast %12 : vector<1x32xf32> to vector<32x32xf32>
    %100 = arith.addf %98, %99 : vector<32x32xf32>
    %101 = vector.shape_cast %100 : vector<32x32xf32> to vector<2x16x32xf32>
    %102 = arith.addf %57, %101 : vector<2x16x32xf32>
    %c0_45 = arith.constant 0 : index
    %c0_46 = arith.constant 0 : index
    %c0_47 = arith.constant 0 : index
    %103 = vector.load %arg14[%c0_45, %c0_46, %c0_47] : memref<2x16x32xf32, #tpu.memory_space<vmem>>, vector<2x16x32xf32>
    tpu.vector_store %arg14[%c0_45, %c0_46, %c0_47], %102 {strides = array<i32>} : memref<2x16x32xf32, #tpu.memory_space<vmem>>, vector<2x16x32xf32>,
    return
  }
  func.func @transform_0(%arg0: i32) -> (i32, i32, i32) {
    %c0_i32 = arith.constant 0 : i32
    %c0_i32_0 = arith.constant 0 : i32
    %c0_i32_1 = arith.constant 0 : i32
    return %arg0, %c0_i32, %c0_i32_0 : i32, i32, i32
  }
  func.func @transform_1(%arg0: i32) -> (i32, i32) {
    %c0_i32 = arith.constant 0 : i32
    %c0_i32_0 = arith.constant 0 : i32
    %c0_i32_1 = arith.constant 0 : i32
    return %c0_i32, %c0_i32_0 : i32, i32
  }
  func.func @transform_2(%arg0: i32) -> (i32, i32) {
    %c0_i32 = arith.constant 0 : i32
    %c0_i32_0 = arith.constant 0 : i32
    %c0_i32_1 = arith.constant 0 : i32
    return %c0_i32, %c0_i32_0 : i32, i32
  }
  func.func @transform_3(%arg0: i32) -> (i32, i32) {
    %c0_i32 = arith.constant 0 : i32
    %c0_i32_0 = arith.constant 0 : i32
    %c0_i32_1 = arith.constant 0 : i32
    return %c0_i32, %c0_i32_0 : i32, i32
  }
  func.func @transform_4(%arg0: i32) -> (i32, i32) {
    %c0_i32 = arith.constant 0 : i32
    %c0_i32_0 = arith.constant 0 : i32
    %c0_i32_1 = arith.constant 0 : i32
    return %c0_i32, %c0_i32_0 : i32, i32
  }
  func.func @transform_5(%arg0: i32) -> (i32, i32) {
    %c0_i32 = arith.constant 0 : i32
    %c0_i32_0 = arith.constant 0 : i32
    %c0_i32_1 = arith.constant 0 : i32
    return %c0_i32, %c0_i32_0 : i32, i32
  }
  func.func @transform_6(%arg0: i32) -> (i32, i32) {
    %c0_i32 = arith.constant 0 : i32
    %c0_i32_0 = arith.constant 0 : i32
    %c0_i32_1 = arith.constant 0 : i32
    return %c0_i32, %c0_i32_0 : i32, i32
  }
  func.func @transform_7(%arg0: i32) -> (i32, i32) {
    %c0_i32 = arith.constant 0 : i32
    %c0_i32_0 = arith.constant 0 : i32
    %c0_i32_1 = arith.constant 0 : i32
    return %c0_i32, %c0_i32_0 : i32, i32
  }
  func.func @transform_8(%arg0: i32) -> (i32, i32) {
    %c0_i32 = arith.constant 0 : i32
    %c0_i32_0 = arith.constant 0 : i32
    %c0_i32_1 = arith.constant 0 : i32
    return %c0_i32, %c0_i32_0 : i32, i32
  }
  func.func @transform_9(%arg0: i32) -> (i32, i32) {
    %c0_i32 = arith.constant 0 : i32
    %c0_i32_0 = arith.constant 0 : i32
    %c0_i32_1 = arith.constant 0 : i32
    return %c0_i32, %c0_i32_0 : i32, i32
  }
  func.func @transform_10(%arg0: i32) -> (i32, i32) {
    %c0_i32 = arith.constant 0 : i32
    %c0_i32_0 = arith.constant 0 : i32
    %c0_i32_1 = arith.constant 0 : i32
    return %c0_i32, %c0_i32_0 : i32, i32
  }
  func.func @transform_11(%arg0: i32) -> (i32, i32) {
    %c0_i32 = arith.constant 0 : i32
    %c0_i32_0 = arith.constant 0 : i32
    %c0_i32_1 = arith.constant 0 : i32
    return %c0_i32, %c0_i32_0 : i32, i32
  }
  func.func @transform_12(%arg0: i32) -> (i32, i32) {
    %c0_i32 = arith.constant 0 : i32
    %c0_i32_0 = arith.constant 0 : i32
    %c0_i32_1 = arith.constant 0 : i32
    return %c0_i32, %c0_i32_0 : i32, i32
  }
  func.func @transform_13(%arg0: i32) -> (i32, i32, i32) {
    %c0_i32 = arith.constant 0 : i32
    %c0_i32_0 = arith.constant 0 : i32
    %c0_i32_1 = arith.constant 0 : i32
    return %arg0, %c0_i32, %c0_i32_0 : i32, i32, i32
  }
}

module attributes {stable_mosaic.version = 11 : i64} {
  func.func @_mixer_block_head_kernel(%arg0: i32, %arg1: memref<2x16x32xf32, #tpu.memory_space<vmem>>, %arg2: memref<1x32xf32, #tpu.memory_space<vmem>>, %arg3: memref<1x32xf32, #tpu.memory_space<vmem>>, %arg4: memref<16x16xbf16, #tpu.memory_space<vmem>>, %arg5: memref<16x1xf32, #tpu.memory_space<vmem>>, %arg6: memref<16x16xbf16, #tpu.memory_space<vmem>>, %arg7: memref<16x1xf32, #tpu.memory_space<vmem>>, %arg8: memref<1x32xf32, #tpu.memory_space<vmem>>, %arg9: memref<1x32xf32, #tpu.memory_space<vmem>>, %arg10: memref<32x128xbf16, #tpu.memory_space<vmem>>, %arg11: memref<1x128xf32, #tpu.memory_space<vmem>>, %arg12: memref<128x32xbf16, #tpu.memory_space<vmem>>, %arg13: memref<1x32xf32, #tpu.memory_space<vmem>>, %arg14: memref<1x32xf32, #tpu.memory_space<vmem>>, %arg15: memref<1x32xf32, #tpu.memory_space<vmem>>, %arg16: memref<32x128xbf16, #tpu.memory_space<vmem>>, %arg17: memref<1x128xf32, #tpu.memory_space<vmem>>, %arg18: memref<2x128xf32, #tpu.memory_space<vmem>>) attributes {dimension_semantics = [#tpu.dimension_semantics<parallel>], iteration_bounds = array<i64: 1>, scalar_prefetch = 0 : i64, scratch_operands = 0 : i64, tpu.core_type = #tpu.core_type<tc>, window_params = [{transform_indices = @transform_0, window_bounds = array<i64: 2, 16, 32>}, {pipeline_mode = #tpu.pipeline_mode<synchronous>, transform_indices = @transform_1, window_bounds = array<i64: 1, 32>}, {pipeline_mode = #tpu.pipeline_mode<synchronous>, transform_indices = @transform_2, window_bounds = array<i64: 1, 32>}, {pipeline_mode = #tpu.pipeline_mode<synchronous>, transform_indices = @transform_3, window_bounds = array<i64: 16, 16>}, {pipeline_mode = #tpu.pipeline_mode<synchronous>, transform_indices = @transform_4, window_bounds = array<i64: 16, 1>}, {pipeline_mode = #tpu.pipeline_mode<synchronous>, transform_indices = @transform_5, window_bounds = array<i64: 16, 16>}, {pipeline_mode = #tpu.pipeline_mode<synchronous>, transform_indices = @transform_6, window_bounds = array<i64: 16, 1>}, {pipeline_mode = #tpu.pipeline_mode<synchronous>, transform_indices = @transform_7, window_bounds = array<i64: 1, 32>}, {pipeline_mode = #tpu.pipeline_mode<synchronous>, transform_indices = @transform_8, window_bounds = array<i64: 1, 32>}, {pipeline_mode = #tpu.pipeline_mode<synchronous>, transform_indices = @transform_9, window_bounds = array<i64: 32, 128>}, {pipeline_mode = #tpu.pipeline_mode<synchronous>, transform_indices = @transform_10, window_bounds = array<i64: 1, 128>}, {pipeline_mode = #tpu.pipeline_mode<synchronous>, transform_indices = @transform_11, window_bounds = array<i64: 128, 32>}, {pipeline_mode = #tpu.pipeline_mode<synchronous>, transform_indices = @transform_12, window_bounds = array<i64: 1, 32>}, {pipeline_mode = #tpu.pipeline_mode<synchronous>, transform_indices = @transform_13, window_bounds = array<i64: 1, 32>}, {pipeline_mode = #tpu.pipeline_mode<synchronous>, transform_indices = @transform_14, window_bounds = array<i64: 1, 32>}, {pipeline_mode = #tpu.pipeline_mode<synchronous>, transform_indices = @transform_15, window_bounds = array<i64: 32, 128>}, {pipeline_mode = #tpu.pipeline_mode<synchronous>, transform_indices = @transform_16, window_bounds = array<i64: 1, 128>}, {transform_indices = @transform_17, window_bounds = array<i64: 2, 128>}]} {
    %c0 = arith.constant 0 : index
    %c0_0 = arith.constant 0 : index
    %c0_1 = arith.constant 0 : index
    %0 = vector.load %arg1[%c0, %c0_0, %c0_1] : memref<2x16x32xf32, #tpu.memory_space<vmem>>, vector<2x16x32xf32>
    %c0_2 = arith.constant 0 : index
    %c0_3 = arith.constant 0 : index
    %1 = vector.load %arg5[%c0_2, %c0_3] : memref<16x1xf32, #tpu.memory_space<vmem>>, vector<16x1xf32>
    %c0_4 = arith.constant 0 : index
    %c0_5 = arith.constant 0 : index
    %2 = vector.load %arg7[%c0_4, %c0_5] : memref<16x1xf32, #tpu.memory_space<vmem>>, vector<16x1xf32>
    %c0_6 = arith.constant 0 : index
    %c0_7 = arith.constant 0 : index
    %3 = vector.load %arg4[%c0_6, %c0_7] : memref<16x16xbf16, #tpu.memory_space<vmem>>, vector<16x16xbf16>
    %4 = vector.shape_cast %3 : vector<16x16xbf16> to vector<1x16x16xbf16>
    %5 = vector.broadcast %4 : vector<1x16x16xbf16> to vector<2x16x16xbf16>
    %c0_8 = arith.constant 0 : index
    %c0_9 = arith.constant 0 : index
    %6 = vector.load %arg6[%c0_8, %c0_9] : memref<16x16xbf16, #tpu.memory_space<vmem>>, vector<16x16xbf16>
    %7 = vector.shape_cast %6 : vector<16x16xbf16> to vector<1x16x16xbf16>
    %8 = vector.broadcast %7 : vector<1x16x16xbf16> to vector<2x16x16xbf16>
    %c0_10 = arith.constant 0 : index
    %c0_11 = arith.constant 0 : index
    %9 = vector.load %arg10[%c0_10, %c0_11] : memref<32x128xbf16, #tpu.memory_space<vmem>>, vector<32x128xbf16>
    %c0_12 = arith.constant 0 : index
    %c0_13 = arith.constant 0 : index
    %10 = vector.load %arg11[%c0_12, %c0_13] : memref<1x128xf32, #tpu.memory_space<vmem>>, vector<1x128xf32>
    %c0_14 = arith.constant 0 : index
    %c0_15 = arith.constant 0 : index
    %11 = vector.load %arg12[%c0_14, %c0_15] : memref<128x32xbf16, #tpu.memory_space<vmem>>, vector<128x32xbf16>
    %c0_16 = arith.constant 0 : index
    %c0_17 = arith.constant 0 : index
    %12 = vector.load %arg13[%c0_16, %c0_17] : memref<1x32xf32, #tpu.memory_space<vmem>>, vector<1x32xf32>
    %c0_18 = arith.constant 0 : index
    %c0_19 = arith.constant 0 : index
    %13 = vector.load %arg2[%c0_18, %c0_19] : memref<1x32xf32, #tpu.memory_space<vmem>>, vector<1x32xf32>
    %c0_20 = arith.constant 0 : index
    %c0_21 = arith.constant 0 : index
    %14 = vector.load %arg3[%c0_20, %c0_21] : memref<1x32xf32, #tpu.memory_space<vmem>>, vector<1x32xf32>
    %cst = arith.constant dense<0.000000e+00> : vector<2x16xf32>
    %15 = vector.multi_reduction <add>, %0, %cst [2] : vector<2x16x32xf32> to vector<2x16xf32>
    %16 = vector.shape_cast %15 : vector<2x16xf32> to vector<2x16x1xf32>
    %cst_22 = arith.constant 3.200000e+01 : f32
    %17 = vector.broadcast %cst_22 : f32 to vector<2x16x1xf32>
    %18 = arith.divf %16, %17 : vector<2x16x1xf32>
    %19 = vector.broadcast %18 : vector<2x16x1xf32> to vector<2x16x32xf32>
    %20 = arith.subf %0, %19 : vector<2x16x32xf32>
    %21 = arith.mulf %20, %20 : vector<2x16x32xf32>
    %cst_23 = arith.constant dense<0.000000e+00> : vector<2x16xf32>
    %22 = vector.multi_reduction <add>, %21, %cst_23 [2] : vector<2x16x32xf32> to vector<2x16xf32>
    %23 = vector.shape_cast %22 : vector<2x16xf32> to vector<2x16x1xf32>
    %cst_24 = arith.constant 3.200000e+01 : f32
    %24 = vector.broadcast %cst_24 : f32 to vector<2x16x1xf32>
    %25 = arith.divf %23, %24 : vector<2x16x1xf32>
    %26 = vector.broadcast %18 : vector<2x16x1xf32> to vector<2x16x32xf32>
    %27 = arith.subf %0, %26 : vector<2x16x32xf32>
    %cst_25 = arith.constant 9.99999997E-7 : f32
    %28 = vector.broadcast %cst_25 : f32 to vector<2x16x1xf32>
    %29 = arith.addf %25, %28 : vector<2x16x1xf32>
    %30 = math.rsqrt %29 : vector<2x16x1xf32>
    %31 = vector.broadcast %30 : vector<2x16x1xf32> to vector<2x16x32xf32>
    %32 = arith.mulf %27, %31 : vector<2x16x32xf32>
    %33 = vector.shape_cast %13 : vector<1x32xf32> to vector<1x1x32xf32>
    %34 = vector.broadcast %33 : vector<1x1x32xf32> to vector<2x16x32xf32>
    %35 = arith.mulf %32, %34 : vector<2x16x32xf32>
    %36 = vector.shape_cast %14 : vector<1x32xf32> to vector<1x1x32xf32>
    %37 = vector.broadcast %36 : vector<1x1x32xf32> to vector<2x16x32xf32>
    %38 = arith.addf %35, %37 : vector<2x16x32xf32>
    %39 = arith.truncf %38 : vector<2x16x32xf32> to vector<2x16x32xbf16>
    "tpu.trace_start"() <{level = 10 : i32, message = "btn,bnc->btc"}> : () -> ()
    %cst_26 = arith.constant dense<0.000000e+00> : vector<2x16x32xf32>
    %40 = tpu.matmul %5, %39, %cst_26 {dimension_numbers = #tpu.dot_dimension_numbers<[2], [1], [1], [2], [0, 0, 0, 1, 1, 2], [0], [0]>} : vector<2x16x16xbf16>, vector<2x16x32xbf16>, vector<2x16x32xf32> -> vector<2x16x32xf32>
    "tpu.trace_stop"() : () -> ()
    %41 = vector.shape_cast %1 : vector<16x1xf32> to vector<1x16x1xf32>
    %42 = vector.broadcast %41 : vector<1x16x1xf32> to vector<2x16x32xf32>
    %43 = arith.addf %40, %42 : vector<2x16x32xf32>
    %cst_27 = arith.constant 5.000000e-01 : f32
    %44 = vector.broadcast %cst_27 : f32 to vector<2x16x32xf32>
    %45 = arith.mulf %44, %43 : vector<2x16x32xf32>
    %cst_28 = arith.constant 0.707106769 : f32
    %46 = vector.broadcast %cst_28 : f32 to vector<2x16x32xf32>
    %47 = arith.mulf %43, %46 : vector<2x16x32xf32>
    %48 = math.erf %47 : vector<2x16x32xf32>
    %cst_29 = arith.constant 1.000000e+00 : f32
    %49 = vector.broadcast %cst_29 : f32 to vector<2x16x32xf32>
    %50 = arith.addf %49, %48 : vector<2x16x32xf32>
    %51 = arith.mulf %45, %50 : vector<2x16x32xf32>
    %52 = arith.truncf %51 : vector<2x16x32xf32> to vector<2x16x32xbf16>
    "tpu.trace_start"() <{level = 10 : i32, message = "bnt,btc->bnc"}> : () -> ()
    %cst_30 = arith.constant dense<0.000000e+00> : vector<2x16x32xf32>
    %53 = tpu.matmul %8, %52, %cst_30 {dimension_numbers = #tpu.dot_dimension_numbers<[2], [1], [1], [2], [0, 0, 0, 1, 1, 2], [0], [0]>} : vector<2x16x16xbf16>, vector<2x16x32xbf16>, vector<2x16x32xf32> -> vector<2x16x32xf32>
    "tpu.trace_stop"() : () -> ()
    %54 = vector.shape_cast %2 : vector<16x1xf32> to vector<1x16x1xf32>
    %55 = vector.broadcast %54 : vector<1x16x1xf32> to vector<2x16x32xf32>
    %56 = arith.addf %53, %55 : vector<2x16x32xf32>
    %57 = arith.addf %0, %56 : vector<2x16x32xf32>
    %c0_31 = arith.constant 0 : index
    %c0_32 = arith.constant 0 : index
    %58 = vector.load %arg8[%c0_31, %c0_32] : memref<1x32xf32, #tpu.memory_space<vmem>>, vector<1x32xf32>
    %c0_33 = arith.constant 0 : index
    %c0_34 = arith.constant 0 : index
    %59 = vector.load %arg9[%c0_33, %c0_34] : memref<1x32xf32, #tpu.memory_space<vmem>>, vector<1x32xf32>
    %cst_35 = arith.constant dense<0.000000e+00> : vector<2x16xf32>
    %60 = vector.multi_reduction <add>, %57, %cst_35 [2] : vector<2x16x32xf32> to vector<2x16xf32>
    %61 = vector.shape_cast %60 : vector<2x16xf32> to vector<2x16x1xf32>
    %cst_36 = arith.constant 3.200000e+01 : f32
    %62 = vector.broadcast %cst_36 : f32 to vector<2x16x1xf32>
    %63 = arith.divf %61, %62 : vector<2x16x1xf32>
    %64 = vector.broadcast %63 : vector<2x16x1xf32> to vector<2x16x32xf32>
    %65 = arith.subf %57, %64 : vector<2x16x32xf32>
    %66 = arith.mulf %65, %65 : vector<2x16x32xf32>
    %cst_37 = arith.constant dense<0.000000e+00> : vector<2x16xf32>
    %67 = vector.multi_reduction <add>, %66, %cst_37 [2] : vector<2x16x32xf32> to vector<2x16xf32>
    %68 = vector.shape_cast %67 : vector<2x16xf32> to vector<2x16x1xf32>
    %cst_38 = arith.constant 3.200000e+01 : f32
    %69 = vector.broadcast %cst_38 : f32 to vector<2x16x1xf32>
    %70 = arith.divf %68, %69 : vector<2x16x1xf32>
    %71 = vector.broadcast %63 : vector<2x16x1xf32> to vector<2x16x32xf32>
    %72 = arith.subf %57, %71 : vector<2x16x32xf32>
    %cst_39 = arith.constant 9.99999997E-7 : f32
    %73 = vector.broadcast %cst_39 : f32 to vector<2x16x1xf32>
    %74 = arith.addf %70, %73 : vector<2x16x1xf32>
    %75 = math.rsqrt %74 : vector<2x16x1xf32>
    %76 = vector.broadcast %75 : vector<2x16x1xf32> to vector<2x16x32xf32>
    %77 = arith.mulf %72, %76 : vector<2x16x32xf32>
    %78 = vector.shape_cast %58 : vector<1x32xf32> to vector<1x1x32xf32>
    %79 = vector.broadcast %78 : vector<1x1x32xf32> to vector<2x16x32xf32>
    %80 = arith.mulf %77, %79 : vector<2x16x32xf32>
    %81 = vector.shape_cast %59 : vector<1x32xf32> to vector<1x1x32xf32>
    %82 = vector.broadcast %81 : vector<1x1x32xf32> to vector<2x16x32xf32>
    %83 = arith.addf %80, %82 : vector<2x16x32xf32>
    %84 = vector.shape_cast %83 : vector<2x16x32xf32> to vector<32x32xf32>
    %85 = arith.truncf %84 : vector<32x32xf32> to vector<32x32xbf16>
    %cst_40 = arith.constant dense<0.000000e+00> : vector<32x128xf32>
    %86 = tpu.matmul %85, %9, %cst_40 {dimension_numbers = #tpu.dot_dimension_numbers<[1], [0], [0], [1], [0, 0, 1, 1], [], []>} : vector<32x32xbf16>, vector<32x128xbf16>, vector<32x128xf32> -> vector<32x128xf32>
    %87 = vector.broadcast %10 : vector<1x128xf32> to vector<32x128xf32>
    %88 = arith.addf %86, %87 : vector<32x128xf32>
    %cst_41 = arith.constant 5.000000e-01 : f32
    %89 = vector.broadcast %cst_41 : f32 to vector<32x128xf32>
    %90 = arith.mulf %89, %88 : vector<32x128xf32>
    %cst_42 = arith.constant 0.707106769 : f32
    %91 = vector.broadcast %cst_42 : f32 to vector<32x128xf32>
    %92 = arith.mulf %88, %91 : vector<32x128xf32>
    %93 = math.erf %92 : vector<32x128xf32>
    %cst_43 = arith.constant 1.000000e+00 : f32
    %94 = vector.broadcast %cst_43 : f32 to vector<32x128xf32>
    %95 = arith.addf %94, %93 : vector<32x128xf32>
    %96 = arith.mulf %90, %95 : vector<32x128xf32>
    %97 = arith.truncf %96 : vector<32x128xf32> to vector<32x128xbf16>
    %cst_44 = arith.constant dense<0.000000e+00> : vector<32x32xf32>
    %98 = tpu.matmul %97, %11, %cst_44 {dimension_numbers = #tpu.dot_dimension_numbers<[1], [0], [0], [1], [0, 0, 1, 1], [], []>} : vector<32x128xbf16>, vector<128x32xbf16>, vector<32x32xf32> -> vector<32x32xf32>
    %99 = vector.broadcast %12 : vector<1x32xf32> to vector<32x32xf32>
    %100 = arith.addf %98, %99 : vector<32x32xf32>
    %101 = vector.shape_cast %100 : vector<32x32xf32> to vector<2x16x32xf32>
    %102 = arith.addf %57, %101 : vector<2x16x32xf32>
    %c0_45 = arith.constant 0 : index
    %c0_46 = arith.constant 0 : index
    %103 = vector.load %arg14[%c0_45, %c0_46] : memref<1x32xf32, #tpu.memory_space<vmem>>, vector<1x32xf32>
    %c0_47 = arith.constant 0 : index
    %c0_48 = arith.constant 0 : index
    %104 = vector.load %arg15[%c0_47, %c0_48] : memref<1x32xf32, #tpu.memory_space<vmem>>, vector<1x32xf32>
    %cst_49 = arith.constant dense<0.000000e+00> : vector<2x16xf32>
    %105 = vector.multi_reduction <add>, %102, %cst_49 [2] : vector<2x16x32xf32> to vector<2x16xf32>
    %106 = vector.shape_cast %105 : vector<2x16xf32> to vector<2x16x1xf32>
    %cst_50 = arith.constant 3.200000e+01 : f32
    %107 = vector.broadcast %cst_50 : f32 to vector<2x16x1xf32>
    %108 = arith.divf %106, %107 : vector<2x16x1xf32>
    %109 = vector.broadcast %108 : vector<2x16x1xf32> to vector<2x16x32xf32>
    %110 = arith.subf %102, %109 : vector<2x16x32xf32>
    %111 = arith.mulf %110, %110 : vector<2x16x32xf32>
    %cst_51 = arith.constant dense<0.000000e+00> : vector<2x16xf32>
    %112 = vector.multi_reduction <add>, %111, %cst_51 [2] : vector<2x16x32xf32> to vector<2x16xf32>
    %113 = vector.shape_cast %112 : vector<2x16xf32> to vector<2x16x1xf32>
    %cst_52 = arith.constant 3.200000e+01 : f32
    %114 = vector.broadcast %cst_52 : f32 to vector<2x16x1xf32>
    %115 = arith.divf %113, %114 : vector<2x16x1xf32>
    %116 = vector.broadcast %108 : vector<2x16x1xf32> to vector<2x16x32xf32>
    %117 = arith.subf %102, %116 : vector<2x16x32xf32>
    %cst_53 = arith.constant 9.99999997E-7 : f32
    %118 = vector.broadcast %cst_53 : f32 to vector<2x16x1xf32>
    %119 = arith.addf %115, %118 : vector<2x16x1xf32>
    %120 = math.rsqrt %119 : vector<2x16x1xf32>
    %121 = vector.broadcast %120 : vector<2x16x1xf32> to vector<2x16x32xf32>
    %122 = arith.mulf %117, %121 : vector<2x16x32xf32>
    %123 = vector.shape_cast %103 : vector<1x32xf32> to vector<1x1x32xf32>
    %124 = vector.broadcast %123 : vector<1x1x32xf32> to vector<2x16x32xf32>
    %125 = arith.mulf %122, %124 : vector<2x16x32xf32>
    %126 = vector.shape_cast %104 : vector<1x32xf32> to vector<1x1x32xf32>
    %127 = vector.broadcast %126 : vector<1x1x32xf32> to vector<2x16x32xf32>
    %128 = arith.addf %125, %127 : vector<2x16x32xf32>
    %cst_54 = arith.constant dense<0.000000e+00> : vector<2x32xf32>
    %129 = vector.multi_reduction <add>, %128, %cst_54 [1] : vector<2x16x32xf32> to vector<2x32xf32>
    %cst_55 = arith.constant 1.600000e+01 : f32
    %130 = vector.broadcast %cst_55 : f32 to vector<2x32xf32>
    %131 = arith.divf %129, %130 : vector<2x32xf32>
    %132 = arith.truncf %131 : vector<2x32xf32> to vector<2x32xbf16>
    %c0_56 = arith.constant 0 : index
    %c0_57 = arith.constant 0 : index
    %133 = vector.load %arg16[%c0_56, %c0_57] : memref<32x128xbf16, #tpu.memory_space<vmem>>, vector<32x128xbf16>
    %cst_58 = arith.constant dense<0.000000e+00> : vector<2x128xf32>
    %134 = tpu.matmul %132, %133, %cst_58 {dimension_numbers = #tpu.dot_dimension_numbers<[1], [0], [0], [1], [0, 0, 1, 1], [], []>} : vector<2x32xbf16>, vector<32x128xbf16>, vector<2x128xf32> -> vector<2x128xf32>
    %c0_59 = arith.constant 0 : index
    %c0_60 = arith.constant 0 : index
    %135 = vector.load %arg17[%c0_59, %c0_60] : memref<1x128xf32, #tpu.memory_space<vmem>>, vector<1x128xf32>
    %136 = vector.broadcast %135 : vector<1x128xf32> to vector<2x128xf32>
    %137 = arith.addf %134, %136 : vector<2x128xf32>
    %c0_61 = arith.constant 0 : index
    %c0_62 = arith.constant 0 : index
    %138 = vector.load %arg18[%c0_61, %c0_62] : memref<2x128xf32, #tpu.memory_space<vmem>>, vector<2x128xf32>
    tpu.vector_store %arg18[%c0_61, %c0_62], %137 {strides = array<i32>} : memref<2x128xf32, #tpu.memory_space<vmem>>, vector<2x128xf32>,
    return
  }
  func.func @transform_0(%arg0: i32) -> (i32, i32, i32) {
    %c0_i32 = arith.constant 0 : i32
    %c0_i32_0 = arith.constant 0 : i32
    %c0_i32_1 = arith.constant 0 : i32
    return %arg0, %c0_i32, %c0_i32_0 : i32, i32, i32
  }
  func.func @transform_1(%arg0: i32) -> (i32, i32) {
    %c0_i32 = arith.constant 0 : i32
    %c0_i32_0 = arith.constant 0 : i32
    %c0_i32_1 = arith.constant 0 : i32
    return %c0_i32, %c0_i32_0 : i32, i32
  }
  func.func @transform_2(%arg0: i32) -> (i32, i32) {
    %c0_i32 = arith.constant 0 : i32
    %c0_i32_0 = arith.constant 0 : i32
    %c0_i32_1 = arith.constant 0 : i32
    return %c0_i32, %c0_i32_0 : i32, i32
  }
  func.func @transform_3(%arg0: i32) -> (i32, i32) {
    %c0_i32 = arith.constant 0 : i32
    %c0_i32_0 = arith.constant 0 : i32
    %c0_i32_1 = arith.constant 0 : i32
    return %c0_i32, %c0_i32_0 : i32, i32
  }
  func.func @transform_4(%arg0: i32) -> (i32, i32) {
    %c0_i32 = arith.constant 0 : i32
    %c0_i32_0 = arith.constant 0 : i32
    %c0_i32_1 = arith.constant 0 : i32
    return %c0_i32, %c0_i32_0 : i32, i32
  }
  func.func @transform_5(%arg0: i32) -> (i32, i32) {
    %c0_i32 = arith.constant 0 : i32
    %c0_i32_0 = arith.constant 0 : i32
    %c0_i32_1 = arith.constant 0 : i32
    return %c0_i32, %c0_i32_0 : i32, i32
  }
  func.func @transform_6(%arg0: i32) -> (i32, i32) {
    %c0_i32 = arith.constant 0 : i32
    %c0_i32_0 = arith.constant 0 : i32
    %c0_i32_1 = arith.constant 0 : i32
    return %c0_i32, %c0_i32_0 : i32, i32
  }
  func.func @transform_7(%arg0: i32) -> (i32, i32) {
    %c0_i32 = arith.constant 0 : i32
    %c0_i32_0 = arith.constant 0 : i32
    %c0_i32_1 = arith.constant 0 : i32
    return %c0_i32, %c0_i32_0 : i32, i32
  }
  func.func @transform_8(%arg0: i32) -> (i32, i32) {
    %c0_i32 = arith.constant 0 : i32
    %c0_i32_0 = arith.constant 0 : i32
    %c0_i32_1 = arith.constant 0 : i32
    return %c0_i32, %c0_i32_0 : i32, i32
  }
  func.func @transform_9(%arg0: i32) -> (i32, i32) {
    %c0_i32 = arith.constant 0 : i32
    %c0_i32_0 = arith.constant 0 : i32
    %c0_i32_1 = arith.constant 0 : i32
    return %c0_i32, %c0_i32_0 : i32, i32
  }
  func.func @transform_10(%arg0: i32) -> (i32, i32) {
    %c0_i32 = arith.constant 0 : i32
    %c0_i32_0 = arith.constant 0 : i32
    %c0_i32_1 = arith.constant 0 : i32
    return %c0_i32, %c0_i32_0 : i32, i32
  }
  func.func @transform_11(%arg0: i32) -> (i32, i32) {
    %c0_i32 = arith.constant 0 : i32
    %c0_i32_0 = arith.constant 0 : i32
    %c0_i32_1 = arith.constant 0 : i32
    return %c0_i32, %c0_i32_0 : i32, i32
  }
  func.func @transform_12(%arg0: i32) -> (i32, i32) {
    %c0_i32 = arith.constant 0 : i32
    %c0_i32_0 = arith.constant 0 : i32
    %c0_i32_1 = arith.constant 0 : i32
    return %c0_i32, %c0_i32_0 : i32, i32
  }
  func.func @transform_13(%arg0: i32) -> (i32, i32) {
    %c0_i32 = arith.constant 0 : i32
    %c0_i32_0 = arith.constant 0 : i32
    %c0_i32_1 = arith.constant 0 : i32
    return %c0_i32, %c0_i32_0 : i32, i32
  }
  func.func @transform_14(%arg0: i32) -> (i32, i32) {
    %c0_i32 = arith.constant 0 : i32
    %c0_i32_0 = arith.constant 0 : i32
    %c0_i32_1 = arith.constant 0 : i32
    return %c0_i32, %c0_i32_0 : i32, i32
  }
  func.func @transform_15(%arg0: i32) -> (i32, i32) {
    %c0_i32 = arith.constant 0 : i32
    %c0_i32_0 = arith.constant 0 : i32
    %c0_i32_1 = arith.constant 0 : i32
    return %c0_i32, %c0_i32_0 : i32, i32
  }
  func.func @transform_16(%arg0: i32) -> (i32, i32) {
    %c0_i32 = arith.constant 0 : i32
    %c0_i32_0 = arith.constant 0 : i32
    %c0_i32_1 = arith.constant 0 : i32
    return %c0_i32, %c0_i32_0 : i32, i32
  }
  func.func @transform_17(%arg0: i32) -> (i32, i32) {
    %c0_i32 = arith.constant 0 : i32
    %c0_i32_0 = arith.constant 0 : i32
    return %arg0, %c0_i32 : i32, i32
  }
}

module attributes {stable_mosaic.version = 11 : i64} {
  func.func @_stem_kernel(%arg0: i32, %arg1: memref<2x16x48xbf16, #tpu.memory_space<vmem>>, %arg2: memref<48x32xbf16, #tpu.memory_space<vmem>>, %arg3: memref<1x32xf32, #tpu.memory_space<vmem>>, %arg4: memref<2x16x32xf32, #tpu.memory_space<vmem>>) attributes {dimension_semantics = [#tpu.dimension_semantics<parallel>], iteration_bounds = array<i64: 1>, scalar_prefetch = 0 : i64, scratch_operands = 0 : i64, tpu.core_type = #tpu.core_type<tc>, window_params = [{transform_indices = @transform_0, window_bounds = array<i64: 2, 16, 48>}, {pipeline_mode = #tpu.pipeline_mode<synchronous>, transform_indices = @transform_1, window_bounds = array<i64: 48, 32>}, {pipeline_mode = #tpu.pipeline_mode<synchronous>, transform_indices = @transform_2, window_bounds = array<i64: 1, 32>}, {transform_indices = @transform_3, window_bounds = array<i64: 2, 16, 32>}]} {
    %c0 = arith.constant 0 : index
    %c0_0 = arith.constant 0 : index
    %c0_1 = arith.constant 0 : index
    %0 = vector.load %arg1[%c0, %c0_0, %c0_1] : memref<2x16x48xbf16, #tpu.memory_space<vmem>>, vector<2x16x48xbf16>
    %1 = vector.shape_cast %0 : vector<2x16x48xbf16> to vector<32x48xbf16>
    %c0_2 = arith.constant 0 : index
    %c0_3 = arith.constant 0 : index
    %2 = vector.load %arg2[%c0_2, %c0_3] : memref<48x32xbf16, #tpu.memory_space<vmem>>, vector<48x32xbf16>
    %cst = arith.constant dense<0.000000e+00> : vector<32x32xf32>
    %3 = tpu.matmul %1, %2, %cst {dimension_numbers = #tpu.dot_dimension_numbers<[1], [0], [0], [1], [0, 0, 1, 1], [], []>} : vector<32x48xbf16>, vector<48x32xbf16>, vector<32x32xf32> -> vector<32x32xf32>
    %c0_4 = arith.constant 0 : index
    %c0_5 = arith.constant 0 : index
    %4 = vector.load %arg3[%c0_4, %c0_5] : memref<1x32xf32, #tpu.memory_space<vmem>>, vector<1x32xf32>
    %5 = vector.broadcast %4 : vector<1x32xf32> to vector<32x32xf32>
    %6 = arith.addf %3, %5 : vector<32x32xf32>
    %7 = vector.shape_cast %6 : vector<32x32xf32> to vector<2x16x32xf32>
    %c0_6 = arith.constant 0 : index
    %c0_7 = arith.constant 0 : index
    %c0_8 = arith.constant 0 : index
    %8 = vector.load %arg4[%c0_6, %c0_7, %c0_8] : memref<2x16x32xf32, #tpu.memory_space<vmem>>, vector<2x16x32xf32>
    tpu.vector_store %arg4[%c0_6, %c0_7, %c0_8], %7 {strides = array<i32>} : memref<2x16x32xf32, #tpu.memory_space<vmem>>, vector<2x16x32xf32>,
    return
  }
  func.func @transform_0(%arg0: i32) -> (i32, i32, i32) {
    %c0_i32 = arith.constant 0 : i32
    %c0_i32_0 = arith.constant 0 : i32
    %c0_i32_1 = arith.constant 0 : i32
    return %arg0, %c0_i32, %c0_i32_0 : i32, i32, i32
  }
  func.func @transform_1(%arg0: i32) -> (i32, i32) {
    %c0_i32 = arith.constant 0 : i32
    %c0_i32_0 = arith.constant 0 : i32
    %c0_i32_1 = arith.constant 0 : i32
    return %c0_i32, %c0_i32_0 : i32, i32
  }
  func.func @transform_2(%arg0: i32) -> (i32, i32) {
    %c0_i32 = arith.constant 0 : i32
    %c0_i32_0 = arith.constant 0 : i32
    %c0_i32_1 = arith.constant 0 : i32
    return %c0_i32, %c0_i32_0 : i32, i32
  }
  func.func @transform_3(%arg0: i32) -> (i32, i32, i32) {
    %c0_i32 = arith.constant 0 : i32
    %c0_i32_0 = arith.constant 0 : i32
    %c0_i32_1 = arith.constant 0 : i32
    return %arg0, %c0_i32, %c0_i32_0 : i32, i32, i32
  }
}

module attributes {stable_mosaic.version = 11 : i64} {
  func.func @_mixer_block_head_kernel(%arg0: i32, %arg1: memref<2x16x32xf32, #tpu.memory_space<vmem>>, %arg2: memref<1x32xf32, #tpu.memory_space<vmem>>, %arg3: memref<1x32xf32, #tpu.memory_space<vmem>>, %arg4: memref<16x16xbf16, #tpu.memory_space<vmem>>, %arg5: memref<16x1xf32, #tpu.memory_space<vmem>>, %arg6: memref<16x16xbf16, #tpu.memory_space<vmem>>, %arg7: memref<16x1xf32, #tpu.memory_space<vmem>>, %arg8: memref<1x32xf32, #tpu.memory_space<vmem>>, %arg9: memref<1x32xf32, #tpu.memory_space<vmem>>, %arg10: memref<32x128xbf16, #tpu.memory_space<vmem>>, %arg11: memref<1x128xf32, #tpu.memory_space<vmem>>, %arg12: memref<128x32xbf16, #tpu.memory_space<vmem>>, %arg13: memref<1x32xf32, #tpu.memory_space<vmem>>, %arg14: memref<1x32xf32, #tpu.memory_space<vmem>>, %arg15: memref<1x32xf32, #tpu.memory_space<vmem>>, %arg16: memref<32x128xbf16, #tpu.memory_space<vmem>>, %arg17: memref<1x128xf32, #tpu.memory_space<vmem>>, %arg18: memref<2x128xf32, #tpu.memory_space<vmem>>) attributes {dimension_semantics = [#tpu.dimension_semantics<parallel>], iteration_bounds = array<i64: 1>, scalar_prefetch = 0 : i64, scratch_operands = 0 : i64, tpu.core_type = #tpu.core_type<tc>, window_params = [{transform_indices = @transform_0, window_bounds = array<i64: 2, 16, 32>}, {pipeline_mode = #tpu.pipeline_mode<synchronous>, transform_indices = @transform_1, window_bounds = array<i64: 1, 32>}, {pipeline_mode = #tpu.pipeline_mode<synchronous>, transform_indices = @transform_2, window_bounds = array<i64: 1, 32>}, {pipeline_mode = #tpu.pipeline_mode<synchronous>, transform_indices = @transform_3, window_bounds = array<i64: 16, 16>}, {pipeline_mode = #tpu.pipeline_mode<synchronous>, transform_indices = @transform_4, window_bounds = array<i64: 16, 1>}, {pipeline_mode = #tpu.pipeline_mode<synchronous>, transform_indices = @transform_5, window_bounds = array<i64: 16, 16>}, {pipeline_mode = #tpu.pipeline_mode<synchronous>, transform_indices = @transform_6, window_bounds = array<i64: 16, 1>}, {pipeline_mode = #tpu.pipeline_mode<synchronous>, transform_indices = @transform_7, window_bounds = array<i64: 1, 32>}, {pipeline_mode = #tpu.pipeline_mode<synchronous>, transform_indices = @transform_8, window_bounds = array<i64: 1, 32>}, {pipeline_mode = #tpu.pipeline_mode<synchronous>, transform_indices = @transform_9, window_bounds = array<i64: 32, 128>}, {pipeline_mode = #tpu.pipeline_mode<synchronous>, transform_indices = @transform_10, window_bounds = array<i64: 1, 128>}, {pipeline_mode = #tpu.pipeline_mode<synchronous>, transform_indices = @transform_11, window_bounds = array<i64: 128, 32>}, {pipeline_mode = #tpu.pipeline_mode<synchronous>, transform_indices = @transform_12, window_bounds = array<i64: 1, 32>}, {pipeline_mode = #tpu.pipeline_mode<synchronous>, transform_indices = @transform_13, window_bounds = array<i64: 1, 32>}, {pipeline_mode = #tpu.pipeline_mode<synchronous>, transform_indices = @transform_14, window_bounds = array<i64: 1, 32>}, {pipeline_mode = #tpu.pipeline_mode<synchronous>, transform_indices = @transform_15, window_bounds = array<i64: 32, 128>}, {pipeline_mode = #tpu.pipeline_mode<synchronous>, transform_indices = @transform_16, window_bounds = array<i64: 1, 128>}, {transform_indices = @transform_17, window_bounds = array<i64: 2, 128>}]} {
    %c0 = arith.constant 0 : index
    %c0_0 = arith.constant 0 : index
    %c0_1 = arith.constant 0 : index
    %0 = vector.load %arg1[%c0, %c0_0, %c0_1] : memref<2x16x32xf32, #tpu.memory_space<vmem>>, vector<2x16x32xf32>
    %c0_2 = arith.constant 0 : index
    %c0_3 = arith.constant 0 : index
    %1 = vector.load %arg5[%c0_2, %c0_3] : memref<16x1xf32, #tpu.memory_space<vmem>>, vector<16x1xf32>
    %c0_4 = arith.constant 0 : index
    %c0_5 = arith.constant 0 : index
    %2 = vector.load %arg7[%c0_4, %c0_5] : memref<16x1xf32, #tpu.memory_space<vmem>>, vector<16x1xf32>
    %c0_6 = arith.constant 0 : index
    %c0_7 = arith.constant 0 : index
    %3 = vector.load %arg4[%c0_6, %c0_7] : memref<16x16xbf16, #tpu.memory_space<vmem>>, vector<16x16xbf16>
    %4 = vector.shape_cast %3 : vector<16x16xbf16> to vector<1x16x16xbf16>
    %5 = vector.broadcast %4 : vector<1x16x16xbf16> to vector<2x16x16xbf16>
    %c0_8 = arith.constant 0 : index
    %c0_9 = arith.constant 0 : index
    %6 = vector.load %arg6[%c0_8, %c0_9] : memref<16x16xbf16, #tpu.memory_space<vmem>>, vector<16x16xbf16>
    %7 = vector.shape_cast %6 : vector<16x16xbf16> to vector<1x16x16xbf16>
    %8 = vector.broadcast %7 : vector<1x16x16xbf16> to vector<2x16x16xbf16>
    %c0_10 = arith.constant 0 : index
    %c0_11 = arith.constant 0 : index
    %9 = vector.load %arg10[%c0_10, %c0_11] : memref<32x128xbf16, #tpu.memory_space<vmem>>, vector<32x128xbf16>
    %c0_12 = arith.constant 0 : index
    %c0_13 = arith.constant 0 : index
    %10 = vector.load %arg11[%c0_12, %c0_13] : memref<1x128xf32, #tpu.memory_space<vmem>>, vector<1x128xf32>
    %c0_14 = arith.constant 0 : index
    %c0_15 = arith.constant 0 : index
    %11 = vector.load %arg12[%c0_14, %c0_15] : memref<128x32xbf16, #tpu.memory_space<vmem>>, vector<128x32xbf16>
    %c0_16 = arith.constant 0 : index
    %c0_17 = arith.constant 0 : index
    %12 = vector.load %arg13[%c0_16, %c0_17] : memref<1x32xf32, #tpu.memory_space<vmem>>, vector<1x32xf32>
    %c0_18 = arith.constant 0 : index
    %c0_19 = arith.constant 0 : index
    %13 = vector.load %arg2[%c0_18, %c0_19] : memref<1x32xf32, #tpu.memory_space<vmem>>, vector<1x32xf32>
    %c0_20 = arith.constant 0 : index
    %c0_21 = arith.constant 0 : index
    %14 = vector.load %arg3[%c0_20, %c0_21] : memref<1x32xf32, #tpu.memory_space<vmem>>, vector<1x32xf32>
    %cst = arith.constant dense<0.000000e+00> : vector<2x16xf32>
    %15 = vector.multi_reduction <add>, %0, %cst [2] : vector<2x16x32xf32> to vector<2x16xf32>
    %16 = vector.shape_cast %15 : vector<2x16xf32> to vector<2x16x1xf32>
    %cst_22 = arith.constant 3.200000e+01 : f32
    %17 = vector.broadcast %cst_22 : f32 to vector<2x16x1xf32>
    %18 = arith.divf %16, %17 : vector<2x16x1xf32>
    %19 = vector.broadcast %18 : vector<2x16x1xf32> to vector<2x16x32xf32>
    %20 = arith.subf %0, %19 : vector<2x16x32xf32>
    %21 = arith.mulf %20, %20 : vector<2x16x32xf32>
    %cst_23 = arith.constant dense<0.000000e+00> : vector<2x16xf32>
    %22 = vector.multi_reduction <add>, %21, %cst_23 [2] : vector<2x16x32xf32> to vector<2x16xf32>
    %23 = vector.shape_cast %22 : vector<2x16xf32> to vector<2x16x1xf32>
    %cst_24 = arith.constant 3.200000e+01 : f32
    %24 = vector.broadcast %cst_24 : f32 to vector<2x16x1xf32>
    %25 = arith.divf %23, %24 : vector<2x16x1xf32>
    %26 = vector.broadcast %18 : vector<2x16x1xf32> to vector<2x16x32xf32>
    %27 = arith.subf %0, %26 : vector<2x16x32xf32>
    %cst_25 = arith.constant 9.99999997E-7 : f32
    %28 = vector.broadcast %cst_25 : f32 to vector<2x16x1xf32>
    %29 = arith.addf %25, %28 : vector<2x16x1xf32>
    %30 = math.rsqrt %29 : vector<2x16x1xf32>
    %31 = vector.broadcast %30 : vector<2x16x1xf32> to vector<2x16x32xf32>
    %32 = arith.mulf %27, %31 : vector<2x16x32xf32>
    %33 = vector.shape_cast %13 : vector<1x32xf32> to vector<1x1x32xf32>
    %34 = vector.broadcast %33 : vector<1x1x32xf32> to vector<2x16x32xf32>
    %35 = arith.mulf %32, %34 : vector<2x16x32xf32>
    %36 = vector.shape_cast %14 : vector<1x32xf32> to vector<1x1x32xf32>
    %37 = vector.broadcast %36 : vector<1x1x32xf32> to vector<2x16x32xf32>
    %38 = arith.addf %35, %37 : vector<2x16x32xf32>
    %39 = arith.truncf %38 : vector<2x16x32xf32> to vector<2x16x32xbf16>
    "tpu.trace_start"() <{level = 10 : i32, message = "btn,bnc->btc"}> : () -> ()
    %cst_26 = arith.constant dense<0.000000e+00> : vector<2x16x32xf32>
    %40 = tpu.matmul %5, %39, %cst_26 {dimension_numbers = #tpu.dot_dimension_numbers<[2], [1], [1], [2], [0, 0, 0, 1, 1, 2], [0], [0]>} : vector<2x16x16xbf16>, vector<2x16x32xbf16>, vector<2x16x32xf32> -> vector<2x16x32xf32>
    "tpu.trace_stop"() : () -> ()
    %41 = vector.shape_cast %1 : vector<16x1xf32> to vector<1x16x1xf32>
    %42 = vector.broadcast %41 : vector<1x16x1xf32> to vector<2x16x32xf32>
    %43 = arith.addf %40, %42 : vector<2x16x32xf32>
    %cst_27 = arith.constant 5.000000e-01 : f32
    %44 = vector.broadcast %cst_27 : f32 to vector<2x16x32xf32>
    %45 = arith.mulf %44, %43 : vector<2x16x32xf32>
    %cst_28 = arith.constant 0.707106769 : f32
    %46 = vector.broadcast %cst_28 : f32 to vector<2x16x32xf32>
    %47 = arith.mulf %43, %46 : vector<2x16x32xf32>
    %48 = math.erf %47 : vector<2x16x32xf32>
    %cst_29 = arith.constant 1.000000e+00 : f32
    %49 = vector.broadcast %cst_29 : f32 to vector<2x16x32xf32>
    %50 = arith.addf %49, %48 : vector<2x16x32xf32>
    %51 = arith.mulf %45, %50 : vector<2x16x32xf32>
    %52 = arith.truncf %51 : vector<2x16x32xf32> to vector<2x16x32xbf16>
    "tpu.trace_start"() <{level = 10 : i32, message = "bnt,btc->bnc"}> : () -> ()
    %cst_30 = arith.constant dense<0.000000e+00> : vector<2x16x32xf32>
    %53 = tpu.matmul %8, %52, %cst_30 {dimension_numbers = #tpu.dot_dimension_numbers<[2], [1], [1], [2], [0, 0, 0, 1, 1, 2], [0], [0]>} : vector<2x16x16xbf16>, vector<2x16x32xbf16>, vector<2x16x32xf32> -> vector<2x16x32xf32>
    "tpu.trace_stop"() : () -> ()
    %54 = vector.shape_cast %2 : vector<16x1xf32> to vector<1x16x1xf32>
    %55 = vector.broadcast %54 : vector<1x16x1xf32> to vector<2x16x32xf32>
    %56 = arith.addf %53, %55 : vector<2x16x32xf32>
    %57 = arith.addf %0, %56 : vector<2x16x32xf32>
    %c0_31 = arith.constant 0 : index
    %c0_32 = arith.constant 0 : index
    %58 = vector.load %arg8[%c0_31, %c0_32] : memref<1x32xf32, #tpu.memory_space<vmem>>, vector<1x32xf32>
    %c0_33 = arith.constant 0 : index
    %c0_34 = arith.constant 0 : index
    %59 = vector.load %arg9[%c0_33, %c0_34] : memref<1x32xf32, #tpu.memory_space<vmem>>, vector<1x32xf32>
    %cst_35 = arith.constant dense<0.000000e+00> : vector<2x16xf32>
    %60 = vector.multi_reduction <add>, %57, %cst_35 [2] : vector<2x16x32xf32> to vector<2x16xf32>
    %61 = vector.shape_cast %60 : vector<2x16xf32> to vector<2x16x1xf32>
    %cst_36 = arith.constant 3.200000e+01 : f32
    %62 = vector.broadcast %cst_36 : f32 to vector<2x16x1xf32>
    %63 = arith.divf %61, %62 : vector<2x16x1xf32>
    %64 = vector.broadcast %63 : vector<2x16x1xf32> to vector<2x16x32xf32>
    %65 = arith.subf %57, %64 : vector<2x16x32xf32>
    %66 = arith.mulf %65, %65 : vector<2x16x32xf32>
    %cst_37 = arith.constant dense<0.000000e+00> : vector<2x16xf32>
    %67 = vector.multi_reduction <add>, %66, %cst_37 [2] : vector<2x16x32xf32> to vector<2x16xf32>
    %68 = vector.shape_cast %67 : vector<2x16xf32> to vector<2x16x1xf32>
    %cst_38 = arith.constant 3.200000e+01 : f32
    %69 = vector.broadcast %cst_38 : f32 to vector<2x16x1xf32>
    %70 = arith.divf %68, %69 : vector<2x16x1xf32>
    %71 = vector.broadcast %63 : vector<2x16x1xf32> to vector<2x16x32xf32>
    %72 = arith.subf %57, %71 : vector<2x16x32xf32>
    %cst_39 = arith.constant 9.99999997E-7 : f32
    %73 = vector.broadcast %cst_39 : f32 to vector<2x16x1xf32>
    %74 = arith.addf %70, %73 : vector<2x16x1xf32>
    %75 = math.rsqrt %74 : vector<2x16x1xf32>
    %76 = vector.broadcast %75 : vector<2x16x1xf32> to vector<2x16x32xf32>
    %77 = arith.mulf %72, %76 : vector<2x16x32xf32>
    %78 = vector.shape_cast %58 : vector<1x32xf32> to vector<1x1x32xf32>
    %79 = vector.broadcast %78 : vector<1x1x32xf32> to vector<2x16x32xf32>
    %80 = arith.mulf %77, %79 : vector<2x16x32xf32>
    %81 = vector.shape_cast %59 : vector<1x32xf32> to vector<1x1x32xf32>
    %82 = vector.broadcast %81 : vector<1x1x32xf32> to vector<2x16x32xf32>
    %83 = arith.addf %80, %82 : vector<2x16x32xf32>
    %84 = vector.shape_cast %83 : vector<2x16x32xf32> to vector<32x32xf32>
    %85 = arith.truncf %84 : vector<32x32xf32> to vector<32x32xbf16>
    %cst_40 = arith.constant dense<0.000000e+00> : vector<32x128xf32>
    %86 = tpu.matmul %85, %9, %cst_40 {dimension_numbers = #tpu.dot_dimension_numbers<[1], [0], [0], [1], [0, 0, 1, 1], [], []>} : vector<32x32xbf16>, vector<32x128xbf16>, vector<32x128xf32> -> vector<32x128xf32>
    %87 = vector.broadcast %10 : vector<1x128xf32> to vector<32x128xf32>
    %88 = arith.addf %86, %87 : vector<32x128xf32>
    %cst_41 = arith.constant 5.000000e-01 : f32
    %89 = vector.broadcast %cst_41 : f32 to vector<32x128xf32>
    %90 = arith.mulf %89, %88 : vector<32x128xf32>
    %cst_42 = arith.constant 0.707106769 : f32
    %91 = vector.broadcast %cst_42 : f32 to vector<32x128xf32>
    %92 = arith.mulf %88, %91 : vector<32x128xf32>
    %93 = math.erf %92 : vector<32x128xf32>
    %cst_43 = arith.constant 1.000000e+00 : f32
    %94 = vector.broadcast %cst_43 : f32 to vector<32x128xf32>
    %95 = arith.addf %94, %93 : vector<32x128xf32>
    %96 = arith.mulf %90, %95 : vector<32x128xf32>
    %97 = arith.truncf %96 : vector<32x128xf32> to vector<32x128xbf16>
    %cst_44 = arith.constant dense<0.000000e+00> : vector<32x32xf32>
    %98 = tpu.matmul %97, %11, %cst_44 {dimension_numbers = #tpu.dot_dimension_numbers<[1], [0], [0], [1], [0, 0, 1, 1], [], []>} : vector<32x128xbf16>, vector<128x32xbf16>, vector<32x32xf32> -> vector<32x32xf32>
    %99 = vector.broadcast %12 : vector<1x32xf32> to vector<32x32xf32>
    %100 = arith.addf %98, %99 : vector<32x32xf32>
    %101 = vector.shape_cast %100 : vector<32x32xf32> to vector<2x16x32xf32>
    %102 = arith.addf %57, %101 : vector<2x16x32xf32>
    %c0_45 = arith.constant 0 : index
    %c0_46 = arith.constant 0 : index
    %103 = vector.load %arg14[%c0_45, %c0_46] : memref<1x32xf32, #tpu.memory_space<vmem>>, vector<1x32xf32>
    %c0_47 = arith.constant 0 : index
    %c0_48 = arith.constant 0 : index
    %104 = vector.load %arg15[%c0_47, %c0_48] : memref<1x32xf32, #tpu.memory_space<vmem>>, vector<1x32xf32>
    %cst_49 = arith.constant dense<0.000000e+00> : vector<2x16xf32>
    %105 = vector.multi_reduction <add>, %102, %cst_49 [2] : vector<2x16x32xf32> to vector<2x16xf32>
    %106 = vector.shape_cast %105 : vector<2x16xf32> to vector<2x16x1xf32>
    %cst_50 = arith.constant 3.200000e+01 : f32
    %107 = vector.broadcast %cst_50 : f32 to vector<2x16x1xf32>
    %108 = arith.divf %106, %107 : vector<2x16x1xf32>
    %109 = vector.broadcast %108 : vector<2x16x1xf32> to vector<2x16x32xf32>
    %110 = arith.subf %102, %109 : vector<2x16x32xf32>
    %111 = arith.mulf %110, %110 : vector<2x16x32xf32>
    %cst_51 = arith.constant dense<0.000000e+00> : vector<2x16xf32>
    %112 = vector.multi_reduction <add>, %111, %cst_51 [2] : vector<2x16x32xf32> to vector<2x16xf32>
    %113 = vector.shape_cast %112 : vector<2x16xf32> to vector<2x16x1xf32>
    %cst_52 = arith.constant 3.200000e+01 : f32
    %114 = vector.broadcast %cst_52 : f32 to vector<2x16x1xf32>
    %115 = arith.divf %113, %114 : vector<2x16x1xf32>
    %116 = vector.broadcast %108 : vector<2x16x1xf32> to vector<2x16x32xf32>
    %117 = arith.subf %102, %116 : vector<2x16x32xf32>
    %cst_53 = arith.constant 9.99999997E-7 : f32
    %118 = vector.broadcast %cst_53 : f32 to vector<2x16x1xf32>
    %119 = arith.addf %115, %118 : vector<2x16x1xf32>
    %120 = math.rsqrt %119 : vector<2x16x1xf32>
    %121 = vector.broadcast %120 : vector<2x16x1xf32> to vector<2x16x32xf32>
    %122 = arith.mulf %117, %121 : vector<2x16x32xf32>
    %123 = vector.shape_cast %103 : vector<1x32xf32> to vector<1x1x32xf32>
    %124 = vector.broadcast %123 : vector<1x1x32xf32> to vector<2x16x32xf32>
    %125 = arith.mulf %122, %124 : vector<2x16x32xf32>
    %126 = vector.shape_cast %104 : vector<1x32xf32> to vector<1x1x32xf32>
    %127 = vector.broadcast %126 : vector<1x1x32xf32> to vector<2x16x32xf32>
    %128 = arith.addf %125, %127 : vector<2x16x32xf32>
    %cst_54 = arith.constant dense<0.000000e+00> : vector<2x32xf32>
    %129 = vector.multi_reduction <add>, %128, %cst_54 [1] : vector<2x16x32xf32> to vector<2x32xf32>
    %cst_55 = arith.constant 1.600000e+01 : f32
    %130 = vector.broadcast %cst_55 : f32 to vector<2x32xf32>
    %131 = arith.divf %129, %130 : vector<2x32xf32>
    %132 = arith.truncf %131 : vector<2x32xf32> to vector<2x32xbf16>
    %c0_56 = arith.constant 0 : index
    %c0_57 = arith.constant 0 : index
    %133 = vector.load %arg16[%c0_56, %c0_57] : memref<32x128xbf16, #tpu.memory_space<vmem>>, vector<32x128xbf16>
    %cst_58 = arith.constant dense<0.000000e+00> : vector<2x128xf32>
    %134 = tpu.matmul %132, %133, %cst_58 {dimension_numbers = #tpu.dot_dimension_numbers<[1], [0], [0], [1], [0, 0, 1, 1], [], []>} : vector<2x32xbf16>, vector<32x128xbf16>, vector<2x128xf32> -> vector<2x128xf32>
    %c0_59 = arith.constant 0 : index
    %c0_60 = arith.constant 0 : index
    %135 = vector.load %arg17[%c0_59, %c0_60] : memref<1x128xf32, #tpu.memory_space<vmem>>, vector<1x128xf32>
    %136 = vector.broadcast %135 : vector<1x128xf32> to vector<2x128xf32>
    %137 = arith.addf %134, %136 : vector<2x128xf32>
    %c0_61 = arith.constant 0 : index
    %c0_62 = arith.constant 0 : index
    %138 = vector.load %arg18[%c0_61, %c0_62] : memref<2x128xf32, #tpu.memory_space<vmem>>, vector<2x128xf32>
    tpu.vector_store %arg18[%c0_61, %c0_62], %137 {strides = array<i32>} : memref<2x128xf32, #tpu.memory_space<vmem>>, vector<2x128xf32>,
    return
  }
  func.func @transform_0(%arg0: i32) -> (i32, i32, i32) {
    %c0_i32 = arith.constant 0 : i32
    %c0_i32_0 = arith.constant 0 : i32
    %c0_i32_1 = arith.constant 0 : i32
    return %arg0, %c0_i32, %c0_i32_0 : i32, i32, i32
  }
  func.func @transform_1(%arg0: i32) -> (i32, i32) {
    %c0_i32 = arith.constant 0 : i32
    %c0_i32_0 = arith.constant 0 : i32
    %c0_i32_1 = arith.constant 0 : i32
    return %c0_i32, %c0_i32_0 : i32, i32
  }
  func.func @transform_2(%arg0: i32) -> (i32, i32) {
    %c0_i32 = arith.constant 0 : i32
    %c0_i32_0 = arith.constant 0 : i32
    %c0_i32_1 = arith.constant 0 : i32
    return %c0_i32, %c0_i32_0 : i32, i32
  }
  func.func @transform_3(%arg0: i32) -> (i32, i32) {
    %c0_i32 = arith.constant 0 : i32
    %c0_i32_0 = arith.constant 0 : i32
    %c0_i32_1 = arith.constant 0 : i32
    return %c0_i32, %c0_i32_0 : i32, i32
  }
  func.func @transform_4(%arg0: i32) -> (i32, i32) {
    %c0_i32 = arith.constant 0 : i32
    %c0_i32_0 = arith.constant 0 : i32
    %c0_i32_1 = arith.constant 0 : i32
    return %c0_i32, %c0_i32_0 : i32, i32
  }
  func.func @transform_5(%arg0: i32) -> (i32, i32) {
    %c0_i32 = arith.constant 0 : i32
    %c0_i32_0 = arith.constant 0 : i32
    %c0_i32_1 = arith.constant 0 : i32
    return %c0_i32, %c0_i32_0 : i32, i32
  }
  func.func @transform_6(%arg0: i32) -> (i32, i32) {
    %c0_i32 = arith.constant 0 : i32
    %c0_i32_0 = arith.constant 0 : i32
    %c0_i32_1 = arith.constant 0 : i32
    return %c0_i32, %c0_i32_0 : i32, i32
  }
  func.func @transform_7(%arg0: i32) -> (i32, i32) {
    %c0_i32 = arith.constant 0 : i32
    %c0_i32_0 = arith.constant 0 : i32
    %c0_i32_1 = arith.constant 0 : i32
    return %c0_i32, %c0_i32_0 : i32, i32
  }
  func.func @transform_8(%arg0: i32) -> (i32, i32) {
    %c0_i32 = arith.constant 0 : i32
    %c0_i32_0 = arith.constant 0 : i32
    %c0_i32_1 = arith.constant 0 : i32
    return %c0_i32, %c0_i32_0 : i32, i32
  }
  func.func @transform_9(%arg0: i32) -> (i32, i32) {
    %c0_i32 = arith.constant 0 : i32
    %c0_i32_0 = arith.constant 0 : i32
    %c0_i32_1 = arith.constant 0 : i32
    return %c0_i32, %c0_i32_0 : i32, i32
  }
  func.func @transform_10(%arg0: i32) -> (i32, i32) {
    %c0_i32 = arith.constant 0 : i32
    %c0_i32_0 = arith.constant 0 : i32
    %c0_i32_1 = arith.constant 0 : i32
    return %c0_i32, %c0_i32_0 : i32, i32
  }
  func.func @transform_11(%arg0: i32) -> (i32, i32) {
    %c0_i32 = arith.constant 0 : i32
    %c0_i32_0 = arith.constant 0 : i32
    %c0_i32_1 = arith.constant 0 : i32
    return %c0_i32, %c0_i32_0 : i32, i32
  }
  func.func @transform_12(%arg0: i32) -> (i32, i32) {
    %c0_i32 = arith.constant 0 : i32
    %c0_i32_0 = arith.constant 0 : i32
    %c0_i32_1 = arith.constant 0 : i32
    return %c0_i32, %c0_i32_0 : i32, i32
  }
  func.func @transform_13(%arg0: i32) -> (i32, i32) {
    %c0_i32 = arith.constant 0 : i32
    %c0_i32_0 = arith.constant 0 : i32
    %c0_i32_1 = arith.constant 0 : i32
    return %c0_i32, %c0_i32_0 : i32, i32
  }
  func.func @transform_14(%arg0: i32) -> (i32, i32) {
    %c0_i32 = arith.constant 0 : i32
    %c0_i32_0 = arith.constant 0 : i32
    %c0_i32_1 = arith.constant 0 : i32
    return %c0_i32, %c0_i32_0 : i32, i32
  }
  func.func @transform_15(%arg0: i32) -> (i32, i32) {
    %c0_i32 = arith.constant 0 : i32
    %c0_i32_0 = arith.constant 0 : i32
    %c0_i32_1 = arith.constant 0 : i32
    return %c0_i32, %c0_i32_0 : i32, i32
  }
  func.func @transform_16(%arg0: i32) -> (i32, i32) {
    %c0_i32 = arith.constant 0 : i32
    %c0_i32_0 = arith.constant 0 : i32
    %c0_i32_1 = arith.constant 0 : i32
    return %c0_i32, %c0_i32_0 : i32, i32
  }
  func.func @transform_17(%arg0: i32) -> (i32, i32) {
    %c0_i32 = arith.constant 0 : i32
    %c0_i32_0 = arith.constant 0 : i32
    return %arg0, %c0_i32 : i32, i32
  }
}

module attributes {stable_mosaic.version = 11 : i64} {
  func.func @_mixer_block_kernel(%arg0: i32, %arg1: memref<2x16x32xf32, #tpu.memory_space<vmem>>, %arg2: memref<1x32xf32, #tpu.memory_space<vmem>>, %arg3: memref<1x32xf32, #tpu.memory_space<vmem>>, %arg4: memref<16x16xbf16, #tpu.memory_space<vmem>>, %arg5: memref<16x1xf32, #tpu.memory_space<vmem>>, %arg6: memref<16x16xbf16, #tpu.memory_space<vmem>>, %arg7: memref<16x1xf32, #tpu.memory_space<vmem>>, %arg8: memref<1x32xf32, #tpu.memory_space<vmem>>, %arg9: memref<1x32xf32, #tpu.memory_space<vmem>>, %arg10: memref<32x128xbf16, #tpu.memory_space<vmem>>, %arg11: memref<1x128xf32, #tpu.memory_space<vmem>>, %arg12: memref<128x32xbf16, #tpu.memory_space<vmem>>, %arg13: memref<1x32xf32, #tpu.memory_space<vmem>>, %arg14: memref<2x16x32xf32, #tpu.memory_space<vmem>>) attributes {dimension_semantics = [#tpu.dimension_semantics<parallel>], iteration_bounds = array<i64: 1>, scalar_prefetch = 0 : i64, scratch_operands = 0 : i64, tpu.core_type = #tpu.core_type<tc>, window_params = [{transform_indices = @transform_0, window_bounds = array<i64: 2, 16, 32>}, {pipeline_mode = #tpu.pipeline_mode<synchronous>, transform_indices = @transform_1, window_bounds = array<i64: 1, 32>}, {pipeline_mode = #tpu.pipeline_mode<synchronous>, transform_indices = @transform_2, window_bounds = array<i64: 1, 32>}, {pipeline_mode = #tpu.pipeline_mode<synchronous>, transform_indices = @transform_3, window_bounds = array<i64: 16, 16>}, {pipeline_mode = #tpu.pipeline_mode<synchronous>, transform_indices = @transform_4, window_bounds = array<i64: 16, 1>}, {pipeline_mode = #tpu.pipeline_mode<synchronous>, transform_indices = @transform_5, window_bounds = array<i64: 16, 16>}, {pipeline_mode = #tpu.pipeline_mode<synchronous>, transform_indices = @transform_6, window_bounds = array<i64: 16, 1>}, {pipeline_mode = #tpu.pipeline_mode<synchronous>, transform_indices = @transform_7, window_bounds = array<i64: 1, 32>}, {pipeline_mode = #tpu.pipeline_mode<synchronous>, transform_indices = @transform_8, window_bounds = array<i64: 1, 32>}, {pipeline_mode = #tpu.pipeline_mode<synchronous>, transform_indices = @transform_9, window_bounds = array<i64: 32, 128>}, {pipeline_mode = #tpu.pipeline_mode<synchronous>, transform_indices = @transform_10, window_bounds = array<i64: 1, 128>}, {pipeline_mode = #tpu.pipeline_mode<synchronous>, transform_indices = @transform_11, window_bounds = array<i64: 128, 32>}, {pipeline_mode = #tpu.pipeline_mode<synchronous>, transform_indices = @transform_12, window_bounds = array<i64: 1, 32>}, {transform_indices = @transform_13, window_bounds = array<i64: 2, 16, 32>}]} {
    %c0 = arith.constant 0 : index
    %c0_0 = arith.constant 0 : index
    %c0_1 = arith.constant 0 : index
    %0 = vector.load %arg1[%c0, %c0_0, %c0_1] : memref<2x16x32xf32, #tpu.memory_space<vmem>>, vector<2x16x32xf32>
    %c0_2 = arith.constant 0 : index
    %c0_3 = arith.constant 0 : index
    %1 = vector.load %arg5[%c0_2, %c0_3] : memref<16x1xf32, #tpu.memory_space<vmem>>, vector<16x1xf32>
    %c0_4 = arith.constant 0 : index
    %c0_5 = arith.constant 0 : index
    %2 = vector.load %arg7[%c0_4, %c0_5] : memref<16x1xf32, #tpu.memory_space<vmem>>, vector<16x1xf32>
    %c0_6 = arith.constant 0 : index
    %c0_7 = arith.constant 0 : index
    %3 = vector.load %arg4[%c0_6, %c0_7] : memref<16x16xbf16, #tpu.memory_space<vmem>>, vector<16x16xbf16>
    %4 = vector.shape_cast %3 : vector<16x16xbf16> to vector<1x16x16xbf16>
    %5 = vector.broadcast %4 : vector<1x16x16xbf16> to vector<2x16x16xbf16>
    %c0_8 = arith.constant 0 : index
    %c0_9 = arith.constant 0 : index
    %6 = vector.load %arg6[%c0_8, %c0_9] : memref<16x16xbf16, #tpu.memory_space<vmem>>, vector<16x16xbf16>
    %7 = vector.shape_cast %6 : vector<16x16xbf16> to vector<1x16x16xbf16>
    %8 = vector.broadcast %7 : vector<1x16x16xbf16> to vector<2x16x16xbf16>
    %c0_10 = arith.constant 0 : index
    %c0_11 = arith.constant 0 : index
    %9 = vector.load %arg10[%c0_10, %c0_11] : memref<32x128xbf16, #tpu.memory_space<vmem>>, vector<32x128xbf16>
    %c0_12 = arith.constant 0 : index
    %c0_13 = arith.constant 0 : index
    %10 = vector.load %arg11[%c0_12, %c0_13] : memref<1x128xf32, #tpu.memory_space<vmem>>, vector<1x128xf32>
    %c0_14 = arith.constant 0 : index
    %c0_15 = arith.constant 0 : index
    %11 = vector.load %arg12[%c0_14, %c0_15] : memref<128x32xbf16, #tpu.memory_space<vmem>>, vector<128x32xbf16>
    %c0_16 = arith.constant 0 : index
    %c0_17 = arith.constant 0 : index
    %12 = vector.load %arg13[%c0_16, %c0_17] : memref<1x32xf32, #tpu.memory_space<vmem>>, vector<1x32xf32>
    %c0_18 = arith.constant 0 : index
    %c0_19 = arith.constant 0 : index
    %13 = vector.load %arg2[%c0_18, %c0_19] : memref<1x32xf32, #tpu.memory_space<vmem>>, vector<1x32xf32>
    %c0_20 = arith.constant 0 : index
    %c0_21 = arith.constant 0 : index
    %14 = vector.load %arg3[%c0_20, %c0_21] : memref<1x32xf32, #tpu.memory_space<vmem>>, vector<1x32xf32>
    %cst = arith.constant dense<0.000000e+00> : vector<2x16xf32>
    %15 = vector.multi_reduction <add>, %0, %cst [2] : vector<2x16x32xf32> to vector<2x16xf32>
    %16 = vector.shape_cast %15 : vector<2x16xf32> to vector<2x16x1xf32>
    %cst_22 = arith.constant 3.200000e+01 : f32
    %17 = vector.broadcast %cst_22 : f32 to vector<2x16x1xf32>
    %18 = arith.divf %16, %17 : vector<2x16x1xf32>
    %19 = vector.broadcast %18 : vector<2x16x1xf32> to vector<2x16x32xf32>
    %20 = arith.subf %0, %19 : vector<2x16x32xf32>
    %21 = arith.mulf %20, %20 : vector<2x16x32xf32>
    %cst_23 = arith.constant dense<0.000000e+00> : vector<2x16xf32>
    %22 = vector.multi_reduction <add>, %21, %cst_23 [2] : vector<2x16x32xf32> to vector<2x16xf32>
    %23 = vector.shape_cast %22 : vector<2x16xf32> to vector<2x16x1xf32>
    %cst_24 = arith.constant 3.200000e+01 : f32
    %24 = vector.broadcast %cst_24 : f32 to vector<2x16x1xf32>
    %25 = arith.divf %23, %24 : vector<2x16x1xf32>
    %26 = vector.broadcast %18 : vector<2x16x1xf32> to vector<2x16x32xf32>
    %27 = arith.subf %0, %26 : vector<2x16x32xf32>
    %cst_25 = arith.constant 9.99999997E-7 : f32
    %28 = vector.broadcast %cst_25 : f32 to vector<2x16x1xf32>
    %29 = arith.addf %25, %28 : vector<2x16x1xf32>
    %30 = math.rsqrt %29 : vector<2x16x1xf32>
    %31 = vector.broadcast %30 : vector<2x16x1xf32> to vector<2x16x32xf32>
    %32 = arith.mulf %27, %31 : vector<2x16x32xf32>
    %33 = vector.shape_cast %13 : vector<1x32xf32> to vector<1x1x32xf32>
    %34 = vector.broadcast %33 : vector<1x1x32xf32> to vector<2x16x32xf32>
    %35 = arith.mulf %32, %34 : vector<2x16x32xf32>
    %36 = vector.shape_cast %14 : vector<1x32xf32> to vector<1x1x32xf32>
    %37 = vector.broadcast %36 : vector<1x1x32xf32> to vector<2x16x32xf32>
    %38 = arith.addf %35, %37 : vector<2x16x32xf32>
    %39 = arith.truncf %38 : vector<2x16x32xf32> to vector<2x16x32xbf16>
    "tpu.trace_start"() <{level = 10 : i32, message = "btn,bnc->btc"}> : () -> ()
    %cst_26 = arith.constant dense<0.000000e+00> : vector<2x16x32xf32>
    %40 = tpu.matmul %5, %39, %cst_26 {dimension_numbers = #tpu.dot_dimension_numbers<[2], [1], [1], [2], [0, 0, 0, 1, 1, 2], [0], [0]>} : vector<2x16x16xbf16>, vector<2x16x32xbf16>, vector<2x16x32xf32> -> vector<2x16x32xf32>
    "tpu.trace_stop"() : () -> ()
    %41 = vector.shape_cast %1 : vector<16x1xf32> to vector<1x16x1xf32>
    %42 = vector.broadcast %41 : vector<1x16x1xf32> to vector<2x16x32xf32>
    %43 = arith.addf %40, %42 : vector<2x16x32xf32>
    %cst_27 = arith.constant 5.000000e-01 : f32
    %44 = vector.broadcast %cst_27 : f32 to vector<2x16x32xf32>
    %45 = arith.mulf %44, %43 : vector<2x16x32xf32>
    %cst_28 = arith.constant 0.707106769 : f32
    %46 = vector.broadcast %cst_28 : f32 to vector<2x16x32xf32>
    %47 = arith.mulf %43, %46 : vector<2x16x32xf32>
    %48 = math.erf %47 : vector<2x16x32xf32>
    %cst_29 = arith.constant 1.000000e+00 : f32
    %49 = vector.broadcast %cst_29 : f32 to vector<2x16x32xf32>
    %50 = arith.addf %49, %48 : vector<2x16x32xf32>
    %51 = arith.mulf %45, %50 : vector<2x16x32xf32>
    %52 = arith.truncf %51 : vector<2x16x32xf32> to vector<2x16x32xbf16>
    "tpu.trace_start"() <{level = 10 : i32, message = "bnt,btc->bnc"}> : () -> ()
    %cst_30 = arith.constant dense<0.000000e+00> : vector<2x16x32xf32>
    %53 = tpu.matmul %8, %52, %cst_30 {dimension_numbers = #tpu.dot_dimension_numbers<[2], [1], [1], [2], [0, 0, 0, 1, 1, 2], [0], [0]>} : vector<2x16x16xbf16>, vector<2x16x32xbf16>, vector<2x16x32xf32> -> vector<2x16x32xf32>
    "tpu.trace_stop"() : () -> ()
    %54 = vector.shape_cast %2 : vector<16x1xf32> to vector<1x16x1xf32>
    %55 = vector.broadcast %54 : vector<1x16x1xf32> to vector<2x16x32xf32>
    %56 = arith.addf %53, %55 : vector<2x16x32xf32>
    %57 = arith.addf %0, %56 : vector<2x16x32xf32>
    %c0_31 = arith.constant 0 : index
    %c0_32 = arith.constant 0 : index
    %58 = vector.load %arg8[%c0_31, %c0_32] : memref<1x32xf32, #tpu.memory_space<vmem>>, vector<1x32xf32>
    %c0_33 = arith.constant 0 : index
    %c0_34 = arith.constant 0 : index
    %59 = vector.load %arg9[%c0_33, %c0_34] : memref<1x32xf32, #tpu.memory_space<vmem>>, vector<1x32xf32>
    %cst_35 = arith.constant dense<0.000000e+00> : vector<2x16xf32>
    %60 = vector.multi_reduction <add>, %57, %cst_35 [2] : vector<2x16x32xf32> to vector<2x16xf32>
    %61 = vector.shape_cast %60 : vector<2x16xf32> to vector<2x16x1xf32>
    %cst_36 = arith.constant 3.200000e+01 : f32
    %62 = vector.broadcast %cst_36 : f32 to vector<2x16x1xf32>
    %63 = arith.divf %61, %62 : vector<2x16x1xf32>
    %64 = vector.broadcast %63 : vector<2x16x1xf32> to vector<2x16x32xf32>
    %65 = arith.subf %57, %64 : vector<2x16x32xf32>
    %66 = arith.mulf %65, %65 : vector<2x16x32xf32>
    %cst_37 = arith.constant dense<0.000000e+00> : vector<2x16xf32>
    %67 = vector.multi_reduction <add>, %66, %cst_37 [2] : vector<2x16x32xf32> to vector<2x16xf32>
    %68 = vector.shape_cast %67 : vector<2x16xf32> to vector<2x16x1xf32>
    %cst_38 = arith.constant 3.200000e+01 : f32
    %69 = vector.broadcast %cst_38 : f32 to vector<2x16x1xf32>
    %70 = arith.divf %68, %69 : vector<2x16x1xf32>
    %71 = vector.broadcast %63 : vector<2x16x1xf32> to vector<2x16x32xf32>
    %72 = arith.subf %57, %71 : vector<2x16x32xf32>
    %cst_39 = arith.constant 9.99999997E-7 : f32
    %73 = vector.broadcast %cst_39 : f32 to vector<2x16x1xf32>
    %74 = arith.addf %70, %73 : vector<2x16x1xf32>
    %75 = math.rsqrt %74 : vector<2x16x1xf32>
    %76 = vector.broadcast %75 : vector<2x16x1xf32> to vector<2x16x32xf32>
    %77 = arith.mulf %72, %76 : vector<2x16x32xf32>
    %78 = vector.shape_cast %58 : vector<1x32xf32> to vector<1x1x32xf32>
    %79 = vector.broadcast %78 : vector<1x1x32xf32> to vector<2x16x32xf32>
    %80 = arith.mulf %77, %79 : vector<2x16x32xf32>
    %81 = vector.shape_cast %59 : vector<1x32xf32> to vector<1x1x32xf32>
    %82 = vector.broadcast %81 : vector<1x1x32xf32> to vector<2x16x32xf32>
    %83 = arith.addf %80, %82 : vector<2x16x32xf32>
    %84 = vector.shape_cast %83 : vector<2x16x32xf32> to vector<32x32xf32>
    %85 = arith.truncf %84 : vector<32x32xf32> to vector<32x32xbf16>
    %cst_40 = arith.constant dense<0.000000e+00> : vector<32x128xf32>
    %86 = tpu.matmul %85, %9, %cst_40 {dimension_numbers = #tpu.dot_dimension_numbers<[1], [0], [0], [1], [0, 0, 1, 1], [], []>} : vector<32x32xbf16>, vector<32x128xbf16>, vector<32x128xf32> -> vector<32x128xf32>
    %87 = vector.broadcast %10 : vector<1x128xf32> to vector<32x128xf32>
    %88 = arith.addf %86, %87 : vector<32x128xf32>
    %cst_41 = arith.constant 5.000000e-01 : f32
    %89 = vector.broadcast %cst_41 : f32 to vector<32x128xf32>
    %90 = arith.mulf %89, %88 : vector<32x128xf32>
    %cst_42 = arith.constant 0.707106769 : f32
    %91 = vector.broadcast %cst_42 : f32 to vector<32x128xf32>
    %92 = arith.mulf %88, %91 : vector<32x128xf32>
    %93 = math.erf %92 : vector<32x128xf32>
    %cst_43 = arith.constant 1.000000e+00 : f32
    %94 = vector.broadcast %cst_43 : f32 to vector<32x128xf32>
    %95 = arith.addf %94, %93 : vector<32x128xf32>
    %96 = arith.mulf %90, %95 : vector<32x128xf32>
    %97 = arith.truncf %96 : vector<32x128xf32> to vector<32x128xbf16>
    %cst_44 = arith.constant dense<0.000000e+00> : vector<32x32xf32>
    %98 = tpu.matmul %97, %11, %cst_44 {dimension_numbers = #tpu.dot_dimension_numbers<[1], [0], [0], [1], [0, 0, 1, 1], [], []>} : vector<32x128xbf16>, vector<128x32xbf16>, vector<32x32xf32> -> vector<32x32xf32>
    %99 = vector.broadcast %12 : vector<1x32xf32> to vector<32x32xf32>
    %100 = arith.addf %98, %99 : vector<32x32xf32>
    %101 = vector.shape_cast %100 : vector<32x32xf32> to vector<2x16x32xf32>
    %102 = arith.addf %57, %101 : vector<2x16x32xf32>
    %c0_45 = arith.constant 0 : index
    %c0_46 = arith.constant 0 : index
    %c0_47 = arith.constant 0 : index
    %103 = vector.load %arg14[%c0_45, %c0_46, %c0_47] : memref<2x16x32xf32, #tpu.memory_space<vmem>>, vector<2x16x32xf32>
    tpu.vector_store %arg14[%c0_45, %c0_46, %c0_47], %102 {strides = array<i32>} : memref<2x16x32xf32, #tpu.memory_space<vmem>>, vector<2x16x32xf32>,
    return
  }
  func.func @transform_0(%arg0: i32) -> (i32, i32, i32) {
    %c0_i32 = arith.constant 0 : i32
    %c0_i32_0 = arith.constant 0 : i32
    %c0_i32_1 = arith.constant 0 : i32
    return %arg0, %c0_i32, %c0_i32_0 : i32, i32, i32
  }
  func.func @transform_1(%arg0: i32) -> (i32, i32) {
    %c0_i32 = arith.constant 0 : i32
    %c0_i32_0 = arith.constant 0 : i32
    %c0_i32_1 = arith.constant 0 : i32
    return %c0_i32, %c0_i32_0 : i32, i32
  }
  func.func @transform_2(%arg0: i32) -> (i32, i32) {
    %c0_i32 = arith.constant 0 : i32
    %c0_i32_0 = arith.constant 0 : i32
    %c0_i32_1 = arith.constant 0 : i32
    return %c0_i32, %c0_i32_0 : i32, i32
  }
  func.func @transform_3(%arg0: i32) -> (i32, i32) {
    %c0_i32 = arith.constant 0 : i32
    %c0_i32_0 = arith.constant 0 : i32
    %c0_i32_1 = arith.constant 0 : i32
    return %c0_i32, %c0_i32_0 : i32, i32
  }
  func.func @transform_4(%arg0: i32) -> (i32, i32) {
    %c0_i32 = arith.constant 0 : i32
    %c0_i32_0 = arith.constant 0 : i32
    %c0_i32_1 = arith.constant 0 : i32
    return %c0_i32, %c0_i32_0 : i32, i32
  }
  func.func @transform_5(%arg0: i32) -> (i32, i32) {
    %c0_i32 = arith.constant 0 : i32
    %c0_i32_0 = arith.constant 0 : i32
    %c0_i32_1 = arith.constant 0 : i32
    return %c0_i32, %c0_i32_0 : i32, i32
  }
  func.func @transform_6(%arg0: i32) -> (i32, i32) {
    %c0_i32 = arith.constant 0 : i32
    %c0_i32_0 = arith.constant 0 : i32
    %c0_i32_1 = arith.constant 0 : i32
    return %c0_i32, %c0_i32_0 : i32, i32
  }
  func.func @transform_7(%arg0: i32) -> (i32, i32) {
    %c0_i32 = arith.constant 0 : i32
    %c0_i32_0 = arith.constant 0 : i32
    %c0_i32_1 = arith.constant 0 : i32
    return %c0_i32, %c0_i32_0 : i32, i32
  }
  func.func @transform_8(%arg0: i32) -> (i32, i32) {
    %c0_i32 = arith.constant 0 : i32
    %c0_i32_0 = arith.constant 0 : i32
    %c0_i32_1 = arith.constant 0 : i32
    return %c0_i32, %c0_i32_0 : i32, i32
  }
  func.func @transform_9(%arg0: i32) -> (i32, i32) {
    %c0_i32 = arith.constant 0 : i32
    %c0_i32_0 = arith.constant 0 : i32
    %c0_i32_1 = arith.constant 0 : i32
    return %c0_i32, %c0_i32_0 : i32, i32
  }
  func.func @transform_10(%arg0: i32) -> (i32, i32) {
    %c0_i32 = arith.constant 0 : i32
    %c0_i32_0 = arith.constant 0 : i32
    %c0_i32_1 = arith.constant 0 : i32
    return %c0_i32, %c0_i32_0 : i32, i32
  }
  func.func @transform_11(%arg0: i32) -> (i32, i32) {
    %c0_i32 = arith.constant 0 : i32
    %c0_i32_0 = arith.constant 0 : i32
    %c0_i32_1 = arith.constant 0 : i32
    return %c0_i32, %c0_i32_0 : i32, i32
  }
  func.func @transform_12(%arg0: i32) -> (i32, i32) {
    %c0_i32 = arith.constant 0 : i32
    %c0_i32_0 = arith.constant 0 : i32
    %c0_i32_1 = arith.constant 0 : i32
    return %c0_i32, %c0_i32_0 : i32, i32
  }
  func.func @transform_13(%arg0: i32) -> (i32, i32, i32) {
    %c0_i32 = arith.constant 0 : i32
    %c0_i32_0 = arith.constant 0 : i32
    %c0_i32_1 = arith.constant 0 : i32
    return %arg0, %c0_i32, %c0_i32_0 : i32, i32, i32
  }
}

</mosaic_0001>

<llo_original>
// kernel: mlp_mixer_forward.3
$region0: #{mlp_mixer_forward.3}
  #allocation0 [shape = 'u32[]', space=smem, size = 0x4, offset = 0x4, fixed_abs, tag = 'smem constant byte address 0x4 - core index']
  #allocation1 [shape = 'u32[144,128]{1,0:T(1,128)}', space=vmem, size = 0x12000, scoped, tag = 'internal scratch']
  %s0 = inlined_call_operand.vmem [shape: bf16[2,16,48], index: 0, kind: input, shape index: {}]
  %s1 = inlined_call_operand.vmem [shape: bf16[48,32], index: 1, kind: input, shape index: {}]
  %s2 = inlined_call_operand.vmem [shape: f32[1,32], index: 2, kind: input, shape index: {}]
  %s3 = inlined_call_operand.vmem [shape: f32[2,16,32], index: 3, kind: output, shape index: {}]
  %s4 = sld [smem:[#allocation0]]
  $region22: #{mlp_mixer_forward.3} parent=0
    _
  %s6 = ssub.s32 1, %s4
  %s7 = scalar_select 0, %s6, %s4
  // Predicated region
  $region2: #{mlp_mixer_forward.3} parent=0 // pred_check
    _
  $region3: #{mlp_mixer_forward.3} parent=0 // pred_check_branch
    %9 = sbr.rel (0) target = $region5
  $region4: #{mlp_mixer_forward.3} parent=0 // pred_region
    _
  $region5: #{mlp_mixer_forward.3} parent=0 // pred_fallthru
    _
  // Predicated region
  $region6: #{mlp_mixer_forward.3} parent=0 // pred_check
    _
  $region7: #{mlp_mixer_forward.3} parent=0 // pred_check_branch
    %11 = sbr.rel (0) target = $region9
  $region8: #{mlp_mixer_forward.3} parent=0 // pred_region
    _
  $region9: #{mlp_mixer_forward.3} parent=0 // pred_fallthru
    _
  // Predicated region
  $region10: #{mlp_mixer_forward.3} parent=0 // pred_check
    _
  $region11: #{mlp_mixer_forward.3} parent=0 // pred_check_branch
    %13 = sbr.rel (0) target = $region13
  $region12: #{mlp_mixer_forward.3} parent=0 // pred_region
    _
  $region13: #{mlp_mixer_forward.3} parent=0 // pred_fallthru
    _
  %v15 = vld [vmem:[%s0] sm:$0xf]
  %v16 = vld [vmem:[%s0 + $0x4] sm:$0xf]
  %v17 = vld [vmem:[%s0 + $0x8] sm:$0xf]
  %v18 = vld [vmem:[%s0 + $0xc] sm:$0xf]
  %v19 = vld [vmem:[%s1] sm:$0xf]
  %v20 = vld [vmem:[%s1 + $0x4] sm:$0xf]
  %v21 = vld [vmem:[%s1 + $0x8] sm:$0xf]
  %v22 = vld [vmem:[%s1 + $0xc] sm:$0xf]
  %v23 = vld [vmem:[%s1 + $0x10] sm:$0xf]
  %v24 = vld [vmem:[%s1 + $0x14] sm:$0xf]
  %v25 = vld [vmem:[%s2] sm:$0x1]
  %v27 = vlaneseq
  %v28 = vshrl.u32 %v27, 7
  %v29 = vsub.s32 0, %v28
  %v30 = vrot.slane %v25, %v29
  %v36 = vunpack.c.l.b16 %v15
  %v37 = vunpack.c.l.b16 %v16
  %v38 = vunpack.c.l.b16 %v17
  %v39 = vunpack.c.l.b16 %v18
  %v40 = vpack.c.b16 %v37, %v36
  %v41 = vpack.c.b16 %v39, %v38
  %v48 = vunpack.c.l.b16 %v19
  %v49 = vunpack.c.l.b16 %v20
  %v50 = vunpack.c.l.b16 %v21
  %v51 = vunpack.c.l.b16 %v22
  %v52 = vunpack.c.l.b16 %v23
  %v53 = vunpack.c.l.b16 %v24
  %v54 = vpack.c.b16 %v49, %v48
  %v55 = vpack.c.b16 %v51, %v50
  %v56 = vpack.c.b16 %v53, %v52
  %vm60 = vcmask 392192
  %v62 = vsel %vm60, %v40, 0
  %v65 = vsel %vm60, %v41, 0
  %67 = vmatprep.subr.bf16.mxu0 0
  %68 = vmatpush1.bf16.msra.mxu0 0
  %69 = vmatprep.subr.bf16.mxu0 0
  %70 = vmatpush1.bf16.msra.mxu0 0
  %71 = vmatprep.subr.bf16.mxu0 0
  %72 = vmatpush1.bf16.msra.mxu0 0
  %73 = vmatprep.subr.bf16.mxu0 0
  %74 = vmatpush1.bf16.msra.mxu0 0
  %75 = vmatprep.subr.bf16.mxu0 0
  %76 = vmatpush1.bf16.msra.mxu0 0
  %77 = vmatprep.subr.bf16.mxu0 0
  %78 = vmatpush1.bf16.msra.mxu0 %v56
  %79 = vmatprep.subr.bf16.mxu0 0
  %80 = vmatpush1.bf16.msra.mxu0 %v55
  %81 = vmatprep.subr.bf16.mxu0 0
  %82 = vmatpush1.bf16.msra.mxu0 %v54
  %83 = vmatprep.subr.bf16.mxu0 0
  %84 = vmatpush2.bf16.msra.mxu0 0
  %85 = vmatprep.subr.bf16.mxu0 0
  %86 = vmatpush2.bf16.msra.mxu0 0
  %87 = vmatprep.subr.bf16.mxu0 0
  %88 = vmatpush2.bf16.msra.mxu0 0
  %89 = vmatprep.subr.bf16.mxu0 0
  %90 = vmatpush2.bf16.msra.mxu0 0
  %91 = vmatprep.subr.bf16.mxu0 0
  %92 = vmatpush2.bf16.msra.mxu0 0
  %93 = vmatprep.subr.bf16.mxu0 0
  %94 = vmatpush2.bf16.msra.mxu0 0
  %95 = vmatprep.subr.bf16.mxu0 0
  %96 = vmatpush2.bf16.msra.mxu0 0
  %97 = vmatprep.subr.bf16.mxu0 0
  %98 = vmatpush2.bf16.msra.mxu0 0
  %99 = vmatprep.mubr.bf16.mxu0 0
  %100 = vmatmul.mubr.bf16.gmra.mxu0 %v62
  %v101 = vpop.f32.mrf.mxu0
  %v102 = vadd.f32 %v30, %v101
  %v103 = vpop.f32.mrf.mxu0
  %v104 = vpop.f32.mrf.mxu0
  %v105 = vadd.f32 %v30, %v104
  %v106 = vpop.f32.mrf.mxu0
  %107 = vmatprep.mubr.bf16.mxu0 0
  %108 = vmatmul.mubr.bf16.gmra.mxu0 %v65
  %v109 = vpop.f32.mrf.mxu0
  %v110 = vadd.f32 %v30, %v109
  %v111 = vpop.f32.mrf.mxu0
  %v112 = vpop.f32.mrf.mxu0
  %v113 = vadd.f32 %v30, %v112
  %v114 = vpop.f32.mrf.mxu0
  %115 = vdwg.mxu0
  %vm116 = vcmask 261120
  %117 = vst.msk [vmem:[%s3] sm:$0xff] %vm116, %v102
  %118 = vst.msk [vmem:[%s3 + $0x8] sm:$0xff] %vm116, %v105
  %119 = vst.msk [vmem:[%s3 + $0x10] sm:$0xff] %vm116, %v110
  %120 = vst.msk [vmem:[%s3 + $0x18] sm:$0xff] %vm116, %v113
  // Predicated region
  $region14: #{mlp_mixer_forward.3} parent=0 // pred_check
    _
  $region15: #{mlp_mixer_forward.3} parent=0 // pred_check_branch
    %122 = sbr.rel (0) target = $region17
  $region16: #{mlp_mixer_forward.3} parent=0 // pred_region
    _
  $region17: #{mlp_mixer_forward.3} parent=0 // pred_fallthru
    _
  // Predicated region
  $region18: #{mlp_mixer_forward.3} parent=0 // pred_check
    _
  $region19: #{mlp_mixer_forward.3} parent=0 // pred_check_branch
    %124 = sbr.rel (0) target = $region21
  $region20: #{mlp_mixer_forward.3} parent=0 // pred_region
    _
  $region21: #{mlp_mixer_forward.3} parent=0 // pred_fallthru
    _

// kernel: mlp_mixer_forward.4
$region0: #{mlp_mixer_forward.4}
  #allocation0 [shape = 'u32[]', space=smem, size = 0x4, offset = 0x4, fixed_abs, tag = 'smem constant byte address 0x4 - core index']
  #allocation1 [shape = 'u32[144,128]{1,0:T(1,128)}', space=vmem, size = 0x12000, scoped, tag = 'internal scratch']
  %s0 = inlined_call_operand.vmem [shape: f32[2,16,32], index: 0, kind: input, shape index: {}, may-alias: {0,13}]
  %s1 = inlined_call_operand.vmem [shape: f32[1,32], index: 1, kind: input, shape index: {}]
  %s2 = inlined_call_operand.vmem [shape: f32[1,32], index: 2, kind: input, shape index: {}]
  %s3 = inlined_call_operand.vmem [shape: bf16[16,16], index: 3, kind: input, shape index: {}]
  %s4 = inlined_call_operand.vmem [shape: f32[16,1], index: 4, kind: input, shape index: {}]
  %s5 = inlined_call_operand.vmem [shape: bf16[16,16], index: 5, kind: input, shape index: {}]
  %s6 = inlined_call_operand.vmem [shape: f32[16,1], index: 6, kind: input, shape index: {}]
  %s7 = inlined_call_operand.vmem [shape: f32[1,32], index: 7, kind: input, shape index: {}]
  %s8 = inlined_call_operand.vmem [shape: f32[1,32], index: 8, kind: input, shape index: {}]
  %s9 = inlined_call_operand.vmem [shape: bf16[32,128], index: 9, kind: input, shape index: {}]
  %s10 = inlined_call_operand.vmem [shape: f32[1,128], index: 10, kind: input, shape index: {}]
  %s11 = inlined_call_operand.vmem [shape: bf16[128,32], index: 11, kind: input, shape index: {}]
  %s12 = inlined_call_operand.vmem [shape: f32[1,32], index: 12, kind: input, shape index: {}]
  %s13 = inlined_call_operand.vmem [shape: f32[2,16,32], index: 13, kind: output, shape index: {}, may-alias: {0,13}]
  %s14 = sld [smem:[#allocation0]]
  $region62: #{mlp_mixer_forward.4} parent=0
    _
  %s16 = ssub.s32 1, %s14
  %s17 = scalar_select 0, %s16, %s14
  // Predicated region
  $region2: #{mlp_mixer_forward.4} parent=0 // pred_check
    _
  $region3: #{mlp_mixer_forward.4} parent=0 // pred_check_branch
    %19 = sbr.rel (0) target = $region5
  $region4: #{mlp_mixer_forward.4} parent=0 // pred_region
    _
  $region5: #{mlp_mixer_forward.4} parent=0 // pred_fallthru
    _
  // Predicated region
  $region6: #{mlp_mixer_forward.4} parent=0 // pred_check
    _
  $region7: #{mlp_mixer_forward.4} parent=0 // pred_check_branch
    %21 = sbr.rel (0) target = $region9
  $region8: #{mlp_mixer_forward.4} parent=0 // pred_region
    _
  $region9: #{mlp_mixer_forward.4} parent=0 // pred_fallthru
    _
  // Predicated region
  $region10: #{mlp_mixer_forward.4} parent=0 // pred_check
    _
  $region11: #{mlp_mixer_forward.4} parent=0 // pred_check_branch
    %23 = sbr.rel (0) target = $region13
  $region12: #{mlp_mixer_forward.4} parent=0 // pred_region
    _
  $region13: #{mlp_mixer_forward.4} parent=0 // pred_fallthru
    _
  // Predicated region
  $region14: #{mlp_mixer_forward.4} parent=0 // pred_check
    _
  $region15: #{mlp_mixer_forward.4} parent=0 // pred_check_branch
    %25 = sbr.rel (0) target = $region17
  $region16: #{mlp_mixer_forward.4} parent=0 // pred_region
    _
  $region17: #{mlp_mixer_forward.4} parent=0 // pred_fallthru
    _
  // Predicated region
  $region18: #{mlp_mixer_forward.4} parent=0 // pred_check
    _
  $region19: #{mlp_mixer_forward.4} parent=0 // pred_check_branch
    %27 = sbr.rel (0) target = $region21
  $region20: #{mlp_mixer_forward.4} parent=0 // pred_region
    _
  $region21: #{mlp_mixer_forward.4} parent=0 // pred_fallthru
    _
  // Predicated region
  $region22: #{mlp_mixer_forward.4} parent=0 // pred_check
    _
  $region23: #{mlp_mixer_forward.4} parent=0 // pred_check_branch
    %29 = sbr.rel (0) target = $region25
  $region24: #{mlp_mixer_forward.4} parent=0 // pred_region
    _
  $region25: #{mlp_mixer_forward.4} parent=0 // pred_fallthru
    _
  // Predicated region
  $region26: #{mlp_mixer_forward.4} parent=0 // pred_check
    _
  $region27: #{mlp_mixer_forward.4} parent=0 // pred_check_branch
    %31 = sbr.rel (0) target = $region29
  $region28: #{mlp_mixer_forward.4} parent=0 // pred_region
    _
  $region29: #{mlp_mixer_forward.4} parent=0 // pred_fallthru
    _
  // Predicated region
  $region30: #{mlp_mixer_forward.4} parent=0 // pred_check
    _
  $region31: #{mlp_mixer_forward.4} parent=0 // pred_check_branch
    %33 = sbr.rel (0) target = $region33
  $region32: #{mlp_mixer_forward.4} parent=0 // pred_region
    _
  $region33: #{mlp_mixer_forward.4} parent=0 // pred_fallthru
    _
  // Predicated region
  $region34: #{mlp_mixer_forward.4} parent=0 // pred_check
    _
  $region35: #{mlp_mixer_forward.4} parent=0 // pred_check_branch
    %35 = sbr.rel (0) target = $region37
  $region36: #{mlp_mixer_forward.4} parent=0 // pred_region
    _
  $region37: #{mlp_mixer_forward.4} parent=0 // pred_fallthru
    _
  // Predicated region
  $region38: #{mlp_mixer_forward.4} parent=0 // pred_check
    _
  $region39: #{mlp_mixer_forward.4} parent=0 // pred_check_branch
    %37 = sbr.rel (0) target = $region41
  $region40: #{mlp_mixer_forward.4} parent=0 // pred_region
    _
  $region41: #{mlp_mixer_forward.4} parent=0 // pred_fallthru
    _
  // Predicated region
  $region42: #{mlp_mixer_forward.4} parent=0 // pred_check
    _
  $region43: #{mlp_mixer_forward.4} parent=0 // pred_check_branch
    %39 = sbr.rel (0) target = $region45
  $region44: #{mlp_mixer_forward.4} parent=0 // pred_region
    _
  $region45: #{mlp_mixer_forward.4} parent=0 // pred_fallthru
    _
  // Predicated region
  $region46: #{mlp_mixer_forward.4} parent=0 // pred_check
    _
  $region47: #{mlp_mixer_forward.4} parent=0 // pred_check_branch
    %41 = sbr.rel (0) target = $region49
  $region48: #{mlp_mixer_forward.4} parent=0 // pred_region
    _
  $region49: #{mlp_mixer_forward.4} parent=0 // pred_fallthru
    _
  // Predicated region
  $region50: #{mlp_mixer_forward.4} parent=0 // pred_check
    _
  $region51: #{mlp_mixer_forward.4} parent=0 // pred_check_branch
    %43 = sbr.rel (0) target = $region53
  $region52: #{mlp_mixer_forward.4} parent=0 // pred_region
    _
  $region53: #{mlp_mixer_forward.4} parent=0 // pred_fallthru
    _
  %v45 = vld [vmem:[%s0] sm:$0xff]
  %v46 = vld [vmem:[%s0 + $0x8] sm:$0xff]
  %v47 = vld [vmem:[%s0 + $0x10] sm:$0xff]
  %v48 = vld [vmem:[%s0 + $0x18] sm:$0xff]
  %v49 = vld [vmem:[%s4] sm:$0xff]
  %v50 = vld [vmem:[%s4 + $0x8] sm:$0xff]
  %v51 = vld [vmem:[%s6] sm:$0xff]
  %v52 = vld [vmem:[%s6 + $0x8] sm:$0xff]
  %v53 = vld [vmem:[%s3] sm:$0xf]
  %v54 = vld [vmem:[%s3 + $0x4] sm:$0xf]
  %v55 = vld [vmem:[%s5] sm:$0xf]
  %v56 = vld [vmem:[%s5 + $0x4] sm:$0xf]
  %v57 = vld [vmem:[%s9] sm:$0xf]
  %v58 = vld [vmem:[%s9 + $0x4] sm:$0xf]
  %v59 = vld [vmem:[%s9 + $0x8] sm:$0xf]
  %v60 = vld [vmem:[%s9 + $0xc] sm:$0xf]
  %v61 = vld [vmem:[%s10] sm:$0x1]
  %v62 = vld [vmem:[%s11] sm:$0xf]
  %v63 = vld [vmem:[%s11 + $0x4] sm:$0xf]
  %v64 = vld [vmem:[%s11 + $0x8] sm:$0xf]
  %v65 = vld [vmem:[%s11 + $0xc] sm:$0xf]
  %v66 = vld [vmem:[%s11 + $0x10] sm:$0xf]
  %v67 = vld [vmem:[%s11 + $0x14] sm:$0xf]
  %v68 = vld [vmem:[%s11 + $0x18] sm:$0xf]
  %v69 = vld [vmem:[%s11 + $0x1c] sm:$0xf]
  %v70 = vld [vmem:[%s11 + $0x20] sm:$0xf]
  %v71 = vld [vmem:[%s11 + $0x24] sm:$0xf]
  %v72 = vld [vmem:[%s11 + $0x28] sm:$0xf]
  %v73 = vld [vmem:[%s11 + $0x2c] sm:$0xf]
  %v74 = vld [vmem:[%s11 + $0x30] sm:$0xf]
  %v75 = vld [vmem:[%s11 + $0x34] sm:$0xf]
  %v76 = vld [vmem:[%s11 + $0x38] sm:$0xf]
  %v77 = vld [vmem:[%s11 + $0x3c] sm:$0xf]
  %v78 = vld [vmem:[%s12] sm:$0x1]
  %v79 = vld [vmem:[%s1] sm:$0x1]
  %v80 = vld [vmem:[%s2] sm:$0x1]
  %vm81 = vcmask 261120
  %v82 = vsel %vm81, %v45, 0.0
  %83 = vadd.xlane.f32.xlu0 %v82
  %v84 = vpop.xlane.xlu0 %83
  %v85 = vsel %vm81, %v46, 0.0
  %86 = vadd.xlane.f32.xlu0 %v85
  %v87 = vpop.xlane.xlu0 %86
  %v88 = vsel %vm81, %v47, 0.0
  %89 = vadd.xlane.f32.xlu0 %v88
  %v90 = vpop.xlane.xlu0 %89
  %v91 = vsel %vm81, %v48, 0.0
  %92 = vadd.xlane.f32.xlu0 %v91
  %v93 = vpop.xlane.xlu0 %92
  %v94 = vrcp.pop 32.0
  %v95 = vmul.f32 %v84, %v94
  %v96 = vmul.f32 %v87, %v94
  %v97 = vmul.f32 %v90, %v94
  %v98 = vmul.f32 %v93, %v94
  %v99 = vsub.f32 %v45, %v95
  %v100 = vsub.f32 %v46, %v96
  %v101 = vsub.f32 %v47, %v97
  %v102 = vsub.f32 %v48, %v98
  %v103 = vmul.f32 %v99, %v99
  %v104 = vmul.f32 %v100, %v100
  %v105 = vmul.f32 %v101, %v101
  %v106 = vmul.f32 %v102, %v102
  %v107 = vsel %vm81, %v103, 0.0
  %108 = vadd.xlane.f32.xlu0 %v107
  %v109 = vpop.xlane.xlu0 %108
  %v110 = vsel %vm81, %v104, 0.0
  %111 = vadd.xlane.f32.xlu0 %v110
  %v112 = vpop.xlane.xlu0 %111
  %v113 = vsel %vm81, %v105, 0.0
  %114 = vadd.xlane.f32.xlu0 %v113
  %v115 = vpop.xlane.xlu0 %114
  %v116 = vsel %vm81, %v106, 0.0
  %117 = vadd.xlane.f32.xlu0 %v116
  %v118 = vpop.xlane.xlu0 %117
  %v119 = vmul.f32 %v109, %v94
  %v120 = vmul.f32 %v112, %v94
  %v121 = vmul.f32 %v115, %v94
  %v122 = vmul.f32 %v118, %v94
  %v123 = vadd.f32 %v119, 1e-06
  %v124 = vadd.f32 %v120, 1e-06
  %v125 = vadd.f32 %v121, 1e-06
  %v126 = vadd.f32 %v122, 1e-06
  %v127 = vrsqrt.pop %v123
  %v128 = vrsqrt.pop %v124
  %v129 = vrsqrt.pop %v125
  %v130 = vrsqrt.pop %v126
  %v131 = vmul.f32 %v99, %v127
  %v132 = vmul.f32 %v100, %v128
  %v133 = vmul.f32 %v101, %v129
  %v134 = vmul.f32 %v102, %v130
  %v136 = vlaneseq
  %v137 = vshrl.u32 %v136, 7
  %v138 = vsub.s32 0, %v137
  %v139 = vrot.slane %v79, %v138
  %v141 = vmul.f32 %v131, %v139
  %v142 = vmul.f32 %v132, %v139
  %v143 = vmul.f32 %v133, %v139
  %v144 = vmul.f32 %v134, %v139
  %v146 = vlaneseq
  %v147 = vshrl.u32 %v146, 7
  %v148 = vsub.s32 0, %v147
  %v149 = vrot.slane %v80, %v148
  %v151 = vadd.f32 %v141, %v149
  %v152 = vadd.f32 %v142, %v149
  %v153 = vadd.f32 %v143, %v149
  %v154 = vadd.f32 %v144, %v149
  %v155 = vpack.c.bf16 %v152, %v151
  %v156 = vpack.c.bf16 %v154, %v153
  %158 = vset.pattern.permute.xlu0 0
  %159 = vperm.xlu0 %158, %v49
  %v160 = vpop.permute.xlu0 %159
  %163 = vset.pattern.permute.xlu0 0
  %164 = vperm.xlu0 %163, %v50
  %v165 = vpop.permute.xlu0 %164
  %v169 = vunpack.c.l.b16 %v53
  %v170 = vunpack.c.l.b16 %v54
  %v171 = vpack.c.b16 %v170, %v169
  %vm172 = vcmask 130048
  %v174 = vsel %vm172, %v171, 0
  %176 = vmatprep.subr.bf16.mxu0 0
  %177 = vmatpush1.bf16.msra.mxu0 0
  %178 = vmatprep.subr.bf16.mxu0 0
  %179 = vmatpush1.bf16.msra.mxu0 0
  %180 = vmatprep.subr.bf16.mxu0 0
  %181 = vmatpush1.bf16.msra.mxu0 0
  %182 = vmatprep.subr.bf16.mxu0 0
  %183 = vmatpush1.bf16.msra.mxu0 0
  %184 = vmatprep.subr.bf16.mxu0 0
  %185 = vmatpush1.bf16.msra.mxu0 0
  %186 = vmatprep.subr.bf16.mxu0 0
  %187 = vmatpush1.bf16.msra.mxu0 0
  %188 = vmatprep.subr.bf16.mxu0 0
  %189 = vmatpush1.bf16.msra.mxu0 0
  %190 = vmatprep.subr.bf16.mxu0 0
  %191 = vmatpush1.bf16.msra.mxu0 %v155
  %192 = vmatprep.subr.bf16.mxu0 0
  %193 = vmatpush2.bf16.msra.mxu0 0
  %194 = vmatprep.subr.bf16.mxu0 0
  %195 = vmatpush2.bf16.msra.mxu0 0
  %196 = vmatprep.subr.bf16.mxu0 0
  %197 = vmatpush2.bf16.msra.mxu0 0
  %198 = vmatprep.subr.bf16.mxu0 0
  %199 = vmatpush2.bf16.msra.mxu0 0
  %200 = vmatprep.subr.bf16.mxu0 0
  %201 = vmatpush2.bf16.msra.mxu0 0
  %202 = vmatprep.subr.bf16.mxu0 0
  %203 = vmatpush2.bf16.msra.mxu0 0
  %204 = vmatprep.subr.bf16.mxu0 0
  %205 = vmatpush2.bf16.msra.mxu0 0
  %206 = vmatprep.subr.bf16.mxu0 0
  %207 = vmatpush2.bf16.msra.mxu0 0
  %208 = vmatprep.mubr.bf16.mxu0 0
  %209 = vmatmul.mubr.bf16.gmra.mxu0 %v174
  %v210 = vpop.f32.mrf.mxu0
  %v211 = vadd.f32 %v160, %v210
  %v212 = vpop.f32.mrf.mxu0
  %v213 = vpop.f32.mrf.mxu0
  %v214 = vadd.f32 %v165, %v213
  %v215 = vpop.f32.mrf.mxu0
  %216 = vdwg.mxu0
  %217 = vmatprep.subr.bf16.mxu0 0
  %218 = vmatpush1.bf16.msra.mxu0 0
  %219 = vmatprep.subr.bf16.mxu0 0
  %220 = vmatpush1.bf16.msra.mxu0 0
  %221 = vmatprep.subr.bf16.mxu0 0
  %222 = vmatpush1.bf16.msra.mxu0 0
  %223 = vmatprep.subr.bf16.mxu0 0
  %224 = vmatpush1.bf16.msra.mxu0 0
  %225 = vmatprep.subr.bf16.mxu0 0
  %226 = vmatpush1.bf16.msra.mxu0 0
  %227 = vmatprep.subr.bf16.mxu0 0
  %228 = vmatpush1.bf16.msra.mxu0 0
  %229 = vmatprep.subr.bf16.mxu0 0
  %230 = vmatpush1.bf16.msra.mxu0 0
  %231 = vmatprep.subr.bf16.mxu0 0
  %232 = vmatpush1.bf16.msra.mxu0 %v156
  %233 = vmatprep.subr.bf16.mxu0 0
  %234 = vmatpush2.bf16.msra.mxu0 0
  %235 = vmatprep.subr.bf16.mxu0 0
  %236 = vmatpush2.bf16.msra.mxu0 0
  %237 = vmatprep.subr.bf16.mxu0 0
  %238 = vmatpush2.bf16.msra.mxu0 0
  %239 = vmatprep.subr.bf16.mxu0 0
  %240 = vmatpush2.bf16.msra.mxu0 0
  %241 = vmatprep.subr.bf16.mxu0 0
  %242 = vmatpush2.bf16.msra.mxu0 0
  %243 = vmatprep.subr.bf16.mxu0 0
  %244 = vmatpush2.bf16.msra.mxu0 0
  %245 = vmatprep.subr.bf16.mxu0 0
  %246 = vmatpush2.bf16.msra.mxu0 0
  %247 = vmatprep.subr.bf16.mxu0 0
  %248 = vmatpush2.bf16.msra.mxu0 0
  %249 = vmatprep.mubr.bf16.mxu0 0
  %250 = vmatmul.mubr.bf16.gmra.mxu0 %v174
  %v251 = vpop.f32.mrf.mxu0
  %v252 = vadd.f32 %v160, %v251
  %v253 = vpop.f32.mrf.mxu0
  %v254 = vpop.f32.mrf.mxu0
  %v255 = vadd.f32 %v165, %v254
  %v256 = vpop.f32.mrf.mxu0
  %257 = vdwg.mxu0
  %v258 = vmul.f32 %v211, 0.5
  %v259 = vmul.f32 %v214, 0.5
  %v260 = vmul.f32 %v252, 0.5
  %v261 = vmul.f32 %v255, 0.5
  %v262 = vmul.f32 %v211, 0.70710677
  %v263 = vmul.f32 %v214, 0.70710677
  %v264 = vmul.f32 %v252, 0.70710677
  %v265 = vmul.f32 %v255, 0.70710677
  %v266 = verf.f32.pop %v262
  %v267 = verf.f32.pop %v263
  %v268 = verf.f32.pop %v264
  %v269 = verf.f32.pop %v265
  %v270 = vadd.f32 %v266, 1.0
  %v271 = vadd.f32 %v267, 1.0
  %v272 = vadd.f32 %v268, 1.0
  %v273 = vadd.f32 %v269, 1.0
  %v274 = vmul.f32 %v258, %v270
  %v275 = vmul.f32 %v259, %v271
  %v276 = vmul.f32 %v260, %v272
  %v277 = vmul.f32 %v261, %v273
  %v278 = vpack.c.bf16 %v275, %v274
  %v279 = vpack.c.bf16 %v277, %v276
  %281 = vset.pattern.permute.xlu0 0
  %282 = vperm.xlu0 %281, %v51
  %v283 = vpop.permute.xlu0 %282
  %286 = vset.pattern.permute.xlu0 0
  %287 = vperm.xlu0 %286, %v52
  %v288 = vpop.permute.xlu0 %287
  %v292 = vunpack.c.l.b16 %v55
  %v293 = vunpack.c.l.b16 %v56
  %v294 = vpack.c.b16 %v293, %v292
  %v296 = vsel %vm172, %v294, 0
  %298 = vmatprep.subr.bf16.mxu0 0
  %299 = vmatpush1.bf16.msra.mxu0 0
  %300 = vmatprep.subr.bf16.mxu0 0
  %301 = vmatpush1.bf16.msra.mxu0 0
  %302 = vmatprep.subr.bf16.mxu0 0
  %303 = vmatpush1.bf16.msra.mxu0 0
  %304 = vmatprep.subr.bf16.mxu0 0
  %305 = vmatpush1.bf16.msra.mxu0 0
  %306 = vmatprep.subr.bf16.mxu0 0
  %307 = vmatpush1.bf16.msra.mxu0 0
  %308 = vmatprep.subr.bf16.mxu0 0
  %309 = vmatpush1.bf16.msra.mxu0 0
  %310 = vmatprep.subr.bf16.mxu0 0
  %311 = vmatpush1.bf16.msra.mxu0 0
  %312 = vmatprep.subr.bf16.mxu0 0
  %313 = vmatpush1.bf16.msra.mxu0 %v278
  %314 = vmatprep.subr.bf16.mxu0 0
  %315 = vmatpush2.bf16.msra.mxu0 0
  %316 = vmatprep.subr.bf16.mxu0 0
  %317 = vmatpush2.bf16.msra.mxu0 0
  %318 = vmatprep.subr.bf16.mxu0 0
  %319 = vmatpush2.bf16.msra.mxu0 0
  %320 = vmatprep.subr.bf16.mxu0 0
  %321 = vmatpush2.bf16.msra.mxu0 0
  %322 = vmatprep.subr.bf16.mxu0 0
  %323 = vmatpush2.bf16.msra.mxu0 0
  %324 = vmatprep.subr.bf16.mxu0 0
  %325 = vmatpush2.bf16.msra.mxu0 0
  %326 = vmatprep.subr.bf16.mxu0 0
  %327 = vmatpush2.bf16.msra.mxu0 0
  %328 = vmatprep.subr.bf16.mxu0 0
  %329 = vmatpush2.bf16.msra.mxu0 0
  %330 = vmatprep.mubr.bf16.mxu0 0
  %331 = vmatmul.mubr.bf16.gmra.mxu0 %v296
  %v332 = vpop.f32.mrf.mxu0
  %v333 = vadd.f32 %v283, %v332
  %v334 = vpop.f32.mrf.mxu0
  %v335 = vpop.f32.mrf.mxu0
  %v336 = vadd.f32 %v288, %v335
  %v337 = vpop.f32.mrf.mxu0
  %338 = vdwg.mxu0
  %339 = vmatprep.subr.bf16.mxu0 0
  %340 = vmatpush1.bf16.msra.mxu0 0
  %341 = vmatprep.subr.bf16.mxu0 0
  %342 = vmatpush1.bf16.msra.mxu0 0
  %343 = vmatprep.subr.bf16.mxu0 0
  %344 = vmatpush1.bf16.msra.mxu0 0
  %345 = vmatprep.subr.bf16.mxu0 0
  %346 = vmatpush1.bf16.msra.mxu0 0
  %347 = vmatprep.subr.bf16.mxu0 0
  %348 = vmatpush1.bf16.msra.mxu0 0
  %349 = vmatprep.subr.bf16.mxu0 0
  %350 = vmatpush1.bf16.msra.mxu0 0
  %351 = vmatprep.subr.bf16.mxu0 0
  %352 = vmatpush1.bf16.msra.mxu0 0
  %353 = vmatprep.subr.bf16.mxu0 0
  %354 = vmatpush1.bf16.msra.mxu0 %v279
  %355 = vmatprep.subr.bf16.mxu0 0
  %356 = vmatpush2.bf16.msra.mxu0 0
  %357 = vmatprep.subr.bf16.mxu0 0
  %358 = vmatpush2.bf16.msra.mxu0 0
  %359 = vmatprep.subr.bf16.mxu0 0
  %360 = vmatpush2.bf16.msra.mxu0 0
  %361 = vmatprep.subr.bf16.mxu0 0
  %362 = vmatpush2.bf16.msra.mxu0 0
  %363 = vmatprep.subr.bf16.mxu0 0
  %364 = vmatpush2.bf16.msra.mxu0 0
  %365 = vmatprep.subr.bf16.mxu0 0
  %366 = vmatpush2.bf16.msra.mxu0 0
  %367 = vmatprep.subr.bf16.mxu0 0
  %368 = vmatpush2.bf16.msra.mxu0 0
  %369 = vmatprep.subr.bf16.mxu0 0
  %370 = vmatpush2.bf16.msra.mxu0 0
  %371 = vmatprep.mubr.bf16.mxu0 0
  %372 = vmatmul.mubr.bf16.gmra.mxu0 %v296
  %v373 = vpop.f32.mrf.mxu0
  %v374 = vadd.f32 %v283, %v373
  %v375 = vpop.f32.mrf.mxu0
  %v376 = vpop.f32.mrf.mxu0
  %v377 = vadd.f32 %v288, %v376
  %v378 = vpop.f32.mrf.mxu0
  %379 = vdwg.mxu0
  %v380 = vadd.f32 %v45, %v333
  %v381 = vadd.f32 %v46, %v336
  %v382 = vadd.f32 %v47, %v374
  %v383 = vadd.f32 %v48, %v377
  %v384 = vld [vmem:[%s7] sm:$0x1]
  %v385 = vld [vmem:[%s8] sm:$0x1]
  %v386 = vsel %vm81, %v380, 0.0
  %387 = vadd.xlane.f32.xlu0 %v386
  %v388 = vpop.xlane.xlu0 %387
  %v389 = vsel %vm81, %v381, 0.0
  %390 = vadd.xlane.f32.xlu0 %v389
  %v391 = vpop.xlane.xlu0 %390
  %v392 = vsel %vm81, %v382, 0.0
  %393 = vadd.xlane.f32.xlu0 %v392
  %v394 = vpop.xlane.xlu0 %393
  %v395 = vsel %vm81, %v383, 0.0
  %396 = vadd.xlane.f32.xlu0 %v395
  %v397 = vpop.xlane.xlu0 %396
  %v398 = vmul.f32 %v388, %v94
  %v399 = vmul.f32 %v391, %v94
  %v400 = vmul.f32 %v394, %v94
  %v401 = vmul.f32 %v397, %v94
  %v402 = vsub.f32 %v380, %v398
  %v403 = vsub.f32 %v381, %v399
  %v404 = vsub.f32 %v382, %v400
  %v405 = vsub.f32 %v383, %v401
  %v406 = vmul.f32 %v402, %v402
  %v407 = vmul.f32 %v403, %v403
  %v408 = vmul.f32 %v404, %v404
  %v409 = vmul.f32 %v405, %v405
  %v410 = vsel %vm81, %v406, 0.0
  %411 = vadd.xlane.f32.xlu0 %v410
  %v412 = vpop.xlane.xlu0 %411
  %v413 = vsel %vm81, %v407, 0.0
  %414 = vadd.xlane.f32.xlu0 %v413
  %v415 = vpop.xlane.xlu0 %414
  %v416 = vsel %vm81, %v408, 0.0
  %417 = vadd.xlane.f32.xlu0 %v416
  %v418 = vpop.xlane.xlu0 %417
  %v419 = vsel %vm81, %v409, 0.0
  %420 = vadd.xlane.f32.xlu0 %v419
  %v421 = vpop.xlane.xlu0 %420
  %v422 = vmul.f32 %v412, %v94
  %v423 = vmul.f32 %v415, %v94
  %v424 = vmul.f32 %v418, %v94
  %v425 = vmul.f32 %v421, %v94
  %v426 = vadd.f32 %v422, 1e-06
  %v427 = vadd.f32 %v423, 1e-06
  %v428 = vadd.f32 %v424, 1e-06
  %v429 = vadd.f32 %v425, 1e-06
  %v430 = vrsqrt.pop %v426
  %v431 = vrsqrt.pop %v427
  %v432 = vrsqrt.pop %v428
  %v433 = vrsqrt.pop %v429
  %v434 = vmul.f32 %v402, %v430
  %v435 = vmul.f32 %v403, %v431
  %v436 = vmul.f32 %v404, %v432
  %v437 = vmul.f32 %v405, %v433
  %v439 = vlaneseq
  %v440 = vshrl.u32 %v439, 7
  %v441 = vsub.s32 0, %v440
  %v442 = vrot.slane %v384, %v441
  %v444 = vmul.f32 %v434, %v442
  %v445 = vmul.f32 %v435, %v442
  %v446 = vmul.f32 %v436, %v442
  %v447 = vmul.f32 %v437, %v442
  %v449 = vlaneseq
  %v450 = vshrl.u32 %v449, 7
  %v451 = vsub.s32 0, %v450
  %v452 = vrot.slane %v385, %v451
  %v454 = vadd.f32 %v444, %v452
  %v455 = vadd.f32 %v445, %v452
  %v456 = vadd.f32 %v446, %v452
  %v457 = vadd.f32 %v447, %v452
  %v458 = vpack.c.bf16 %v455, %v454
  %v459 = vpack.c.bf16 %v457, %v456
  %v461 = vlaneseq
  %v462 = vshrl.u32 %v461, 7
  %v463 = vsub.s32 0, %v462
  %v464 = vrot.slane %v61, %v463
  %v470 = vunpack.c.l.b16 %v57
  %v471 = vunpack.c.l.b16 %v58
  %v472 = vunpack.c.l.b16 %v59
  %v473 = vunpack.c.l.b16 %v60
  %v474 = vpack.c.b16 %v471, %v470
  %v475 = vpack.c.b16 %v473, %v472
  %v479 = vsel %vm81, %v458, 0
  %v482 = vsel %vm81, %v459, 0
  %484 = vmatprep.subr.bf16.mxu0 0
  %485 = vmatpush1.bf16.msra.mxu0 0
  %486 = vmatprep.subr.bf16.mxu0 0
  %487 = vmatpush1.bf16.msra.mxu0 0
  %488 = vmatprep.subr.bf16.mxu0 0
  %489 = vmatpush1.bf16.msra.mxu0 0
  %490 = vmatprep.subr.bf16.mxu0 0
  %491 = vmatpush1.bf16.msra.mxu0 0
  %492 = vmatprep.subr.bf16.mxu0 0
  %493 = vmatpush1.bf16.msra.mxu0 0
  %494 = vmatprep.subr.bf16.mxu0 0
  %495 = vmatpush1.bf16.msra.mxu0 0
  %496 = vmatprep.subr.bf16.mxu0 0
  %497 = vmatpush1.bf16.msra.mxu0 %v475
  %498 = vmatprep.subr.bf16.mxu0 0
  %499 = vmatpush1.bf16.msra.mxu0 %v474
  %500 = vmatprep.subr.bf16.mxu0 0
  %501 = vmatpush2.bf16.msra.mxu0 0
  %502 = vmatprep.subr.bf16.mxu0 0
  %503 = vmatpush2.bf16.msra.mxu0 0
  %504 = vmatprep.subr.bf16.mxu0 0
  %505 = vmatpush2.bf16.msra.mxu0 0
  %506 = vmatprep.subr.bf16.mxu0 0
  %507 = vmatpush2.bf16.msra.mxu0 0
  %508 = vmatprep.subr.bf16.mxu0 0
  %509 = vmatpush2.bf16.msra.mxu0 0
  %510 = vmatprep.subr.bf16.mxu0 0
  %511 = vmatpush2.bf16.msra.mxu0 0
  %512 = vmatprep.subr.bf16.mxu0 0
  %513 = vmatpush2.bf16.msra.mxu0 0
  %514 = vmatprep.subr.bf16.mxu0 0
  %515 = vmatpush2.bf16.msra.mxu0 0
  %516 = vmatprep.mubr.bf16.mxu0 0
  %517 = vmatmul.mubr.bf16.gmra.mxu0 %v479
  %v518 = vpop.f32.mrf.mxu0
  %v519 = vadd.f32 %v464, %v518
  %v520 = vpop.f32.mrf.mxu0
  %v521 = vpop.f32.mrf.mxu0
  %v522 = vadd.f32 %v464, %v521
  %v523 = vpop.f32.mrf.mxu0
  %524 = vmatprep.mubr.bf16.mxu0 0
  %525 = vmatmul.mubr.bf16.gmra.mxu0 %v482
  %v526 = vpop.f32.mrf.mxu0
  %v527 = vadd.f32 %v464, %v526
  %v528 = vpop.f32.mrf.mxu0
  %v529 = vpop.f32.mrf.mxu0
  %v530 = vadd.f32 %v464, %v529
  %v531 = vpop.f32.mrf.mxu0
  %532 = vdwg.mxu0
  %v533 = vmul.f32 %v519, 0.5
  %v534 = vmul.f32 %v522, 0.5
  %v535 = vmul.f32 %v527, 0.5
  %v536 = vmul.f32 %v530, 0.5
  %v537 = vmul.f32 %v519, 0.70710677
  %v538 = vmul.f32 %v522, 0.70710677
  %v539 = vmul.f32 %v527, 0.70710677
  %v540 = vmul.f32 %v530, 0.70710677
  %v541 = verf.f32.pop %v537
  %v542 = verf.f32.pop %v538
  %v543 = verf.f32.pop %v539
  %v544 = verf.f32.pop %v540
  %v545 = vadd.f32 %v541, 1.0
  %v546 = vadd.f32 %v542, 1.0
  %v547 = vadd.f32 %v543, 1.0
  %v548 = vadd.f32 %v544, 1.0
  %v549 = vmul.f32 %v533, %v545
  %v550 = vmul.f32 %v534, %v546
  %v551 = vmul.f32 %v535, %v547
  %v552 = vmul.f32 %v536, %v548
  %v553 = vpack.c.bf16 %v550, %v549
  %v554 = vpack.c.bf16 %v552, %v551
  %v556 = vlaneseq
  %v557 = vshrl.u32 %v556, 7
  %v558 = vsub.s32 0, %v557
  %v559 = vrot.slane %v78, %v558
  %v577 = vunpack.c.l.b16 %v62
  %v578 = vunpack.c.l.b16 %v63
  %v579 = vunpack.c.l.b16 %v64
  %v580 = vunpack.c.l.b16 %v65
  %v581 = vunpack.c.l.b16 %v66
  %v582 = vunpack.c.l.b16 %v67
  %v583 = vunpack.c.l.b16 %v68
  %v584 = vunpack.c.l.b16 %v69
  %v585 = vunpack.c.l.b16 %v70
  %v586 = vunpack.c.l.b16 %v71
  %v587 = vunpack.c.l.b16 %v72
  %v588 = vunpack.c.l.b16 %v73
  %v589 = vunpack.c.l.b16 %v74
  %v590 = vunpack.c.l.b16 %v75
  %v591 = vunpack.c.l.b16 %v76
  %v592 = vunpack.c.l.b16 %v77
  %v593 = vpack.c.b16 %v578, %v577
  %v594 = vpack.c.b16 %v580, %v579
  %v595 = vpack.c.b16 %v582, %v581
  %v596 = vpack.c.b16 %v584, %v583
  %v597 = vpack.c.b16 %v586, %v585
  %v598 = vpack.c.b16 %v588, %v587
  %v599 = vpack.c.b16 %v590, %v589
  %v600 = vpack.c.b16 %v592, %v591
  %609 = vmatprep.subr.bf16.mxu0 0
  %610 = vmatpush1.bf16.msra.mxu0 %v600
  %611 = vmatprep.subr.bf16.mxu0 0
  %612 = vmatpush1.bf16.msra.mxu0 %v599
  %613 = vmatprep.subr.bf16.mxu0 0
  %614 = vmatpush1.bf16.msra.mxu0 %v598
  %615 = vmatprep.subr.bf16.mxu0 0
  %616 = vmatpush1.bf16.msra.mxu0 %v597
  %617 = vmatprep.subr.bf16.mxu0 0
  %618 = vmatpush1.bf16.msra.mxu0 %v596
  %619 = vmatprep.subr.bf16.mxu0 0
  %620 = vmatpush1.bf16.msra.mxu0 %v595
  %621 = vmatprep.subr.bf16.mxu0 0
  %622 = vmatpush1.bf16.msra.mxu0 %v594
  %623 = vmatprep.subr.bf16.mxu0 0
  %624 = vmatpush1.bf16.msra.mxu0 %v593
  %625 = vmatprep.subr.bf16.mxu0 0
  %626 = vmatpush2.bf16.msra.mxu0 0
  %627 = vmatprep.subr.bf16.mxu0 0
  %628 = vmatpush2.bf16.msra.mxu0 0
  %629 = vmatprep.subr.bf16.mxu0 0
  %630 = vmatpush2.bf16.msra.mxu0 0
  %631 = vmatprep.subr.bf16.mxu0 0
  %632 = vmatpush2.bf16.msra.mxu0 0
  %633 = vmatprep.subr.bf16.mxu0 0
  %634 = vmatpush2.bf16.msra.mxu0 0
  %635 = vmatprep.subr.bf16.mxu0 0
  %636 = vmatpush2.bf16.msra.mxu0 0
  %637 = vmatprep.subr.bf16.mxu0 0
  %638 = vmatpush2.bf16.msra.mxu0 0
  %639 = vmatprep.subr.bf16.mxu0 0
  %640 = vmatpush2.bf16.msra.mxu0 0
  %641 = vmatprep.mubr.bf16.mxu0 0
  %642 = vmatmul.mubr.bf16.gmra.mxu0 %v553
  %v643 = vpop.f32.mrf.mxu0
  %v644 = vadd.f32 %v559, %v643
  %v645 = vpop.f32.mrf.mxu0
  %v646 = vpop.f32.mrf.mxu0
  %v647 = vadd.f32 %v559, %v646
  %v648 = vpop.f32.mrf.mxu0
  %649 = vmatprep.mubr.bf16.mxu0 0
  %650 = vmatmul.mubr.bf16.gmra.mxu0 %v554
  %v651 = vpop.f32.mrf.mxu0
  %v652 = vadd.f32 %v559, %v651
  %v653 = vpop.f32.mrf.mxu0
  %v654 = vpop.f32.mrf.mxu0
  %v655 = vadd.f32 %v559, %v654
  %v656 = vpop.f32.mrf.mxu0
  %657 = vdwg.mxu0
  %v658 = vadd.f32 %v380, %v644
  %v659 = vadd.f32 %v381, %v647
  %v660 = vadd.f32 %v382, %v652
  %v661 = vadd.f32 %v383, %v655
  %662 = vst.msk [vmem:[%s13] sm:$0xff] %vm81, %v658
  %663 = vst.msk [vmem:[%s13 + $0x8] sm:$0xff] %vm81, %v659
  %664 = vst.msk [vmem:[%s13 + $0x10] sm:$0xff] %vm81, %v660
  %665 = vst.msk [vmem:[%s13 + $0x18] sm:$0xff] %vm81, %v661
  // Predicated region
  $region54: #{mlp_mixer_forward.4} parent=0 // pred_check
    _
  $region55: #{mlp_mixer_forward.4} parent=0 // pred_check_branch
    %667 = sbr.rel (0) target = $region57
  $region56: #{mlp_mixer_forward.4} parent=0 // pred_region
    _
  $region57: #{mlp_mixer_forward.4} parent=0 // pred_fallthru
    _
  // Predicated region
  $region58: #{mlp_mixer_forward.4} parent=0 // pred_check
    _
  $region59: #{mlp_mixer_forward.4} parent=0 // pred_check_branch
    %669 = sbr.rel (0) target = $region61
  $region60: #{mlp_mixer_forward.4} parent=0 // pred_region
    _
  $region61: #{mlp_mixer_forward.4} parent=0 // pred_fallthru
    _

// kernel: mlp_mixer_forward.5
$region0: #{mlp_mixer_forward.5}
  #allocation0 [shape = 'u32[]', space=smem, size = 0x4, offset = 0x4, fixed_abs, tag = 'smem constant byte address 0x4 - core index']
  #allocation1 [shape = 'u32[144,128]{1,0:T(1,128)}', space=vmem, size = 0x12000, scoped, tag = 'internal scratch']
  %s0 = inlined_call_operand.vmem [shape: f32[2,16,32], index: 0, kind: input, shape index: {}]
  %s1 = inlined_call_operand.vmem [shape: f32[1,32], index: 1, kind: input, shape index: {}]
  %s2 = inlined_call_operand.vmem [shape: f32[1,32], index: 2, kind: input, shape index: {}]
  %s3 = inlined_call_operand.vmem [shape: bf16[16,16], index: 3, kind: input, shape index: {}]
  %s4 = inlined_call_operand.vmem [shape: f32[16,1], index: 4, kind: input, shape index: {}]
  %s5 = inlined_call_operand.vmem [shape: bf16[16,16], index: 5, kind: input, shape index: {}]
  %s6 = inlined_call_operand.vmem [shape: f32[16,1], index: 6, kind: input, shape index: {}]
  %s7 = inlined_call_operand.vmem [shape: f32[1,32], index: 7, kind: input, shape index: {}]
  %s8 = inlined_call_operand.vmem [shape: f32[1,32], index: 8, kind: input, shape index: {}]
  %s9 = inlined_call_operand.vmem [shape: bf16[32,128], index: 9, kind: input, shape index: {}]
  %s10 = inlined_call_operand.vmem [shape: f32[1,128], index: 10, kind: input, shape index: {}]
  %s11 = inlined_call_operand.vmem [shape: bf16[128,32], index: 11, kind: input, shape index: {}]
  %s12 = inlined_call_operand.vmem [shape: f32[1,32], index: 12, kind: input, shape index: {}]
  %s13 = inlined_call_operand.vmem [shape: f32[1,32], index: 13, kind: input, shape index: {}]
  %s14 = inlined_call_operand.vmem [shape: f32[1,32], index: 14, kind: input, shape index: {}]
  %s15 = inlined_call_operand.vmem [shape: bf16[32,128], index: 15, kind: input, shape index: {}]
  %s16 = inlined_call_operand.vmem [shape: f32[1,128], index: 16, kind: input, shape index: {}]
  %s17 = inlined_call_operand.hbm [shape: f32[2,128], index: 17, kind: output, shape index: {}]
  %s18 = sld [smem:[#allocation0]]
  $region78: #{mlp_mixer_forward.5} parent=0
    _
  %s20 = ssub.s32 1, %s18
  %s21 = scalar_select 0, %s20, %s18
  $region1: #{mlp_mixer_forward.5} parent=0
    #allocation2 [shape = 'u8[1024]{0}', space=vmem, size = 0x400, scoped, tag = 'output window, operand 0, single buffered']
    #allocation3 [shape = 's32[1]{0}', space=sflag, size = 0x4, scoped, tag = 'scoped memory for mlp_mixer_forward.5']
    %22 = vsyncpa [#allocation3], 0
    // Predicated region
    $region2: #{mlp_mixer_forward.5} parent=1 // pred_check
      _
    $region3: #{mlp_mixer_forward.5} parent=1 // pred_check_branch
      %24 = sbr.rel (0) target = $region5
    $region4: #{mlp_mixer_forward.5} parent=1 // pred_region
      _
    $region5: #{mlp_mixer_forward.5} parent=1 // pred_fallthru
      _
    // Predicated region
    $region6: #{mlp_mixer_forward.5} parent=1 // pred_check
      _
    $region7: #{mlp_mixer_forward.5} parent=1 // pred_check_branch
      %26 = sbr.rel (0) target = $region9
    $region8: #{mlp_mixer_forward.5} parent=1 // pred_region
      _
    $region9: #{mlp_mixer_forward.5} parent=1 // pred_fallthru
      _
    // Predicated region
    $region10: #{mlp_mixer_forward.5} parent=1 // pred_check
      _
    $region11: #{mlp_mixer_forward.5} parent=1 // pred_check_branch
      %28 = sbr.rel (0) target = $region13
    $region12: #{mlp_mixer_forward.5} parent=1 // pred_region
      _
    $region13: #{mlp_mixer_forward.5} parent=1 // pred_fallthru
      _
    // Predicated region
    $region14: #{mlp_mixer_forward.5} parent=1 // pred_check
      _
    $region15: #{mlp_mixer_forward.5} parent=1 // pred_check_branch
      %30 = sbr.rel (0) target = $region17
    $region16: #{mlp_mixer_forward.5} parent=1 // pred_region
      _
    $region17: #{mlp_mixer_forward.5} parent=1 // pred_fallthru
      _
    // Predicated region
    $region18: #{mlp_mixer_forward.5} parent=1 // pred_check
      _
    $region19: #{mlp_mixer_forward.5} parent=1 // pred_check_branch
      %32 = sbr.rel (0) target = $region21
    $region20: #{mlp_mixer_forward.5} parent=1 // pred_region
      _
    $region21: #{mlp_mixer_forward.5} parent=1 // pred_fallthru
      _
    // Predicated region
    $region22: #{mlp_mixer_forward.5} parent=1 // pred_check
      _
    $region23: #{mlp_mixer_forward.5} parent=1 // pred_check_branch
      %34 = sbr.rel (0) target = $region25
    $region24: #{mlp_mixer_forward.5} parent=1 // pred_region
      _
    $region25: #{mlp_mixer_forward.5} parent=1 // pred_fallthru
      _
    // Predicated region
    $region26: #{mlp_mixer_forward.5} parent=1 // pred_check
      _
    $region27: #{mlp_mixer_forward.5} parent=1 // pred_check_branch
      %36 = sbr.rel (0) target = $region29
    $region28: #{mlp_mixer_forward.5} parent=1 // pred_region
      _
    $region29: #{mlp_mixer_forward.5} parent=1 // pred_fallthru
      _
    // Predicated region
    $region30: #{mlp_mixer_forward.5} parent=1 // pred_check
      _
    $region31: #{mlp_mixer_forward.5} parent=1 // pred_check_branch
      %38 = sbr.rel (0) target = $region33
    $region32: #{mlp_mixer_forward.5} parent=1 // pred_region
      _
    $region33: #{mlp_mixer_forward.5} parent=1 // pred_fallthru
      _
    // Predicated region
    $region34: #{mlp_mixer_forward.5} parent=1 // pred_check
      _
    $region35: #{mlp_mixer_forward.5} parent=1 // pred_check_branch
      %40 = sbr.rel (0) target = $region37
    $region36: #{mlp_mixer_forward.5} parent=1 // pred_region
      _
    $region37: #{mlp_mixer_forward.5} parent=1 // pred_fallthru
      _
    // Predicated region
    $region38: #{mlp_mixer_forward.5} parent=1 // pred_check
      _
    $region39: #{mlp_mixer_forward.5} parent=1 // pred_check_branch
      %42 = sbr.rel (0) target = $region41
    $region40: #{mlp_mixer_forward.5} parent=1 // pred_region
      _
    $region41: #{mlp_mixer_forward.5} parent=1 // pred_fallthru
      _
    // Predicated region
    $region42: #{mlp_mixer_forward.5} parent=1 // pred_check
      _
    $region43: #{mlp_mixer_forward.5} parent=1 // pred_check_branch
      %44 = sbr.rel (0) target = $region45
    $region44: #{mlp_mixer_forward.5} parent=1 // pred_region
      _
    $region45: #{mlp_mixer_forward.5} parent=1 // pred_fallthru
      _
    // Predicated region
    $region46: #{mlp_mixer_forward.5} parent=1 // pred_check
      _
    $region47: #{mlp_mixer_forward.5} parent=1 // pred_check_branch
      %46 = sbr.rel (0) target = $region49
    $region48: #{mlp_mixer_forward.5} parent=1 // pred_region
      _
    $region49: #{mlp_mixer_forward.5} parent=1 // pred_fallthru
      _
    // Predicated region
    $region50: #{mlp_mixer_forward.5} parent=1 // pred_check
      _
    $region51: #{mlp_mixer_forward.5} parent=1 // pred_check_branch
      %48 = sbr.rel (0) target = $region53
    $region52: #{mlp_mixer_forward.5} parent=1 // pred_region
      _
    $region53: #{mlp_mixer_forward.5} parent=1 // pred_fallthru
      _
    // Predicated region
    $region54: #{mlp_mixer_forward.5} parent=1 // pred_check
      _
    $region55: #{mlp_mixer_forward.5} parent=1 // pred_check_branch
      %50 = sbr.rel (0) target = $region57
    $region56: #{mlp_mixer_forward.5} parent=1 // pred_region
      _
    $region57: #{mlp_mixer_forward.5} parent=1 // pred_fallthru
      _
    // Predicated region
    $region58: #{mlp_mixer_forward.5} parent=1 // pred_check
      _
    $region59: #{mlp_mixer_forward.5} parent=1 // pred_check_branch
      %52 = sbr.rel (0) target = $region61
    $region60: #{mlp_mixer_forward.5} parent=1 // pred_region
      _
    $region61: #{mlp_mixer_forward.5} parent=1 // pred_fallthru
      _
    // Predicated region
    $region62: #{mlp_mixer_forward.5} parent=1 // pred_check
      _
    $region63: #{mlp_mixer_forward.5} parent=1 // pred_check_branch
      %54 = sbr.rel (0) target = $region65
    $region64: #{mlp_mixer_forward.5} parent=1 // pred_region
      _
    $region65: #{mlp_mixer_forward.5} parent=1 // pred_fallthru
      _
    // Predicated region
    $region66: #{mlp_mixer_forward.5} parent=1 // pred_check
      _
    $region67: #{mlp_mixer_forward.5} parent=1 // pred_check_branch
      %56 = sbr.rel (0) target = $region69
    $region68: #{mlp_mixer_forward.5} parent=1 // pred_region
      _
    $region69: #{mlp_mixer_forward.5} parent=1 // pred_fallthru
      _
    %v58 = vld [vmem:[%s0] sm:$0xff]
    %v59 = vld [vmem:[%s0 + $0x8] sm:$0xff]
    %v60 = vld [vmem:[%s0 + $0x10] sm:$0xff]
    %v61 = vld [vmem:[%s0 + $0x18] sm:$0xff]
    %v62 = vld [vmem:[%s4] sm:$0xff]
    %v63 = vld [vmem:[%s4 + $0x8] sm:$0xff]
    %v64 = vld [vmem:[%s6] sm:$0xff]
    %v65 = vld [vmem:[%s6 + $0x8] sm:$0xff]
    %v66 = vld [vmem:[%s3] sm:$0xf]
    %v67 = vld [vmem:[%s3 + $0x4] sm:$0xf]
    %v68 = vld [vmem:[%s5] sm:$0xf]
    %v69 = vld [vmem:[%s5 + $0x4] sm:$0xf]
    %v70 = vld [vmem:[%s9] sm:$0xf]
    %v71 = vld [vmem:[%s9 + $0x4] sm:$0xf]
    %v72 = vld [vmem:[%s9 + $0x8] sm:$0xf]
    %v73 = vld [vmem:[%s9 + $0xc] sm:$0xf]
    %v74 = vld [vmem:[%s10] sm:$0x1]
    %v75 = vld [vmem:[%s11] sm:$0xf]
    %v76 = vld [vmem:[%s11 + $0x4] sm:$0xf]
    %v77 = vld [vmem:[%s11 + $0x8] sm:$0xf]
    %v78 = vld [vmem:[%s11 + $0xc] sm:$0xf]
    %v79 = vld [vmem:[%s11 + $0x10] sm:$0xf]
    %v80 = vld [vmem:[%s11 + $0x14] sm:$0xf]
    %v81 = vld [vmem:[%s11 + $0x18] sm:$0xf]
    %v82 = vld [vmem:[%s11 + $0x1c] sm:$0xf]
    %v83 = vld [vmem:[%s11 + $0x20] sm:$0xf]
    %v84 = vld [vmem:[%s11 + $0x24] sm:$0xf]
    %v85 = vld [vmem:[%s11 + $0x28] sm:$0xf]
    %v86 = vld [vmem:[%s11 + $0x2c] sm:$0xf]
    %v87 = vld [vmem:[%s11 + $0x30] sm:$0xf]
    %v88 = vld [vmem:[%s11 + $0x34] sm:$0xf]
    %v89 = vld [vmem:[%s11 + $0x38] sm:$0xf]
    %v90 = vld [vmem:[%s11 + $0x3c] sm:$0xf]
    %v91 = vld [vmem:[%s12] sm:$0x1]
    %v92 = vld [vmem:[%s1] sm:$0x1]
    %v93 = vld [vmem:[%s2] sm:$0x1]
    %vm94 = vcmask 261120
    %v95 = vsel %vm94, %v58, 0.0
    %96 = vadd.xlane.f32.xlu0 %v95
    %v97 = vpop.xlane.xlu0 %96
    %v98 = vsel %vm94, %v59, 0.0
    %99 = vadd.xlane.f32.xlu0 %v98
    %v100 = vpop.xlane.xlu0 %99
    %v101 = vsel %vm94, %v60, 0.0
    %102 = vadd.xlane.f32.xlu0 %v101
    %v103 = vpop.xlane.xlu0 %102
    %v104 = vsel %vm94, %v61, 0.0
    %105 = vadd.xlane.f32.xlu0 %v104
    %v106 = vpop.xlane.xlu0 %105
    %v107 = vrcp.pop 32.0
    %v108 = vmul.f32 %v97, %v107
    %v109 = vmul.f32 %v100, %v107
    %v110 = vmul.f32 %v103, %v107
    %v111 = vmul.f32 %v106, %v107
    %v112 = vsub.f32 %v58, %v108
    %v113 = vsub.f32 %v59, %v109
    %v114 = vsub.f32 %v60, %v110
    %v115 = vsub.f32 %v61, %v111
    %v116 = vmul.f32 %v112, %v112
    %v117 = vmul.f32 %v113, %v113
    %v118 = vmul.f32 %v114, %v114
    %v119 = vmul.f32 %v115, %v115
    %v120 = vsel %vm94, %v116, 0.0
    %121 = vadd.xlane.f32.xlu0 %v120
    %v122 = vpop.xlane.xlu0 %121
    %v123 = vsel %vm94, %v117, 0.0
    %124 = vadd.xlane.f32.xlu0 %v123
    %v125 = vpop.xlane.xlu0 %124
    %v126 = vsel %vm94, %v118, 0.0
    %127 = vadd.xlane.f32.xlu0 %v126
    %v128 = vpop.xlane.xlu0 %127
    %v129 = vsel %vm94, %v119, 0.0
    %130 = vadd.xlane.f32.xlu0 %v129
    %v131 = vpop.xlane.xlu0 %130
    %v132 = vmul.f32 %v122, %v107
    %v133 = vmul.f32 %v125, %v107
    %v134 = vmul.f32 %v128, %v107
    %v135 = vmul.f32 %v131, %v107
    %v136 = vadd.f32 %v132, 1e-06
    %v137 = vadd.f32 %v133, 1e-06
    %v138 = vadd.f32 %v134, 1e-06
    %v139 = vadd.f32 %v135, 1e-06
    %v140 = vrsqrt.pop %v136
    %v141 = vrsqrt.pop %v137
    %v142 = vrsqrt.pop %v138
    %v143 = vrsqrt.pop %v139
    %v144 = vmul.f32 %v112, %v140
    %v145 = vmul.f32 %v113, %v141
    %v146 = vmul.f32 %v114, %v142
    %v147 = vmul.f32 %v115, %v143
    %v149 = vlaneseq
    %v150 = vshrl.u32 %v149, 7
    %v151 = vsub.s32 0, %v150
    %v152 = vrot.slane %v92, %v151
    %v154 = vmul.f32 %v144, %v152
    %v155 = vmul.f32 %v145, %v152
    %v156 = vmul.f32 %v146, %v152
    %v157 = vmul.f32 %v147, %v152
    %v159 = vlaneseq
    %v160 = vshrl.u32 %v159, 7
    %v161 = vsub.s32 0, %v160
    %v162 = vrot.slane %v93, %v161
    %v164 = vadd.f32 %v154, %v162
    %v165 = vadd.f32 %v155, %v162
    %v166 = vadd.f32 %v156, %v162
    %v167 = vadd.f32 %v157, %v162
    %v168 = vpack.c.bf16 %v165, %v164
    %v169 = vpack.c.bf16 %v167, %v166
    %171 = vset.pattern.permute.xlu0 0
    %172 = vperm.xlu0 %171, %v62
    %v173 = vpop.permute.xlu0 %172
    %176 = vset.pattern.permute.xlu0 0
    %177 = vperm.xlu0 %176, %v63
    %v178 = vpop.permute.xlu0 %177
    %v182 = vunpack.c.l.b16 %v66
    %v183 = vunpack.c.l.b16 %v67
    %v184 = vpack.c.b16 %v183, %v182
    %vm185 = vcmask 130048
    %v187 = vsel %vm185, %v184, 0
    %189 = vmatprep.subr.bf16.mxu0 0
    %190 = vmatpush1.bf16.msra.mxu0 0
    %191 = vmatprep.subr.bf16.mxu0 0
    %192 = vmatpush1.bf16.msra.mxu0 0
    %193 = vmatprep.subr.bf16.mxu0 0
    %194 = vmatpush1.bf16.msra.mxu0 0
    %195 = vmatprep.subr.bf16.mxu0 0
    %196 = vmatpush1.bf16.msra.mxu0 0
    %197 = vmatprep.subr.bf16.mxu0 0
    %198 = vmatpush1.bf16.msra.mxu0 0
    %199 = vmatprep.subr.bf16.mxu0 0
    %200 = vmatpush1.bf16.msra.mxu0 0
    %201 = vmatprep.subr.bf16.mxu0 0
    %202 = vmatpush1.bf16.msra.mxu0 0
    %203 = vmatprep.subr.bf16.mxu0 0
    %204 = vmatpush1.bf16.msra.mxu0 %v168
    %205 = vmatprep.subr.bf16.mxu0 0
    %206 = vmatpush2.bf16.msra.mxu0 0
    %207 = vmatprep.subr.bf16.mxu0 0
    %208 = vmatpush2.bf16.msra.mxu0 0
    %209 = vmatprep.subr.bf16.mxu0 0
    %210 = vmatpush2.bf16.msra.mxu0 0
    %211 = vmatprep.subr.bf16.mxu0 0
    %212 = vmatpush2.bf16.msra.mxu0 0
    %213 = vmatprep.subr.bf16.mxu0 0
    %214 = vmatpush2.bf16.msra.mxu0 0
    %215 = vmatprep.subr.bf16.mxu0 0
    %216 = vmatpush2.bf16.msra.mxu0 0
    %217 = vmatprep.subr.bf16.mxu0 0
    %218 = vmatpush2.bf16.msra.mxu0 0
    %219 = vmatprep.subr.bf16.mxu0 0
    %220 = vmatpush2.bf16.msra.mxu0 0
    %221 = vmatprep.mubr.bf16.mxu0 0
    %222 = vmatmul.mubr.bf16.gmra.mxu0 %v187
    %v223 = vpop.f32.mrf.mxu0
    %v224 = vadd.f32 %v173, %v223
    %v225 = vpop.f32.mrf.mxu0
    %v226 = vpop.f32.mrf.mxu0
    %v227 = vadd.f32 %v178, %v226
    %v228 = vpop.f32.mrf.mxu0
    %229 = vdwg.mxu0
    %230 = vmatprep.subr.bf16.mxu0 0
    %231 = vmatpush1.bf16.msra.mxu0 0
    %232 = vmatprep.subr.bf16.mxu0 0
    %233 = vmatpush1.bf16.msra.mxu0 0
    %234 = vmatprep.subr.bf16.mxu0 0
    %235 = vmatpush1.bf16.msra.mxu0 0
    %236 = vmatprep.subr.bf16.mxu0 0
    %237 = vmatpush1.bf16.msra.mxu0 0
    %238 = vmatprep.subr.bf16.mxu0 0
    %239 = vmatpush1.bf16.msra.mxu0 0
    %240 = vmatprep.subr.bf16.mxu0 0
    %241 = vmatpush1.bf16.msra.mxu0 0
    %242 = vmatprep.subr.bf16.mxu0 0
    %243 = vmatpush1.bf16.msra.mxu0 0
    %244 = vmatprep.subr.bf16.mxu0 0
    %245 = vmatpush1.bf16.msra.mxu0 %v169
    %246 = vmatprep.subr.bf16.mxu0 0
    %247 = vmatpush2.bf16.msra.mxu0 0
    %248 = vmatprep.subr.bf16.mxu0 0
    %249 = vmatpush2.bf16.msra.mxu0 0
    %250 = vmatprep.subr.bf16.mxu0 0
    %251 = vmatpush2.bf16.msra.mxu0 0
    %252 = vmatprep.subr.bf16.mxu0 0
    %253 = vmatpush2.bf16.msra.mxu0 0
    %254 = vmatprep.subr.bf16.mxu0 0
    %255 = vmatpush2.bf16.msra.mxu0 0
    %256 = vmatprep.subr.bf16.mxu0 0
    %257 = vmatpush2.bf16.msra.mxu0 0
    %258 = vmatprep.subr.bf16.mxu0 0
    %259 = vmatpush2.bf16.msra.mxu0 0
    %260 = vmatprep.subr.bf16.mxu0 0
    %261 = vmatpush2.bf16.msra.mxu0 0
    %262 = vmatprep.mubr.bf16.mxu0 0
    %263 = vmatmul.mubr.bf16.gmra.mxu0 %v187
    %v264 = vpop.f32.mrf.mxu0
    %v265 = vadd.f32 %v173, %v264
    %v266 = vpop.f32.mrf.mxu0
    %v267 = vpop.f32.mrf.mxu0
    %v268 = vadd.f32 %v178, %v267
    %v269 = vpop.f32.mrf.mxu0
    %270 = vdwg.mxu0
    %v271 = vmul.f32 %v224, 0.5
    %v272 = vmul.f32 %v227, 0.5
    %v273 = vmul.f32 %v265, 0.5
    %v274 = vmul.f32 %v268, 0.5
    %v275 = vmul.f32 %v224, 0.70710677
    %v276 = vmul.f32 %v227, 0.70710677
    %v277 = vmul.f32 %v265, 0.70710677
    %v278 = vmul.f32 %v268, 0.70710677
    %v279 = verf.f32.pop %v275
    %v280 = verf.f32.pop %v276
    %v281 = verf.f32.pop %v277
    %v282 = verf.f32.pop %v278
    %v283 = vadd.f32 %v279, 1.0
    %v284 = vadd.f32 %v280, 1.0
    %v285 = vadd.f32 %v281, 1.0
    %v286 = vadd.f32 %v282, 1.0
    %v287 = vmul.f32 %v271, %v283
    %v288 = vmul.f32 %v272, %v284
    %v289 = vmul.f32 %v273, %v285
    %v290 = vmul.f32 %v274, %v286
    %v291 = vpack.c.bf16 %v288, %v287
    %v292 = vpack.c.bf16 %v290, %v289
    %294 = vset.pattern.permute.xlu0 0
    %295 = vperm.xlu0 %294, %v64
    %v296 = vpop.permute.xlu0 %295
    %299 = vset.pattern.permute.xlu0 0
    %300 = vperm.xlu0 %299, %v65
    %v301 = vpop.permute.xlu0 %300
    %v305 = vunpack.c.l.b16 %v68
    %v306 = vunpack.c.l.b16 %v69
    %v307 = vpack.c.b16 %v306, %v305
    %v309 = vsel %vm185, %v307, 0
    %311 = vmatprep.subr.bf16.mxu0 0
    %312 = vmatpush1.bf16.msra.mxu0 0
    %313 = vmatprep.subr.bf16.mxu0 0
    %314 = vmatpush1.bf16.msra.mxu0 0
    %315 = vmatprep.subr.bf16.mxu0 0
    %316 = vmatpush1.bf16.msra.mxu0 0
    %317 = vmatprep.subr.bf16.mxu0 0
    %318 = vmatpush1.bf16.msra.mxu0 0
    %319 = vmatprep.subr.bf16.mxu0 0
    %320 = vmatpush1.bf16.msra.mxu0 0
    %321 = vmatprep.subr.bf16.mxu0 0
    %322 = vmatpush1.bf16.msra.mxu0 0
    %323 = vmatprep.subr.bf16.mxu0 0
    %324 = vmatpush1.bf16.msra.mxu0 0
    %325 = vmatprep.subr.bf16.mxu0 0
    %326 = vmatpush1.bf16.msra.mxu0 %v291
    %327 = vmatprep.subr.bf16.mxu0 0
    %328 = vmatpush2.bf16.msra.mxu0 0
    %329 = vmatprep.subr.bf16.mxu0 0
    %330 = vmatpush2.bf16.msra.mxu0 0
    %331 = vmatprep.subr.bf16.mxu0 0
    %332 = vmatpush2.bf16.msra.mxu0 0
    %333 = vmatprep.subr.bf16.mxu0 0
    %334 = vmatpush2.bf16.msra.mxu0 0
    %335 = vmatprep.subr.bf16.mxu0 0
    %336 = vmatpush2.bf16.msra.mxu0 0
    %337 = vmatprep.subr.bf16.mxu0 0
    %338 = vmatpush2.bf16.msra.mxu0 0
    %339 = vmatprep.subr.bf16.mxu0 0
    %340 = vmatpush2.bf16.msra.mxu0 0
    %341 = vmatprep.subr.bf16.mxu0 0
    %342 = vmatpush2.bf16.msra.mxu0 0
    %343 = vmatprep.mubr.bf16.mxu0 0
    %344 = vmatmul.mubr.bf16.gmra.mxu0 %v309
    %v345 = vpop.f32.mrf.mxu0
    %v346 = vadd.f32 %v296, %v345
    %v347 = vpop.f32.mrf.mxu0
    %v348 = vpop.f32.mrf.mxu0
    %v349 = vadd.f32 %v301, %v348
    %v350 = vpop.f32.mrf.mxu0
    %351 = vdwg.mxu0
    %352 = vmatprep.subr.bf16.mxu0 0
    %353 = vmatpush1.bf16.msra.mxu0 0
    %354 = vmatprep.subr.bf16.mxu0 0
    %355 = vmatpush1.bf16.msra.mxu0 0
    %356 = vmatprep.subr.bf16.mxu0 0
    %357 = vmatpush1.bf16.msra.mxu0 0
    %358 = vmatprep.subr.bf16.mxu0 0
    %359 = vmatpush1.bf16.msra.mxu0 0
    %360 = vmatprep.subr.bf16.mxu0 0
    %361 = vmatpush1.bf16.msra.mxu0 0
    %362 = vmatprep.subr.bf16.mxu0 0
    %363 = vmatpush1.bf16.msra.mxu0 0
    %364 = vmatprep.subr.bf16.mxu0 0
    %365 = vmatpush1.bf16.msra.mxu0 0
    %366 = vmatprep.subr.bf16.mxu0 0
    %367 = vmatpush1.bf16.msra.mxu0 %v292
    %368 = vmatprep.subr.bf16.mxu0 0
    %369 = vmatpush2.bf16.msra.mxu0 0
    %370 = vmatprep.subr.bf16.mxu0 0
    %371 = vmatpush2.bf16.msra.mxu0 0
    %372 = vmatprep.subr.bf16.mxu0 0
    %373 = vmatpush2.bf16.msra.mxu0 0
    %374 = vmatprep.subr.bf16.mxu0 0
    %375 = vmatpush2.bf16.msra.mxu0 0
    %376 = vmatprep.subr.bf16.mxu0 0
    %377 = vmatpush2.bf16.msra.mxu0 0
    %378 = vmatprep.subr.bf16.mxu0 0
    %379 = vmatpush2.bf16.msra.mxu0 0
    %380 = vmatprep.subr.bf16.mxu0 0
    %381 = vmatpush2.bf16.msra.mxu0 0
    %382 = vmatprep.subr.bf16.mxu0 0
    %383 = vmatpush2.bf16.msra.mxu0 0
    %384 = vmatprep.mubr.bf16.mxu0 0
    %385 = vmatmul.mubr.bf16.gmra.mxu0 %v309
    %v386 = vpop.f32.mrf.mxu0
    %v387 = vadd.f32 %v296, %v386
    %v388 = vpop.f32.mrf.mxu0
    %v389 = vpop.f32.mrf.mxu0
    %v390 = vadd.f32 %v301, %v389
    %v391 = vpop.f32.mrf.mxu0
    %392 = vdwg.mxu0
    %v393 = vadd.f32 %v58, %v346
    %v394 = vadd.f32 %v59, %v349
    %v395 = vadd.f32 %v60, %v387
    %v396 = vadd.f32 %v61, %v390
    %v397 = vld [vmem:[%s7] sm:$0x1]
    %v398 = vld [vmem:[%s8] sm:$0x1]
    %v399 = vsel %vm94, %v393, 0.0
    %400 = vadd.xlane.f32.xlu0 %v399
    %v401 = vpop.xlane.xlu0 %400
    %v402 = vsel %vm94, %v394, 0.0
    %403 = vadd.xlane.f32.xlu0 %v402
    %v404 = vpop.xlane.xlu0 %403
    %v405 = vsel %vm94, %v395, 0.0
    %406 = vadd.xlane.f32.xlu0 %v405
    %v407 = vpop.xlane.xlu0 %406
    %v408 = vsel %vm94, %v396, 0.0
    %409 = vadd.xlane.f32.xlu0 %v408
    %v410 = vpop.xlane.xlu0 %409
    %v411 = vmul.f32 %v401, %v107
    %v412 = vmul.f32 %v404, %v107
    %v413 = vmul.f32 %v407, %v107
    %v414 = vmul.f32 %v410, %v107
    %v415 = vsub.f32 %v393, %v411
    %v416 = vsub.f32 %v394, %v412
    %v417 = vsub.f32 %v395, %v413
    %v418 = vsub.f32 %v396, %v414
    %v419 = vmul.f32 %v415, %v415
    %v420 = vmul.f32 %v416, %v416
    %v421 = vmul.f32 %v417, %v417
    %v422 = vmul.f32 %v418, %v418
    %v423 = vsel %vm94, %v419, 0.0
    %424 = vadd.xlane.f32.xlu0 %v423
    %v425 = vpop.xlane.xlu0 %424
    %v426 = vsel %vm94, %v420, 0.0
    %427 = vadd.xlane.f32.xlu0 %v426
    %v428 = vpop.xlane.xlu0 %427
    %v429 = vsel %vm94, %v421, 0.0
    %430 = vadd.xlane.f32.xlu0 %v429
    %v431 = vpop.xlane.xlu0 %430
    %v432 = vsel %vm94, %v422, 0.0
    %433 = vadd.xlane.f32.xlu0 %v432
    %v434 = vpop.xlane.xlu0 %433
    %v435 = vmul.f32 %v425, %v107
    %v436 = vmul.f32 %v428, %v107
    %v437 = vmul.f32 %v431, %v107
    %v438 = vmul.f32 %v434, %v107
    %v439 = vadd.f32 %v435, 1e-06
    %v440 = vadd.f32 %v436, 1e-06
    %v441 = vadd.f32 %v437, 1e-06
    %v442 = vadd.f32 %v438, 1e-06
    %v443 = vrsqrt.pop %v439
    %v444 = vrsqrt.pop %v440
    %v445 = vrsqrt.pop %v441
    %v446 = vrsqrt.pop %v442
    %v447 = vmul.f32 %v415, %v443
    %v448 = vmul.f32 %v416, %v444
    %v449 = vmul.f32 %v417, %v445
    %v450 = vmul.f32 %v418, %v446
    %v452 = vlaneseq
    %v453 = vshrl.u32 %v452, 7
    %v454 = vsub.s32 0, %v453
    %v455 = vrot.slane %v397, %v454
    %v457 = vmul.f32 %v447, %v455
    %v458 = vmul.f32 %v448, %v455
    %v459 = vmul.f32 %v449, %v455
    %v460 = vmul.f32 %v450, %v455
    %v462 = vlaneseq
    %v463 = vshrl.u32 %v462, 7
    %v464 = vsub.s32 0, %v463
    %v465 = vrot.slane %v398, %v464
    %v467 = vadd.f32 %v457, %v465
    %v468 = vadd.f32 %v458, %v465
    %v469 = vadd.f32 %v459, %v465
    %v470 = vadd.f32 %v460, %v465
    %v471 = vpack.c.bf16 %v468, %v467
    %v472 = vpack.c.bf16 %v470, %v469
    %v474 = vlaneseq
    %v475 = vshrl.u32 %v474, 7
    %v476 = vsub.s32 0, %v475
    %v477 = vrot.slane %v74, %v476
    %v483 = vunpack.c.l.b16 %v70
    %v484 = vunpack.c.l.b16 %v71
    %v485 = vunpack.c.l.b16 %v72
    %v486 = vunpack.c.l.b16 %v73
    %v487 = vpack.c.b16 %v484, %v483
    %v488 = vpack.c.b16 %v486, %v485
    %v492 = vsel %vm94, %v471, 0
    %v495 = vsel %vm94, %v472, 0
    %497 = vmatprep.subr.bf16.mxu0 0
    %498 = vmatpush1.bf16.msra.mxu0 0
    %499 = vmatprep.subr.bf16.mxu0 0
    %500 = vmatpush1.bf16.msra.mxu0 0
    %501 = vmatprep.subr.bf16.mxu0 0
    %502 = vmatpush1.bf16.msra.mxu0 0
    %503 = vmatprep.subr.bf16.mxu0 0
    %504 = vmatpush1.bf16.msra.mxu0 0
    %505 = vmatprep.subr.bf16.mxu0 0
    %506 = vmatpush1.bf16.msra.mxu0 0
    %507 = vmatprep.subr.bf16.mxu0 0
    %508 = vmatpush1.bf16.msra.mxu0 0
    %509 = vmatprep.subr.bf16.mxu0 0
    %510 = vmatpush1.bf16.msra.mxu0 %v488
    %511 = vmatprep.subr.bf16.mxu0 0
    %512 = vmatpush1.bf16.msra.mxu0 %v487
    %513 = vmatprep.subr.bf16.mxu0 0
    %514 = vmatpush2.bf16.msra.mxu0 0
    %515 = vmatprep.subr.bf16.mxu0 0
    %516 = vmatpush2.bf16.msra.mxu0 0
    %517 = vmatprep.subr.bf16.mxu0 0
    %518 = vmatpush2.bf16.msra.mxu0 0
    %519 = vmatprep.subr.bf16.mxu0 0
    %520 = vmatpush2.bf16.msra.mxu0 0
    %521 = vmatprep.subr.bf16.mxu0 0
    %522 = vmatpush2.bf16.msra.mxu0 0
    %523 = vmatprep.subr.bf16.mxu0 0
    %524 = vmatpush2.bf16.msra.mxu0 0
    %525 = vmatprep.subr.bf16.mxu0 0
    %526 = vmatpush2.bf16.msra.mxu0 0
    %527 = vmatprep.subr.bf16.mxu0 0
    %528 = vmatpush2.bf16.msra.mxu0 0
    %529 = vmatprep.mubr.bf16.mxu0 0
    %530 = vmatmul.mubr.bf16.gmra.mxu0 %v492
    %v531 = vpop.f32.mrf.mxu0
    %v532 = vadd.f32 %v477, %v531
    %v533 = vpop.f32.mrf.mxu0
    %v534 = vpop.f32.mrf.mxu0
    %v535 = vadd.f32 %v477, %v534
    %v536 = vpop.f32.mrf.mxu0
    %537 = vmatprep.mubr.bf16.mxu0 0
    %538 = vmatmul.mubr.bf16.gmra.mxu0 %v495
    %v539 = vpop.f32.mrf.mxu0
    %v540 = vadd.f32 %v477, %v539
    %v541 = vpop.f32.mrf.mxu0
    %v542 = vpop.f32.mrf.mxu0
    %v543 = vadd.f32 %v477, %v542
    %v544 = vpop.f32.mrf.mxu0
    %545 = vdwg.mxu0
    %v546 = vmul.f32 %v532, 0.5
    %v547 = vmul.f32 %v535, 0.5
    %v548 = vmul.f32 %v540, 0.5
    %v549 = vmul.f32 %v543, 0.5
    %v550 = vmul.f32 %v532, 0.70710677
    %v551 = vmul.f32 %v535, 0.70710677
    %v552 = vmul.f32 %v540, 0.70710677
    %v553 = vmul.f32 %v543, 0.70710677
    %v554 = verf.f32.pop %v550
    %v555 = verf.f32.pop %v551
    %v556 = verf.f32.pop %v552
    %v557 = verf.f32.pop %v553
    %v558 = vadd.f32 %v554, 1.0
    %v559 = vadd.f32 %v555, 1.0
    %v560 = vadd.f32 %v556, 1.0
    %v561 = vadd.f32 %v557, 1.0
    %v562 = vmul.f32 %v546, %v558
    %v563 = vmul.f32 %v547, %v559
    %v564 = vmul.f32 %v548, %v560
    %v565 = vmul.f32 %v549, %v561
    %v566 = vpack.c.bf16 %v563, %v562
    %v567 = vpack.c.bf16 %v565, %v564
    %v569 = vlaneseq
    %v570 = vshrl.u32 %v569, 7
    %v571 = vsub.s32 0, %v570
    %v572 = vrot.slane %v91, %v571
    %v590 = vunpack.c.l.b16 %v75
    %v591 = vunpack.c.l.b16 %v76
    %v592 = vunpack.c.l.b16 %v77
    %v593 = vunpack.c.l.b16 %v78
    %v594 = vunpack.c.l.b16 %v79
    %v595 = vunpack.c.l.b16 %v80
    %v596 = vunpack.c.l.b16 %v81
    %v597 = vunpack.c.l.b16 %v82
    %v598 = vunpack.c.l.b16 %v83
    %v599 = vunpack.c.l.b16 %v84
    %v600 = vunpack.c.l.b16 %v85
    %v601 = vunpack.c.l.b16 %v86
    %v602 = vunpack.c.l.b16 %v87
    %v603 = vunpack.c.l.b16 %v88
    %v604 = vunpack.c.l.b16 %v89
    %v605 = vunpack.c.l.b16 %v90
    %v606 = vpack.c.b16 %v591, %v590
    %v607 = vpack.c.b16 %v593, %v592
    %v608 = vpack.c.b16 %v595, %v594
    %v609 = vpack.c.b16 %v597, %v596
    %v610 = vpack.c.b16 %v599, %v598
    %v611 = vpack.c.b16 %v601, %v600
    %v612 = vpack.c.b16 %v603, %v602
    %v613 = vpack.c.b16 %v605, %v604
    %622 = vmatprep.subr.bf16.mxu0 0
    %623 = vmatpush1.bf16.msra.mxu0 %v613
    %624 = vmatprep.subr.bf16.mxu0 0
    %625 = vmatpush1.bf16.msra.mxu0 %v612
    %626 = vmatprep.subr.bf16.mxu0 0
    %627 = vmatpush1.bf16.msra.mxu0 %v611
    %628 = vmatprep.subr.bf16.mxu0 0
    %629 = vmatpush1.bf16.msra.mxu0 %v610
    %630 = vmatprep.subr.bf16.mxu0 0
    %631 = vmatpush1.bf16.msra.mxu0 %v609
    %632 = vmatprep.subr.bf16.mxu0 0
    %633 = vmatpush1.bf16.msra.mxu0 %v608
    %634 = vmatprep.subr.bf16.mxu0 0
    %635 = vmatpush1.bf16.msra.mxu0 %v607
    %636 = vmatprep.subr.bf16.mxu0 0
    %637 = vmatpush1.bf16.msra.mxu0 %v606
    %638 = vmatprep.subr.bf16.mxu0 0
    %639 = vmatpush2.bf16.msra.mxu0 0
    %640 = vmatprep.subr.bf16.mxu0 0
    %641 = vmatpush2.bf16.msra.mxu0 0
    %642 = vmatprep.subr.bf16.mxu0 0
    %643 = vmatpush2.bf16.msra.mxu0 0
    %644 = vmatprep.subr.bf16.mxu0 0
    %645 = vmatpush2.bf16.msra.mxu0 0
    %646 = vmatprep.subr.bf16.mxu0 0
    %647 = vmatpush2.bf16.msra.mxu0 0
    %648 = vmatprep.subr.bf16.mxu0 0
    %649 = vmatpush2.bf16.msra.mxu0 0
    %650 = vmatprep.subr.bf16.mxu0 0
    %651 = vmatpush2.bf16.msra.mxu0 0
    %652 = vmatprep.subr.bf16.mxu0 0
    %653 = vmatpush2.bf16.msra.mxu0 0
    %654 = vmatprep.mubr.bf16.mxu0 0
    %655 = vmatmul.mubr.bf16.gmra.mxu0 %v566
    %v656 = vpop.f32.mrf.mxu0
    %v657 = vadd.f32 %v572, %v656
    %v658 = vpop.f32.mrf.mxu0
    %v659 = vpop.f32.mrf.mxu0
    %v660 = vadd.f32 %v572, %v659
    %v661 = vpop.f32.mrf.mxu0
    %662 = vmatprep.mubr.bf16.mxu0 0
    %663 = vmatmul.mubr.bf16.gmra.mxu0 %v567
    %v664 = vpop.f32.mrf.mxu0
    %v665 = vadd.f32 %v572, %v664
    %v666 = vpop.f32.mrf.mxu0
    %v667 = vpop.f32.mrf.mxu0
    %v668 = vadd.f32 %v572, %v667
    %v669 = vpop.f32.mrf.mxu0
    %670 = vdwg.mxu0
    %v671 = vadd.f32 %v393, %v657
    %v672 = vadd.f32 %v394, %v660
    %v673 = vadd.f32 %v395, %v665
    %v674 = vadd.f32 %v396, %v668
    %v675 = vld [vmem:[%s13] sm:$0x1]
    %v676 = vld [vmem:[%s14] sm:$0x1]
    %v677 = vsel %vm94, %v671, 0.0
    %678 = vadd.xlane.f32.xlu0 %v677
    %v679 = vpop.xlane.xlu0 %678
    %v680 = vsel %vm94, %v672, 0.0
    %681 = vadd.xlane.f32.xlu0 %v680
    %v682 = vpop.xlane.xlu0 %681
    %v683 = vsel %vm94, %v673, 0.0
    %684 = vadd.xlane.f32.xlu0 %v683
    %v685 = vpop.xlane.xlu0 %684
    %v686 = vsel %vm94, %v674, 0.0
    %687 = vadd.xlane.f32.xlu0 %v686
    %v688 = vpop.xlane.xlu0 %687
    %v689 = vmul.f32 %v679, %v107
    %v690 = vmul.f32 %v682, %v107
    %v691 = vmul.f32 %v685, %v107
    %v692 = vmul.f32 %v688, %v107
    %v693 = vsub.f32 %v671, %v689
    %v694 = vsub.f32 %v672, %v690
    %v695 = vsub.f32 %v673, %v691
    %v696 = vsub.f32 %v674, %v692
    %v697 = vmul.f32 %v693, %v693
    %v698 = vmul.f32 %v694, %v694
    %v699 = vmul.f32 %v695, %v695
    %v700 = vmul.f32 %v696, %v696
    %v701 = vsel %vm94, %v697, 0.0
    %702 = vadd.xlane.f32.xlu0 %v701
    %v703 = vpop.xlane.xlu0 %702
    %v704 = vsel %vm94, %v698, 0.0
    %705 = vadd.xlane.f32.xlu0 %v704
    %v706 = vpop.xlane.xlu0 %705
    %v707 = vsel %vm94, %v699, 0.0
    %708 = vadd.xlane.f32.xlu0 %v707
    %v709 = vpop.xlane.xlu0 %708
    %v710 = vsel %vm94, %v700, 0.0
    %711 = vadd.xlane.f32.xlu0 %v710
    %v712 = vpop.xlane.xlu0 %711
    %v713 = vmul.f32 %v703, %v107
    %v714 = vmul.f32 %v706, %v107
    %v715 = vmul.f32 %v709, %v107
    %v716 = vmul.f32 %v712, %v107
    %v717 = vadd.f32 %v713, 1e-06
    %v718 = vadd.f32 %v714, 1e-06
    %v719 = vadd.f32 %v715, 1e-06
    %v720 = vadd.f32 %v716, 1e-06
    %v721 = vrsqrt.pop %v717
    %v722 = vrsqrt.pop %v718
    %v723 = vrsqrt.pop %v719
    %v724 = vrsqrt.pop %v720
    %v725 = vmul.f32 %v693, %v721
    %v726 = vmul.f32 %v694, %v722
    %v727 = vmul.f32 %v695, %v723
    %v728 = vmul.f32 %v696, %v724
    %v730 = vlaneseq
    %v731 = vshrl.u32 %v730, 7
    %v732 = vsub.s32 0, %v731
    %v733 = vrot.slane %v675, %v732
    %v735 = vmul.f32 %v725, %v733
    %v736 = vmul.f32 %v726, %v733
    %v737 = vmul.f32 %v727, %v733
    %v738 = vmul.f32 %v728, %v733
    %v740 = vlaneseq
    %v741 = vshrl.u32 %v740, 7
    %v742 = vsub.s32 0, %v741
    %v743 = vrot.slane %v676, %v742
    %v745 = vadd.f32 %v735, %v743
    %v746 = vadd.f32 %v736, %v743
    %v747 = vadd.f32 %v737, %v743
    %v748 = vadd.f32 %v738, %v743
    %v749 = vsel %vm94, %v745, 0.0
    %v750 = vsel %vm94, %v746, 0.0
    %v751 = vadd.f32 %v749, %v750
    %v752 = vrot.slane %v751, 4
    %v753 = vadd.f32 %v751, %v752
    %v754 = vrot.slane %v753, 2
    %v755 = vadd.f32 %v753, %v754
    %v756 = vrot.slane %v755, 1
    %v757 = vadd.f32 %v755, %v756
    %v758 = vsel %vm94, %v747, 0.0
    %v759 = vsel %vm94, %v748, 0.0
    %v760 = vadd.f32 %v758, %v759
    %v761 = vrot.slane %v760, 4
    %v762 = vadd.f32 %v760, %v761
    %v763 = vrot.slane %v762, 2
    %v764 = vadd.f32 %v762, %v763
    %v765 = vrot.slane %v764, 1
    %v766 = vadd.f32 %v764, %v765
    %v767 = vrcp.pop 16.0
    %v768 = vmul.f32 %v757, %v767
    %v769 = vmul.f32 %v766, %v767
    %v770 = vpack.c.bf16 %v768, %v768
    %v771 = vpack.c.bf16 %v769, %v769
    %v772 = vld [vmem:[%s15] sm:$0xf]
    %v773 = vld [vmem:[%s15 + $0x4] sm:$0xf]
    %v774 = vld [vmem:[%s15 + $0x8] sm:$0xf]
    %v775 = vld [vmem:[%s15 + $0xc] sm:$0xf]
    %v776 = vld [vmem:[%s16] sm:$0x1]
    %v778 = vlaneseq
    %v779 = vshrl.u32 %v778, 7
    %v780 = vsub.s32 0, %v779
    %v781 = vrot.slane %v776, %v780
    %v785 = vunpack.c.l.b16 %v770
    %v786 = vunpack.c.l.b16 %v771
    %vm787 = vcmask 1041409
    %v788 = vsel %vm787, %v786, %v785
    %v789 = vpack.c.b16 %v788, %v788
    %v794 = vunpack.c.l.b16 %v772
    %v795 = vunpack.c.l.b16 %v773
    %v796 = vunpack.c.l.b16 %v774
    %v797 = vunpack.c.l.b16 %v775
    %v798 = vpack.c.b16 %v795, %v794
    %v799 = vpack.c.b16 %v797, %v796
    %v803 = vsel %vm94, %v789, 0
    %805 = vmatprep.subr.bf16.mxu0 0
    %806 = vmatpush1.bf16.msra.mxu0 0
    %807 = vmatprep.subr.bf16.mxu0 0
    %808 = vmatpush1.bf16.msra.mxu0 0
    %809 = vmatprep.subr.bf16.mxu0 0
    %810 = vmatpush1.bf16.msra.mxu0 0
    %811 = vmatprep.subr.bf16.mxu0 0
    %812 = vmatpush1.bf16.msra.mxu0 0
    %813 = vmatprep.subr.bf16.mxu0 0
    %814 = vmatpush1.bf16.msra.mxu0 0
    %815 = vmatprep.subr.bf16.mxu0 0
    %816 = vmatpush1.bf16.msra.mxu0 0
    %817 = vmatprep.subr.bf16.mxu0 0
    %818 = vmatpush1.bf16.msra.mxu0 %v799
    %819 = vmatprep.subr.bf16.mxu0 0
    %820 = vmatpush1.bf16.msra.mxu0 %v798
    %821 = vmatprep.subr.bf16.mxu0 0
    %822 = vmatpush2.bf16.msra.mxu0 0
    %823 = vmatprep.subr.bf16.mxu0 0
    %824 = vmatpush2.bf16.msra.mxu0 0
    %825 = vmatprep.subr.bf16.mxu0 0
    %826 = vmatpush2.bf16.msra.mxu0 0
    %827 = vmatprep.subr.bf16.mxu0 0
    %828 = vmatpush2.bf16.msra.mxu0 0
    %829 = vmatprep.subr.bf16.mxu0 0
    %830 = vmatpush2.bf16.msra.mxu0 0
    %831 = vmatprep.subr.bf16.mxu0 0
    %832 = vmatpush2.bf16.msra.mxu0 0
    %833 = vmatprep.subr.bf16.mxu0 0
    %834 = vmatpush2.bf16.msra.mxu0 0
    %835 = vmatprep.subr.bf16.mxu0 0
    %836 = vmatpush2.bf16.msra.mxu0 0
    %837 = vmatprep.mubr.bf16.mxu0 0
    %838 = vmatmul.mubr.bf16.gmra.mxu0 %v803
    %v839 = vpop.f32.mrf.mxu0
    %v840 = vadd.f32 %v781, %v839
    %v841 = vpop.f32.mrf.mxu0
    %v842 = vpop.f32.mrf.mxu0
    %v843 = vpop.f32.mrf.mxu0
    %844 = vdwg.mxu0
    %845 = vst [vmem:[#allocation2] sm:$0x3] %v840
    // Predicated region
    $region70: #{mlp_mixer_forward.5} parent=1 // pred_check
      _
    $region71: #{mlp_mixer_forward.5} parent=1 // pred_check_branch
      %847 = sbr.rel (0) target = $region73
    $region72: #{mlp_mixer_forward.5} parent=1 // pred_region
      %s849 = ssub.s32 32, 32
      %850 = vsyncadd [#allocation3], %s849
      %s852 = sshll.u32 [#allocation2], 4
      %s853 = int_to_ptr.vmem [resolvable:$true] %s852
      %855 = dma.vmem_to_hbm [thread:$0]  %s853, 32, %s17, [#allocation3]
    $region73: #{mlp_mixer_forward.5} parent=1 // pred_fallthru
      _
    // Predicated region
    $region74: #{mlp_mixer_forward.5} parent=1 // pred_check
      _
    $region75: #{mlp_mixer_forward.5} parent=1 // pred_check_branch
      %857 = sbr.rel (0) target = $region77
    $region76: #{mlp_mixer_forward.5} parent=1 // pred_region
      %858 = dma.done [#allocation3], 32
    $region77: #{mlp_mixer_forward.5} parent=1 // pred_fallthru
      _
    %859 = vsyncpa [#allocation3], 1

// kernel: mlp_mixer_forward.3
$region0: #{mlp_mixer_forward.3}
  #allocation0 [shape = 'u32[]', space=smem, size = 0x4, offset = 0x4, fixed_abs, tag = 'smem constant byte address 0x4 - core index']
  #allocation1 [shape = 'u32[144,128]{1,0:T(1,128)}', space=vmem, size = 0x12000, scoped, tag = 'internal scratch']
  %s0 = inlined_call_operand.vmem [shape: bf16[2,16,48], index: 0, kind: input, shape index: {}]
  %s1 = inlined_call_operand.vmem [shape: bf16[48,32], index: 1, kind: input, shape index: {}]
  %s2 = inlined_call_operand.vmem [shape: f32[1,32], index: 2, kind: input, shape index: {}]
  %s3 = inlined_call_operand.vmem [shape: f32[2,16,32], index: 3, kind: output, shape index: {}]
  %s4 = sld [smem:[#allocation0]]
  $region22: #{mlp_mixer_forward.3} parent=0
    _
  %s6 = ssub.s32 1, %s4
  %s7 = scalar_select 0, %s6, %s4
  // Predicated region
  $region2: #{mlp_mixer_forward.3} parent=0 // pred_check
    _
  $region3: #{mlp_mixer_forward.3} parent=0 // pred_check_branch
    %9 = sbr.rel (0) target = $region5
  $region4: #{mlp_mixer_forward.3} parent=0 // pred_region
    _
  $region5: #{mlp_mixer_forward.3} parent=0 // pred_fallthru
    _
  // Predicated region
  $region6: #{mlp_mixer_forward.3} parent=0 // pred_check
    _
  $region7: #{mlp_mixer_forward.3} parent=0 // pred_check_branch
    %11 = sbr.rel (0) target = $region9
  $region8: #{mlp_mixer_forward.3} parent=0 // pred_region
    _
  $region9: #{mlp_mixer_forward.3} parent=0 // pred_fallthru
    _
  // Predicated region
  $region10: #{mlp_mixer_forward.3} parent=0 // pred_check
    _
  $region11: #{mlp_mixer_forward.3} parent=0 // pred_check_branch
    %13 = sbr.rel (0) target = $region13
  $region12: #{mlp_mixer_forward.3} parent=0 // pred_region
    _
  $region13: #{mlp_mixer_forward.3} parent=0 // pred_fallthru
    _
  %v15 = vld [vmem:[%s0] sm:$0xf]
  %v16 = vld [vmem:[%s0 + $0x4] sm:$0xf]
  %v17 = vld [vmem:[%s0 + $0x8] sm:$0xf]
  %v18 = vld [vmem:[%s0 + $0xc] sm:$0xf]
  %v19 = vld [vmem:[%s1] sm:$0xf]
  %v20 = vld [vmem:[%s1 + $0x4] sm:$0xf]
  %v21 = vld [vmem:[%s1 + $0x8] sm:$0xf]
  %v22 = vld [vmem:[%s1 + $0xc] sm:$0xf]
  %v23 = vld [vmem:[%s1 + $0x10] sm:$0xf]
  %v24 = vld [vmem:[%s1 + $0x14] sm:$0xf]
  %v25 = vld [vmem:[%s2] sm:$0x1]
  %v27 = vlaneseq
  %v28 = vshrl.u32 %v27, 7
  %v29 = vsub.s32 0, %v28
  %v30 = vrot.slane %v25, %v29
  %v36 = vunpack.c.l.b16 %v15
  %v37 = vunpack.c.l.b16 %v16
  %v38 = vunpack.c.l.b16 %v17
  %v39 = vunpack.c.l.b16 %v18
  %v40 = vpack.c.b16 %v37, %v36
  %v41 = vpack.c.b16 %v39, %v38
  %v48 = vunpack.c.l.b16 %v19
  %v49 = vunpack.c.l.b16 %v20
  %v50 = vunpack.c.l.b16 %v21
  %v51 = vunpack.c.l.b16 %v22
  %v52 = vunpack.c.l.b16 %v23
  %v53 = vunpack.c.l.b16 %v24
  %v54 = vpack.c.b16 %v49, %v48
  %v55 = vpack.c.b16 %v51, %v50
  %v56 = vpack.c.b16 %v53, %v52
  %vm60 = vcmask 392192
  %v62 = vsel %vm60, %v40, 0
  %v65 = vsel %vm60, %v41, 0
  %67 = vmatprep.subr.bf16.mxu0 0
  %68 = vmatpush1.bf16.msra.mxu0 0
  %69 = vmatprep.subr.bf16.mxu0 0
  %70 = vmatpush1.bf16.msra.mxu0 0
  %71 = vmatprep.subr.bf16.mxu0 0
  %72 = vmatpush1.bf16.msra.mxu0 0
  %73 = vmatprep.subr.bf16.mxu0 0
  %74 = vmatpush1.bf16.msra.mxu0 0
  %75 = vmatprep.subr.bf16.mxu0 0
  %76 = vmatpush1.bf16.msra.mxu0 0
  %77 = vmatprep.subr.bf16.mxu0 0
  %78 = vmatpush1.bf16.msra.mxu0 %v56
  %79 = vmatprep.subr.bf16.mxu0 0
  %80 = vmatpush1.bf16.msra.mxu0 %v55
  %81 = vmatprep.subr.bf16.mxu0 0
  %82 = vmatpush1.bf16.msra.mxu0 %v54
  %83 = vmatprep.subr.bf16.mxu0 0
  %84 = vmatpush2.bf16.msra.mxu0 0
  %85 = vmatprep.subr.bf16.mxu0 0
  %86 = vmatpush2.bf16.msra.mxu0 0
  %87 = vmatprep.subr.bf16.mxu0 0
  %88 = vmatpush2.bf16.msra.mxu0 0
  %89 = vmatprep.subr.bf16.mxu0 0
  %90 = vmatpush2.bf16.msra.mxu0 0
  %91 = vmatprep.subr.bf16.mxu0 0
  %92 = vmatpush2.bf16.msra.mxu0 0
  %93 = vmatprep.subr.bf16.mxu0 0
  %94 = vmatpush2.bf16.msra.mxu0 0
  %95 = vmatprep.subr.bf16.mxu0 0
  %96 = vmatpush2.bf16.msra.mxu0 0
  %97 = vmatprep.subr.bf16.mxu0 0
  %98 = vmatpush2.bf16.msra.mxu0 0
  %99 = vmatprep.mubr.bf16.mxu0 0
  %100 = vmatmul.mubr.bf16.gmra.mxu0 %v62
  %v101 = vpop.f32.mrf.mxu0
  %v102 = vadd.f32 %v30, %v101
  %v103 = vpop.f32.mrf.mxu0
  %v104 = vpop.f32.mrf.mxu0
  %v105 = vadd.f32 %v30, %v104
  %v106 = vpop.f32.mrf.mxu0
  %107 = vmatprep.mubr.bf16.mxu0 0
  %108 = vmatmul.mubr.bf16.gmra.mxu0 %v65
  %v109 = vpop.f32.mrf.mxu0
  %v110 = vadd.f32 %v30, %v109
  %v111 = vpop.f32.mrf.mxu0
  %v112 = vpop.f32.mrf.mxu0
  %v113 = vadd.f32 %v30, %v112
  %v114 = vpop.f32.mrf.mxu0
  %115 = vdwg.mxu0
  %vm116 = vcmask 261120
  %117 = vst.msk [vmem:[%s3] sm:$0xff] %vm116, %v102
  %118 = vst.msk [vmem:[%s3 + $0x8] sm:$0xff] %vm116, %v105
  %119 = vst.msk [vmem:[%s3 + $0x10] sm:$0xff] %vm116, %v110
  %120 = vst.msk [vmem:[%s3 + $0x18] sm:$0xff] %vm116, %v113
  // Predicated region
  $region14: #{mlp_mixer_forward.3} parent=0 // pred_check
    _
  $region15: #{mlp_mixer_forward.3} parent=0 // pred_check_branch
    %122 = sbr.rel (0) target = $region17
  $region16: #{mlp_mixer_forward.3} parent=0 // pred_region
    _
  $region17: #{mlp_mixer_forward.3} parent=0 // pred_fallthru
    _
  // Predicated region
  $region18: #{mlp_mixer_forward.3} parent=0 // pred_check
    _
  $region19: #{mlp_mixer_forward.3} parent=0 // pred_check_branch
    %124 = sbr.rel (0) target = $region21
  $region20: #{mlp_mixer_forward.3} parent=0 // pred_region
    _
  $region21: #{mlp_mixer_forward.3} parent=0 // pred_fallthru
    _

// kernel: mlp_mixer_forward.5
$region0: #{mlp_mixer_forward.5}
  #allocation0 [shape = 'u32[]', space=smem, size = 0x4, offset = 0x4, fixed_abs, tag = 'smem constant byte address 0x4 - core index']
  #allocation1 [shape = 'u32[144,128]{1,0:T(1,128)}', space=vmem, size = 0x12000, scoped, tag = 'internal scratch']
  %s0 = inlined_call_operand.vmem [shape: f32[2,16,32], index: 0, kind: input, shape index: {}]
  %s1 = inlined_call_operand.vmem [shape: f32[1,32], index: 1, kind: input, shape index: {}]
  %s2 = inlined_call_operand.vmem [shape: f32[1,32], index: 2, kind: input, shape index: {}]
  %s3 = inlined_call_operand.vmem [shape: bf16[16,16], index: 3, kind: input, shape index: {}]
  %s4 = inlined_call_operand.vmem [shape: f32[16,1], index: 4, kind: input, shape index: {}]
  %s5 = inlined_call_operand.vmem [shape: bf16[16,16], index: 5, kind: input, shape index: {}]
  %s6 = inlined_call_operand.vmem [shape: f32[16,1], index: 6, kind: input, shape index: {}]
  %s7 = inlined_call_operand.vmem [shape: f32[1,32], index: 7, kind: input, shape index: {}]
  %s8 = inlined_call_operand.vmem [shape: f32[1,32], index: 8, kind: input, shape index: {}]
  %s9 = inlined_call_operand.vmem [shape: bf16[32,128], index: 9, kind: input, shape index: {}]
  %s10 = inlined_call_operand.vmem [shape: f32[1,128], index: 10, kind: input, shape index: {}]
  %s11 = inlined_call_operand.vmem [shape: bf16[128,32], index: 11, kind: input, shape index: {}]
  %s12 = inlined_call_operand.vmem [shape: f32[1,32], index: 12, kind: input, shape index: {}]
  %s13 = inlined_call_operand.vmem [shape: f32[1,32], index: 13, kind: input, shape index: {}]
  %s14 = inlined_call_operand.vmem [shape: f32[1,32], index: 14, kind: input, shape index: {}]
  %s15 = inlined_call_operand.vmem [shape: bf16[32,128], index: 15, kind: input, shape index: {}]
  %s16 = inlined_call_operand.vmem [shape: f32[1,128], index: 16, kind: input, shape index: {}]
  %s17 = inlined_call_operand.hbm [shape: f32[2,128], index: 17, kind: output, shape index: {}]
  %s18 = sld [smem:[#allocation0]]
  $region78: #{mlp_mixer_forward.5} parent=0
    _
  %s20 = ssub.s32 1, %s18
  %s21 = scalar_select 0, %s20, %s18
  $region1: #{mlp_mixer_forward.5} parent=0
    #allocation2 [shape = 'u8[1024]{0}', space=vmem, size = 0x400, scoped, tag = 'output window, operand 0, single buffered']
    #allocation3 [shape = 's32[1]{0}', space=sflag, size = 0x4, scoped, tag = 'scoped memory for mlp_mixer_forward.5']
    %22 = vsyncpa [#allocation3], 0
    // Predicated region
    $region2: #{mlp_mixer_forward.5} parent=1 // pred_check
      _
    $region3: #{mlp_mixer_forward.5} parent=1 // pred_check_branch
      %24 = sbr.rel (0) target = $region5
    $region4: #{mlp_mixer_forward.5} parent=1 // pred_region
      _
    $region5: #{mlp_mixer_forward.5} parent=1 // pred_fallthru
      _
    // Predicated region
    $region6: #{mlp_mixer_forward.5} parent=1 // pred_check
      _
    $region7: #{mlp_mixer_forward.5} parent=1 // pred_check_branch
      %26 = sbr.rel (0) target = $region9
    $region8: #{mlp_mixer_forward.5} parent=1 // pred_region
      _
    $region9: #{mlp_mixer_forward.5} parent=1 // pred_fallthru
      _
    // Predicated region
    $region10: #{mlp_mixer_forward.5} parent=1 // pred_check
      _
    $region11: #{mlp_mixer_forward.5} parent=1 // pred_check_branch
      %28 = sbr.rel (0) target = $region13
    $region12: #{mlp_mixer_forward.5} parent=1 // pred_region
      _
    $region13: #{mlp_mixer_forward.5} parent=1 // pred_fallthru
      _
    // Predicated region
    $region14: #{mlp_mixer_forward.5} parent=1 // pred_check
      _
    $region15: #{mlp_mixer_forward.5} parent=1 // pred_check_branch
      %30 = sbr.rel (0) target = $region17
    $region16: #{mlp_mixer_forward.5} parent=1 // pred_region
      _
    $region17: #{mlp_mixer_forward.5} parent=1 // pred_fallthru
      _
    // Predicated region
    $region18: #{mlp_mixer_forward.5} parent=1 // pred_check
      _
    $region19: #{mlp_mixer_forward.5} parent=1 // pred_check_branch
      %32 = sbr.rel (0) target = $region21
    $region20: #{mlp_mixer_forward.5} parent=1 // pred_region
      _
    $region21: #{mlp_mixer_forward.5} parent=1 // pred_fallthru
      _
    // Predicated region
    $region22: #{mlp_mixer_forward.5} parent=1 // pred_check
      _
    $region23: #{mlp_mixer_forward.5} parent=1 // pred_check_branch
      %34 = sbr.rel (0) target = $region25
    $region24: #{mlp_mixer_forward.5} parent=1 // pred_region
      _
    $region25: #{mlp_mixer_forward.5} parent=1 // pred_fallthru
      _
    // Predicated region
    $region26: #{mlp_mixer_forward.5} parent=1 // pred_check
      _
    $region27: #{mlp_mixer_forward.5} parent=1 // pred_check_branch
      %36 = sbr.rel (0) target = $region29
    $region28: #{mlp_mixer_forward.5} parent=1 // pred_region
      _
    $region29: #{mlp_mixer_forward.5} parent=1 // pred_fallthru
      _
    // Predicated region
    $region30: #{mlp_mixer_forward.5} parent=1 // pred_check
      _
    $region31: #{mlp_mixer_forward.5} parent=1 // pred_check_branch
      %38 = sbr.rel (0) target = $region33
    $region32: #{mlp_mixer_forward.5} parent=1 // pred_region
      _
    $region33: #{mlp_mixer_forward.5} parent=1 // pred_fallthru
      _
    // Predicated region
    $region34: #{mlp_mixer_forward.5} parent=1 // pred_check
      _
    $region35: #{mlp_mixer_forward.5} parent=1 // pred_check_branch
      %40 = sbr.rel (0) target = $region37
    $region36: #{mlp_mixer_forward.5} parent=1 // pred_region
      _
    $region37: #{mlp_mixer_forward.5} parent=1 // pred_fallthru
      _
    // Predicated region
    $region38: #{mlp_mixer_forward.5} parent=1 // pred_check
      _
    $region39: #{mlp_mixer_forward.5} parent=1 // pred_check_branch
      %42 = sbr.rel (0) target = $region41
    $region40: #{mlp_mixer_forward.5} parent=1 // pred_region
      _
    $region41: #{mlp_mixer_forward.5} parent=1 // pred_fallthru
      _
    // Predicated region
    $region42: #{mlp_mixer_forward.5} parent=1 // pred_check
      _
    $region43: #{mlp_mixer_forward.5} parent=1 // pred_check_branch
      %44 = sbr.rel (0) target = $region45
    $region44: #{mlp_mixer_forward.5} parent=1 // pred_region
      _
    $region45: #{mlp_mixer_forward.5} parent=1 // pred_fallthru
      _
    // Predicated region
    $region46: #{mlp_mixer_forward.5} parent=1 // pred_check
      _
    $region47: #{mlp_mixer_forward.5} parent=1 // pred_check_branch
      %46 = sbr.rel (0) target = $region49
    $region48: #{mlp_mixer_forward.5} parent=1 // pred_region
      _
    $region49: #{mlp_mixer_forward.5} parent=1 // pred_fallthru
      _
    // Predicated region
    $region50: #{mlp_mixer_forward.5} parent=1 // pred_check
      _
    $region51: #{mlp_mixer_forward.5} parent=1 // pred_check_branch
      %48 = sbr.rel (0) target = $region53
    $region52: #{mlp_mixer_forward.5} parent=1 // pred_region
      _
    $region53: #{mlp_mixer_forward.5} parent=1 // pred_fallthru
      _
    // Predicated region
    $region54: #{mlp_mixer_forward.5} parent=1 // pred_check
      _
    $region55: #{mlp_mixer_forward.5} parent=1 // pred_check_branch
      %50 = sbr.rel (0) target = $region57
    $region56: #{mlp_mixer_forward.5} parent=1 // pred_region
      _
    $region57: #{mlp_mixer_forward.5} parent=1 // pred_fallthru
      _
    // Predicated region
    $region58: #{mlp_mixer_forward.5} parent=1 // pred_check
      _
    $region59: #{mlp_mixer_forward.5} parent=1 // pred_check_branch
      %52 = sbr.rel (0) target = $region61
    $region60: #{mlp_mixer_forward.5} parent=1 // pred_region
      _
    $region61: #{mlp_mixer_forward.5} parent=1 // pred_fallthru
      _
    // Predicated region
    $region62: #{mlp_mixer_forward.5} parent=1 // pred_check
      _
    $region63: #{mlp_mixer_forward.5} parent=1 // pred_check_branch
      %54 = sbr.rel (0) target = $region65
    $region64: #{mlp_mixer_forward.5} parent=1 // pred_region
      _
    $region65: #{mlp_mixer_forward.5} parent=1 // pred_fallthru
      _
    // Predicated region
    $region66: #{mlp_mixer_forward.5} parent=1 // pred_check
      _
    $region67: #{mlp_mixer_forward.5} parent=1 // pred_check_branch
      %56 = sbr.rel (0) target = $region69
    $region68: #{mlp_mixer_forward.5} parent=1 // pred_region
      _
    $region69: #{mlp_mixer_forward.5} parent=1 // pred_fallthru
      _
    %v58 = vld [vmem:[%s0] sm:$0xff]
    %v59 = vld [vmem:[%s0 + $0x8] sm:$0xff]
    %v60 = vld [vmem:[%s0 + $0x10] sm:$0xff]
    %v61 = vld [vmem:[%s0 + $0x18] sm:$0xff]
    %v62 = vld [vmem:[%s4] sm:$0xff]
    %v63 = vld [vmem:[%s4 + $0x8] sm:$0xff]
    %v64 = vld [vmem:[%s6] sm:$0xff]
    %v65 = vld [vmem:[%s6 + $0x8] sm:$0xff]
    %v66 = vld [vmem:[%s3] sm:$0xf]
    %v67 = vld [vmem:[%s3 + $0x4] sm:$0xf]
    %v68 = vld [vmem:[%s5] sm:$0xf]
    %v69 = vld [vmem:[%s5 + $0x4] sm:$0xf]
    %v70 = vld [vmem:[%s9] sm:$0xf]
    %v71 = vld [vmem:[%s9 + $0x4] sm:$0xf]
    %v72 = vld [vmem:[%s9 + $0x8] sm:$0xf]
    %v73 = vld [vmem:[%s9 + $0xc] sm:$0xf]
    %v74 = vld [vmem:[%s10] sm:$0x1]
    %v75 = vld [vmem:[%s11] sm:$0xf]
    %v76 = vld [vmem:[%s11 + $0x4] sm:$0xf]
    %v77 = vld [vmem:[%s11 + $0x8] sm:$0xf]
    %v78 = vld [vmem:[%s11 + $0xc] sm:$0xf]
    %v79 = vld [vmem:[%s11 + $0x10] sm:$0xf]
    %v80 = vld [vmem:[%s11 + $0x14] sm:$0xf]
    %v81 = vld [vmem:[%s11 + $0x18] sm:$0xf]
    %v82 = vld [vmem:[%s11 + $0x1c] sm:$0xf]
    %v83 = vld [vmem:[%s11 + $0x20] sm:$0xf]
    %v84 = vld [vmem:[%s11 + $0x24] sm:$0xf]
    %v85 = vld [vmem:[%s11 + $0x28] sm:$0xf]
    %v86 = vld [vmem:[%s11 + $0x2c] sm:$0xf]
    %v87 = vld [vmem:[%s11 + $0x30] sm:$0xf]
    %v88 = vld [vmem:[%s11 + $0x34] sm:$0xf]
    %v89 = vld [vmem:[%s11 + $0x38] sm:$0xf]
    %v90 = vld [vmem:[%s11 + $0x3c] sm:$0xf]
    %v91 = vld [vmem:[%s12] sm:$0x1]
    %v92 = vld [vmem:[%s1] sm:$0x1]
    %v93 = vld [vmem:[%s2] sm:$0x1]
    %vm94 = vcmask 261120
    %v95 = vsel %vm94, %v58, 0.0
    %96 = vadd.xlane.f32.xlu0 %v95
    %v97 = vpop.xlane.xlu0 %96
    %v98 = vsel %vm94, %v59, 0.0
    %99 = vadd.xlane.f32.xlu0 %v98
    %v100 = vpop.xlane.xlu0 %99
    %v101 = vsel %vm94, %v60, 0.0
    %102 = vadd.xlane.f32.xlu0 %v101
    %v103 = vpop.xlane.xlu0 %102
    %v104 = vsel %vm94, %v61, 0.0
    %105 = vadd.xlane.f32.xlu0 %v104
    %v106 = vpop.xlane.xlu0 %105
    %v107 = vrcp.pop 32.0
    %v108 = vmul.f32 %v97, %v107
    %v109 = vmul.f32 %v100, %v107
    %v110 = vmul.f32 %v103, %v107
    %v111 = vmul.f32 %v106, %v107
    %v112 = vsub.f32 %v58, %v108
    %v113 = vsub.f32 %v59, %v109
    %v114 = vsub.f32 %v60, %v110
    %v115 = vsub.f32 %v61, %v111
    %v116 = vmul.f32 %v112, %v112
    %v117 = vmul.f32 %v113, %v113
    %v118 = vmul.f32 %v114, %v114
    %v119 = vmul.f32 %v115, %v115
    %v120 = vsel %vm94, %v116, 0.0
    %121 = vadd.xlane.f32.xlu0 %v120
    %v122 = vpop.xlane.xlu0 %121
    %v123 = vsel %vm94, %v117, 0.0
    %124 = vadd.xlane.f32.xlu0 %v123
    %v125 = vpop.xlane.xlu0 %124
    %v126 = vsel %vm94, %v118, 0.0
    %127 = vadd.xlane.f32.xlu0 %v126
    %v128 = vpop.xlane.xlu0 %127
    %v129 = vsel %vm94, %v119, 0.0
    %130 = vadd.xlane.f32.xlu0 %v129
    %v131 = vpop.xlane.xlu0 %130
    %v132 = vmul.f32 %v122, %v107
    %v133 = vmul.f32 %v125, %v107
    %v134 = vmul.f32 %v128, %v107
    %v135 = vmul.f32 %v131, %v107
    %v136 = vadd.f32 %v132, 1e-06
    %v137 = vadd.f32 %v133, 1e-06
    %v138 = vadd.f32 %v134, 1e-06
    %v139 = vadd.f32 %v135, 1e-06
    %v140 = vrsqrt.pop %v136
    %v141 = vrsqrt.pop %v137
    %v142 = vrsqrt.pop %v138
    %v143 = vrsqrt.pop %v139
    %v144 = vmul.f32 %v112, %v140
    %v145 = vmul.f32 %v113, %v141
    %v146 = vmul.f32 %v114, %v142
    %v147 = vmul.f32 %v115, %v143
    %v149 = vlaneseq
    %v150 = vshrl.u32 %v149, 7
    %v151 = vsub.s32 0, %v150
    %v152 = vrot.slane %v92, %v151
    %v154 = vmul.f32 %v144, %v152
    %v155 = vmul.f32 %v145, %v152
    %v156 = vmul.f32 %v146, %v152
    %v157 = vmul.f32 %v147, %v152
    %v159 = vlaneseq
    %v160 = vshrl.u32 %v159, 7
    %v161 = vsub.s32 0, %v160
    %v162 = vrot.slane %v93, %v161
    %v164 = vadd.f32 %v154, %v162
    %v165 = vadd.f32 %v155, %v162
    %v166 = vadd.f32 %v156, %v162
    %v167 = vadd.f32 %v157, %v162
    %v168 = vpack.c.bf16 %v165, %v164
    %v169 = vpack.c.bf16 %v167, %v166
    %171 = vset.pattern.permute.xlu0 0
    %172 = vperm.xlu0 %171, %v62
    %v173 = vpop.permute.xlu0 %172
    %176 = vset.pattern.permute.xlu0 0
    %177 = vperm.xlu0 %176, %v63
    %v178 = vpop.permute.xlu0 %177
    %v182 = vunpack.c.l.b16 %v66
    %v183 = vunpack.c.l.b16 %v67
    %v184 = vpack.c.b16 %v183, %v182
    %vm185 = vcmask 130048
    %v187 = vsel %vm185, %v184, 0
    %189 = vmatprep.subr.bf16.mxu0 0
    %190 = vmatpush1.bf16.msra.mxu0 0
    %191 = vmatprep.subr.bf16.mxu0 0
    %192 = vmatpush1.bf16.msra.mxu0 0
    %193 = vmatprep.subr.bf16.mxu0 0
    %194 = vmatpush1.bf16.msra.mxu0 0
    %195 = vmatprep.subr.bf16.mxu0 0
    %196 = vmatpush1.bf16.msra.mxu0 0
    %197 = vmatprep.subr.bf16.mxu0 0
    %198 = vmatpush1.bf16.msra.mxu0 0
    %199 = vmatprep.subr.bf16.mxu0 0
    %200 = vmatpush1.bf16.msra.mxu0 0
    %201 = vmatprep.subr.bf16.mxu0 0
    %202 = vmatpush1.bf16.msra.mxu0 0
    %203 = vmatprep.subr.bf16.mxu0 0
    %204 = vmatpush1.bf16.msra.mxu0 %v168
    %205 = vmatprep.subr.bf16.mxu0 0
    %206 = vmatpush2.bf16.msra.mxu0 0
    %207 = vmatprep.subr.bf16.mxu0 0
    %208 = vmatpush2.bf16.msra.mxu0 0
    %209 = vmatprep.subr.bf16.mxu0 0
    %210 = vmatpush2.bf16.msra.mxu0 0
    %211 = vmatprep.subr.bf16.mxu0 0
    %212 = vmatpush2.bf16.msra.mxu0 0
    %213 = vmatprep.subr.bf16.mxu0 0
    %214 = vmatpush2.bf16.msra.mxu0 0
    %215 = vmatprep.subr.bf16.mxu0 0
    %216 = vmatpush2.bf16.msra.mxu0 0
    %217 = vmatprep.subr.bf16.mxu0 0
    %218 = vmatpush2.bf16.msra.mxu0 0
    %219 = vmatprep.subr.bf16.mxu0 0
    %220 = vmatpush2.bf16.msra.mxu0 0
    %221 = vmatprep.mubr.bf16.mxu0 0
    %222 = vmatmul.mubr.bf16.gmra.mxu0 %v187
    %v223 = vpop.f32.mrf.mxu0
    %v224 = vadd.f32 %v173, %v223
    %v225 = vpop.f32.mrf.mxu0
    %v226 = vpop.f32.mrf.mxu0
    %v227 = vadd.f32 %v178, %v226
    %v228 = vpop.f32.mrf.mxu0
    %229 = vdwg.mxu0
    %230 = vmatprep.subr.bf16.mxu0 0
    %231 = vmatpush1.bf16.msra.mxu0 0
    %232 = vmatprep.subr.bf16.mxu0 0
    %233 = vmatpush1.bf16.msra.mxu0 0
    %234 = vmatprep.subr.bf16.mxu0 0
    %235 = vmatpush1.bf16.msra.mxu0 0
    %236 = vmatprep.subr.bf16.mxu0 0
    %237 = vmatpush1.bf16.msra.mxu0 0
    %238 = vmatprep.subr.bf16.mxu0 0
    %239 = vmatpush1.bf16.msra.mxu0 0
    %240 = vmatprep.subr.bf16.mxu0 0
    %241 = vmatpush1.bf16.msra.mxu0 0
    %242 = vmatprep.subr.bf16.mxu0 0
    %243 = vmatpush1.bf16.msra.mxu0 0
    %244 = vmatprep.subr.bf16.mxu0 0
    %245 = vmatpush1.bf16.msra.mxu0 %v169
    %246 = vmatprep.subr.bf16.mxu0 0
    %247 = vmatpush2.bf16.msra.mxu0 0
    %248 = vmatprep.subr.bf16.mxu0 0
    %249 = vmatpush2.bf16.msra.mxu0 0
    %250 = vmatprep.subr.bf16.mxu0 0
    %251 = vmatpush2.bf16.msra.mxu0 0
    %252 = vmatprep.subr.bf16.mxu0 0
    %253 = vmatpush2.bf16.msra.mxu0 0
    %254 = vmatprep.subr.bf16.mxu0 0
    %255 = vmatpush2.bf16.msra.mxu0 0
    %256 = vmatprep.subr.bf16.mxu0 0
    %257 = vmatpush2.bf16.msra.mxu0 0
    %258 = vmatprep.subr.bf16.mxu0 0
    %259 = vmatpush2.bf16.msra.mxu0 0
    %260 = vmatprep.subr.bf16.mxu0 0
    %261 = vmatpush2.bf16.msra.mxu0 0
    %262 = vmatprep.mubr.bf16.mxu0 0
    %263 = vmatmul.mubr.bf16.gmra.mxu0 %v187
    %v264 = vpop.f32.mrf.mxu0
    %v265 = vadd.f32 %v173, %v264
    %v266 = vpop.f32.mrf.mxu0
    %v267 = vpop.f32.mrf.mxu0
    %v268 = vadd.f32 %v178, %v267
    %v269 = vpop.f32.mrf.mxu0
    %270 = vdwg.mxu0
    %v271 = vmul.f32 %v224, 0.5
    %v272 = vmul.f32 %v227, 0.5
    %v273 = vmul.f32 %v265, 0.5
    %v274 = vmul.f32 %v268, 0.5
    %v275 = vmul.f32 %v224, 0.70710677
    %v276 = vmul.f32 %v227, 0.70710677
    %v277 = vmul.f32 %v265, 0.70710677
    %v278 = vmul.f32 %v268, 0.70710677
    %v279 = verf.f32.pop %v275
    %v280 = verf.f32.pop %v276
    %v281 = verf.f32.pop %v277
    %v282 = verf.f32.pop %v278
    %v283 = vadd.f32 %v279, 1.0
    %v284 = vadd.f32 %v280, 1.0
    %v285 = vadd.f32 %v281, 1.0
    %v286 = vadd.f32 %v282, 1.0
    %v287 = vmul.f32 %v271, %v283
    %v288 = vmul.f32 %v272, %v284
    %v289 = vmul.f32 %v273, %v285
    %v290 = vmul.f32 %v274, %v286
    %v291 = vpack.c.bf16 %v288, %v287
    %v292 = vpack.c.bf16 %v290, %v289
    %294 = vset.pattern.permute.xlu0 0
    %295 = vperm.xlu0 %294, %v64
    %v296 = vpop.permute.xlu0 %295
    %299 = vset.pattern.permute.xlu0 0
    %300 = vperm.xlu0 %299, %v65
    %v301 = vpop.permute.xlu0 %300
    %v305 = vunpack.c.l.b16 %v68
    %v306 = vunpack.c.l.b16 %v69
    %v307 = vpack.c.b16 %v306, %v305
    %v309 = vsel %vm185, %v307, 0
    %311 = vmatprep.subr.bf16.mxu0 0
    %312 = vmatpush1.bf16.msra.mxu0 0
    %313 = vmatprep.subr.bf16.mxu0 0
    %314 = vmatpush1.bf16.msra.mxu0 0
    %315 = vmatprep.subr.bf16.mxu0 0
    %316 = vmatpush1.bf16.msra.mxu0 0
    %317 = vmatprep.subr.bf16.mxu0 0
    %318 = vmatpush1.bf16.msra.mxu0 0
    %319 = vmatprep.subr.bf16.mxu0 0
    %320 = vmatpush1.bf16.msra.mxu0 0
    %321 = vmatprep.subr.bf16.mxu0 0
    %322 = vmatpush1.bf16.msra.mxu0 0
    %323 = vmatprep.subr.bf16.mxu0 0
    %324 = vmatpush1.bf16.msra.mxu0 0
    %325 = vmatprep.subr.bf16.mxu0 0
    %326 = vmatpush1.bf16.msra.mxu0 %v291
    %327 = vmatprep.subr.bf16.mxu0 0
    %328 = vmatpush2.bf16.msra.mxu0 0
    %329 = vmatprep.subr.bf16.mxu0 0
    %330 = vmatpush2.bf16.msra.mxu0 0
    %331 = vmatprep.subr.bf16.mxu0 0
    %332 = vmatpush2.bf16.msra.mxu0 0
    %333 = vmatprep.subr.bf16.mxu0 0
    %334 = vmatpush2.bf16.msra.mxu0 0
    %335 = vmatprep.subr.bf16.mxu0 0
    %336 = vmatpush2.bf16.msra.mxu0 0
    %337 = vmatprep.subr.bf16.mxu0 0
    %338 = vmatpush2.bf16.msra.mxu0 0
    %339 = vmatprep.subr.bf16.mxu0 0
    %340 = vmatpush2.bf16.msra.mxu0 0
    %341 = vmatprep.subr.bf16.mxu0 0
    %342 = vmatpush2.bf16.msra.mxu0 0
    %343 = vmatprep.mubr.bf16.mxu0 0
    %344 = vmatmul.mubr.bf16.gmra.mxu0 %v309
    %v345 = vpop.f32.mrf.mxu0
    %v346 = vadd.f32 %v296, %v345
    %v347 = vpop.f32.mrf.mxu0
    %v348 = vpop.f32.mrf.mxu0
    %v349 = vadd.f32 %v301, %v348
    %v350 = vpop.f32.mrf.mxu0
    %351 = vdwg.mxu0
    %352 = vmatprep.subr.bf16.mxu0 0
    %353 = vmatpush1.bf16.msra.mxu0 0
    %354 = vmatprep.subr.bf16.mxu0 0
    %355 = vmatpush1.bf16.msra.mxu0 0
    %356 = vmatprep.subr.bf16.mxu0 0
    %357 = vmatpush1.bf16.msra.mxu0 0
    %358 = vmatprep.subr.bf16.mxu0 0
    %359 = vmatpush1.bf16.msra.mxu0 0
    %360 = vmatprep.subr.bf16.mxu0 0
    %361 = vmatpush1.bf16.msra.mxu0 0
    %362 = vmatprep.subr.bf16.mxu0 0
    %363 = vmatpush1.bf16.msra.mxu0 0
    %364 = vmatprep.subr.bf16.mxu0 0
    %365 = vmatpush1.bf16.msra.mxu0 0
    %366 = vmatprep.subr.bf16.mxu0 0
    %367 = vmatpush1.bf16.msra.mxu0 %v292
    %368 = vmatprep.subr.bf16.mxu0 0
    %369 = vmatpush2.bf16.msra.mxu0 0
    %370 = vmatprep.subr.bf16.mxu0 0
    %371 = vmatpush2.bf16.msra.mxu0 0
    %372 = vmatprep.subr.bf16.mxu0 0
    %373 = vmatpush2.bf16.msra.mxu0 0
    %374 = vmatprep.subr.bf16.mxu0 0
    %375 = vmatpush2.bf16.msra.mxu0 0
    %376 = vmatprep.subr.bf16.mxu0 0
    %377 = vmatpush2.bf16.msra.mxu0 0
    %378 = vmatprep.subr.bf16.mxu0 0
    %379 = vmatpush2.bf16.msra.mxu0 0
    %380 = vmatprep.subr.bf16.mxu0 0
    %381 = vmatpush2.bf16.msra.mxu0 0
    %382 = vmatprep.subr.bf16.mxu0 0
    %383 = vmatpush2.bf16.msra.mxu0 0
    %384 = vmatprep.mubr.bf16.mxu0 0
    %385 = vmatmul.mubr.bf16.gmra.mxu0 %v309
    %v386 = vpop.f32.mrf.mxu0
    %v387 = vadd.f32 %v296, %v386
    %v388 = vpop.f32.mrf.mxu0
    %v389 = vpop.f32.mrf.mxu0
    %v390 = vadd.f32 %v301, %v389
    %v391 = vpop.f32.mrf.mxu0
    %392 = vdwg.mxu0
    %v393 = vadd.f32 %v58, %v346
    %v394 = vadd.f32 %v59, %v349
    %v395 = vadd.f32 %v60, %v387
    %v396 = vadd.f32 %v61, %v390
    %v397 = vld [vmem:[%s7] sm:$0x1]
    %v398 = vld [vmem:[%s8] sm:$0x1]
    %v399 = vsel %vm94, %v393, 0.0
    %400 = vadd.xlane.f32.xlu0 %v399
    %v401 = vpop.xlane.xlu0 %400
    %v402 = vsel %vm94, %v394, 0.0
    %403 = vadd.xlane.f32.xlu0 %v402
    %v404 = vpop.xlane.xlu0 %403
    %v405 = vsel %vm94, %v395, 0.0
    %406 = vadd.xlane.f32.xlu0 %v405
    %v407 = vpop.xlane.xlu0 %406
    %v408 = vsel %vm94, %v396, 0.0
    %409 = vadd.xlane.f32.xlu0 %v408
    %v410 = vpop.xlane.xlu0 %409
    %v411 = vmul.f32 %v401, %v107
    %v412 = vmul.f32 %v404, %v107
    %v413 = vmul.f32 %v407, %v107
    %v414 = vmul.f32 %v410, %v107
    %v415 = vsub.f32 %v393, %v411
    %v416 = vsub.f32 %v394, %v412
    %v417 = vsub.f32 %v395, %v413
    %v418 = vsub.f32 %v396, %v414
    %v419 = vmul.f32 %v415, %v415
    %v420 = vmul.f32 %v416, %v416
    %v421 = vmul.f32 %v417, %v417
    %v422 = vmul.f32 %v418, %v418
    %v423 = vsel %vm94, %v419, 0.0
    %424 = vadd.xlane.f32.xlu0 %v423
    %v425 = vpop.xlane.xlu0 %424
    %v426 = vsel %vm94, %v420, 0.0
    %427 = vadd.xlane.f32.xlu0 %v426
    %v428 = vpop.xlane.xlu0 %427
    %v429 = vsel %vm94, %v421, 0.0
    %430 = vadd.xlane.f32.xlu0 %v429
    %v431 = vpop.xlane.xlu0 %430
    %v432 = vsel %vm94, %v422, 0.0
    %433 = vadd.xlane.f32.xlu0 %v432
    %v434 = vpop.xlane.xlu0 %433
    %v435 = vmul.f32 %v425, %v107
    %v436 = vmul.f32 %v428, %v107
    %v437 = vmul.f32 %v431, %v107
    %v438 = vmul.f32 %v434, %v107
    %v439 = vadd.f32 %v435, 1e-06
    %v440 = vadd.f32 %v436, 1e-06
    %v441 = vadd.f32 %v437, 1e-06
    %v442 = vadd.f32 %v438, 1e-06
    %v443 = vrsqrt.pop %v439
    %v444 = vrsqrt.pop %v440
    %v445 = vrsqrt.pop %v441
    %v446 = vrsqrt.pop %v442
    %v447 = vmul.f32 %v415, %v443
    %v448 = vmul.f32 %v416, %v444
    %v449 = vmul.f32 %v417, %v445
    %v450 = vmul.f32 %v418, %v446
    %v452 = vlaneseq
    %v453 = vshrl.u32 %v452, 7
    %v454 = vsub.s32 0, %v453
    %v455 = vrot.slane %v397, %v454
    %v457 = vmul.f32 %v447, %v455
    %v458 = vmul.f32 %v448, %v455
    %v459 = vmul.f32 %v449, %v455
    %v460 = vmul.f32 %v450, %v455
    %v462 = vlaneseq
    %v463 = vshrl.u32 %v462, 7
    %v464 = vsub.s32 0, %v463
    %v465 = vrot.slane %v398, %v464
    %v467 = vadd.f32 %v457, %v465
    %v468 = vadd.f32 %v458, %v465
    %v469 = vadd.f32 %v459, %v465
    %v470 = vadd.f32 %v460, %v465
    %v471 = vpack.c.bf16 %v468, %v467
    %v472 = vpack.c.bf16 %v470, %v469
    %v474 = vlaneseq
    %v475 = vshrl.u32 %v474, 7
    %v476 = vsub.s32 0, %v475
    %v477 = vrot.slane %v74, %v476
    %v483 = vunpack.c.l.b16 %v70
    %v484 = vunpack.c.l.b16 %v71
    %v485 = vunpack.c.l.b16 %v72
    %v486 = vunpack.c.l.b16 %v73
    %v487 = vpack.c.b16 %v484, %v483
    %v488 = vpack.c.b16 %v486, %v485
    %v492 = vsel %vm94, %v471, 0
    %v495 = vsel %vm94, %v472, 0
    %497 = vmatprep.subr.bf16.mxu0 0
    %498 = vmatpush1.bf16.msra.mxu0 0
    %499 = vmatprep.subr.bf16.mxu0 0
    %500 = vmatpush1.bf16.msra.mxu0 0
    %501 = vmatprep.subr.bf16.mxu0 0
    %502 = vmatpush1.bf16.msra.mxu0 0
    %503 = vmatprep.subr.bf16.mxu0 0
    %504 = vmatpush1.bf16.msra.mxu0 0
    %505 = vmatprep.subr.bf16.mxu0 0
    %506 = vmatpush1.bf16.msra.mxu0 0
    %507 = vmatprep.subr.bf16.mxu0 0
    %508 = vmatpush1.bf16.msra.mxu0 0
    %509 = vmatprep.subr.bf16.mxu0 0
    %510 = vmatpush1.bf16.msra.mxu0 %v488
    %511 = vmatprep.subr.bf16.mxu0 0
    %512 = vmatpush1.bf16.msra.mxu0 %v487
    %513 = vmatprep.subr.bf16.mxu0 0
    %514 = vmatpush2.bf16.msra.mxu0 0
    %515 = vmatprep.subr.bf16.mxu0 0
    %516 = vmatpush2.bf16.msra.mxu0 0
    %517 = vmatprep.subr.bf16.mxu0 0
    %518 = vmatpush2.bf16.msra.mxu0 0
    %519 = vmatprep.subr.bf16.mxu0 0
    %520 = vmatpush2.bf16.msra.mxu0 0
    %521 = vmatprep.subr.bf16.mxu0 0
    %522 = vmatpush2.bf16.msra.mxu0 0
    %523 = vmatprep.subr.bf16.mxu0 0
    %524 = vmatpush2.bf16.msra.mxu0 0
    %525 = vmatprep.subr.bf16.mxu0 0
    %526 = vmatpush2.bf16.msra.mxu0 0
    %527 = vmatprep.subr.bf16.mxu0 0
    %528 = vmatpush2.bf16.msra.mxu0 0
    %529 = vmatprep.mubr.bf16.mxu0 0
    %530 = vmatmul.mubr.bf16.gmra.mxu0 %v492
    %v531 = vpop.f32.mrf.mxu0
    %v532 = vadd.f32 %v477, %v531
    %v533 = vpop.f32.mrf.mxu0
    %v534 = vpop.f32.mrf.mxu0
    %v535 = vadd.f32 %v477, %v534
    %v536 = vpop.f32.mrf.mxu0
    %537 = vmatprep.mubr.bf16.mxu0 0
    %538 = vmatmul.mubr.bf16.gmra.mxu0 %v495
    %v539 = vpop.f32.mrf.mxu0
    %v540 = vadd.f32 %v477, %v539
    %v541 = vpop.f32.mrf.mxu0
    %v542 = vpop.f32.mrf.mxu0
    %v543 = vadd.f32 %v477, %v542
    %v544 = vpop.f32.mrf.mxu0
    %545 = vdwg.mxu0
    %v546 = vmul.f32 %v532, 0.5
    %v547 = vmul.f32 %v535, 0.5
    %v548 = vmul.f32 %v540, 0.5
    %v549 = vmul.f32 %v543, 0.5
    %v550 = vmul.f32 %v532, 0.70710677
    %v551 = vmul.f32 %v535, 0.70710677
    %v552 = vmul.f32 %v540, 0.70710677
    %v553 = vmul.f32 %v543, 0.70710677
    %v554 = verf.f32.pop %v550
    %v555 = verf.f32.pop %v551
    %v556 = verf.f32.pop %v552
    %v557 = verf.f32.pop %v553
    %v558 = vadd.f32 %v554, 1.0
    %v559 = vadd.f32 %v555, 1.0
    %v560 = vadd.f32 %v556, 1.0
    %v561 = vadd.f32 %v557, 1.0
    %v562 = vmul.f32 %v546, %v558
    %v563 = vmul.f32 %v547, %v559
    %v564 = vmul.f32 %v548, %v560
    %v565 = vmul.f32 %v549, %v561
    %v566 = vpack.c.bf16 %v563, %v562
    %v567 = vpack.c.bf16 %v565, %v564
    %v569 = vlaneseq
    %v570 = vshrl.u32 %v569, 7
    %v571 = vsub.s32 0, %v570
    %v572 = vrot.slane %v91, %v571
    %v590 = vunpack.c.l.b16 %v75
    %v591 = vunpack.c.l.b16 %v76
    %v592 = vunpack.c.l.b16 %v77
    %v593 = vunpack.c.l.b16 %v78
    %v594 = vunpack.c.l.b16 %v79
    %v595 = vunpack.c.l.b16 %v80
    %v596 = vunpack.c.l.b16 %v81
    %v597 = vunpack.c.l.b16 %v82
    %v598 = vunpack.c.l.b16 %v83
    %v599 = vunpack.c.l.b16 %v84
    %v600 = vunpack.c.l.b16 %v85
    %v601 = vunpack.c.l.b16 %v86
    %v602 = vunpack.c.l.b16 %v87
    %v603 = vunpack.c.l.b16 %v88
    %v604 = vunpack.c.l.b16 %v89
    %v605 = vunpack.c.l.b16 %v90
    %v606 = vpack.c.b16 %v591, %v590
    %v607 = vpack.c.b16 %v593, %v592
    %v608 = vpack.c.b16 %v595, %v594
    %v609 = vpack.c.b16 %v597, %v596
    %v610 = vpack.c.b16 %v599, %v598
    %v611 = vpack.c.b16 %v601, %v600
    %v612 = vpack.c.b16 %v603, %v602
    %v613 = vpack.c.b16 %v605, %v604
    %622 = vmatprep.subr.bf16.mxu0 0
    %623 = vmatpush1.bf16.msra.mxu0 %v613
    %624 = vmatprep.subr.bf16.mxu0 0
    %625 = vmatpush1.bf16.msra.mxu0 %v612
    %626 = vmatprep.subr.bf16.mxu0 0
    %627 = vmatpush1.bf16.msra.mxu0 %v611
    %628 = vmatprep.subr.bf16.mxu0 0
    %629 = vmatpush1.bf16.msra.mxu0 %v610
    %630 = vmatprep.subr.bf16.mxu0 0
    %631 = vmatpush1.bf16.msra.mxu0 %v609
    %632 = vmatprep.subr.bf16.mxu0 0
    %633 = vmatpush1.bf16.msra.mxu0 %v608
    %634 = vmatprep.subr.bf16.mxu0 0
    %635 = vmatpush1.bf16.msra.mxu0 %v607
    %636 = vmatprep.subr.bf16.mxu0 0
    %637 = vmatpush1.bf16.msra.mxu0 %v606
    %638 = vmatprep.subr.bf16.mxu0 0
    %639 = vmatpush2.bf16.msra.mxu0 0
    %640 = vmatprep.subr.bf16.mxu0 0
    %641 = vmatpush2.bf16.msra.mxu0 0
    %642 = vmatprep.subr.bf16.mxu0 0
    %643 = vmatpush2.bf16.msra.mxu0 0
    %644 = vmatprep.subr.bf16.mxu0 0
    %645 = vmatpush2.bf16.msra.mxu0 0
    %646 = vmatprep.subr.bf16.mxu0 0
    %647 = vmatpush2.bf16.msra.mxu0 0
    %648 = vmatprep.subr.bf16.mxu0 0
    %649 = vmatpush2.bf16.msra.mxu0 0
    %650 = vmatprep.subr.bf16.mxu0 0
    %651 = vmatpush2.bf16.msra.mxu0 0
    %652 = vmatprep.subr.bf16.mxu0 0
    %653 = vmatpush2.bf16.msra.mxu0 0
    %654 = vmatprep.mubr.bf16.mxu0 0
    %655 = vmatmul.mubr.bf16.gmra.mxu0 %v566
    %v656 = vpop.f32.mrf.mxu0
    %v657 = vadd.f32 %v572, %v656
    %v658 = vpop.f32.mrf.mxu0
    %v659 = vpop.f32.mrf.mxu0
    %v660 = vadd.f32 %v572, %v659
    %v661 = vpop.f32.mrf.mxu0
    %662 = vmatprep.mubr.bf16.mxu0 0
    %663 = vmatmul.mubr.bf16.gmra.mxu0 %v567
    %v664 = vpop.f32.mrf.mxu0
    %v665 = vadd.f32 %v572, %v664
    %v666 = vpop.f32.mrf.mxu0
    %v667 = vpop.f32.mrf.mxu0
    %v668 = vadd.f32 %v572, %v667
    %v669 = vpop.f32.mrf.mxu0
    %670 = vdwg.mxu0
    %v671 = vadd.f32 %v393, %v657
    %v672 = vadd.f32 %v394, %v660
    %v673 = vadd.f32 %v395, %v665
    %v674 = vadd.f32 %v396, %v668
    %v675 = vld [vmem:[%s13] sm:$0x1]
    %v676 = vld [vmem:[%s14] sm:$0x1]
    %v677 = vsel %vm94, %v671, 0.0
    %678 = vadd.xlane.f32.xlu0 %v677
    %v679 = vpop.xlane.xlu0 %678
    %v680 = vsel %vm94, %v672, 0.0
    %681 = vadd.xlane.f32.xlu0 %v680
    %v682 = vpop.xlane.xlu0 %681
    %v683 = vsel %vm94, %v673, 0.0
    %684 = vadd.xlane.f32.xlu0 %v683
    %v685 = vpop.xlane.xlu0 %684
    %v686 = vsel %vm94, %v674, 0.0
    %687 = vadd.xlane.f32.xlu0 %v686
    %v688 = vpop.xlane.xlu0 %687
    %v689 = vmul.f32 %v679, %v107
    %v690 = vmul.f32 %v682, %v107
    %v691 = vmul.f32 %v685, %v107
    %v692 = vmul.f32 %v688, %v107
    %v693 = vsub.f32 %v671, %v689
    %v694 = vsub.f32 %v672, %v690
    %v695 = vsub.f32 %v673, %v691
    %v696 = vsub.f32 %v674, %v692
    %v697 = vmul.f32 %v693, %v693
    %v698 = vmul.f32 %v694, %v694
    %v699 = vmul.f32 %v695, %v695
    %v700 = vmul.f32 %v696, %v696
    %v701 = vsel %vm94, %v697, 0.0
    %702 = vadd.xlane.f32.xlu0 %v701
    %v703 = vpop.xlane.xlu0 %702
    %v704 = vsel %vm94, %v698, 0.0
    %705 = vadd.xlane.f32.xlu0 %v704
    %v706 = vpop.xlane.xlu0 %705
    %v707 = vsel %vm94, %v699, 0.0
    %708 = vadd.xlane.f32.xlu0 %v707
    %v709 = vpop.xlane.xlu0 %708
    %v710 = vsel %vm94, %v700, 0.0
    %711 = vadd.xlane.f32.xlu0 %v710
    %v712 = vpop.xlane.xlu0 %711
    %v713 = vmul.f32 %v703, %v107
    %v714 = vmul.f32 %v706, %v107
    %v715 = vmul.f32 %v709, %v107
    %v716 = vmul.f32 %v712, %v107
    %v717 = vadd.f32 %v713, 1e-06
    %v718 = vadd.f32 %v714, 1e-06
    %v719 = vadd.f32 %v715, 1e-06
    %v720 = vadd.f32 %v716, 1e-06
    %v721 = vrsqrt.pop %v717
    %v722 = vrsqrt.pop %v718
    %v723 = vrsqrt.pop %v719
    %v724 = vrsqrt.pop %v720
    %v725 = vmul.f32 %v693, %v721
    %v726 = vmul.f32 %v694, %v722
    %v727 = vmul.f32 %v695, %v723
    %v728 = vmul.f32 %v696, %v724
    %v730 = vlaneseq
    %v731 = vshrl.u32 %v730, 7
    %v732 = vsub.s32 0, %v731
    %v733 = vrot.slane %v675, %v732
    %v735 = vmul.f32 %v725, %v733
    %v736 = vmul.f32 %v726, %v733
    %v737 = vmul.f32 %v727, %v733
    %v738 = vmul.f32 %v728, %v733
    %v740 = vlaneseq
    %v741 = vshrl.u32 %v740, 7
    %v742 = vsub.s32 0, %v741
    %v743 = vrot.slane %v676, %v742
    %v745 = vadd.f32 %v735, %v743
    %v746 = vadd.f32 %v736, %v743
    %v747 = vadd.f32 %v737, %v743
    %v748 = vadd.f32 %v738, %v743
    %v749 = vsel %vm94, %v745, 0.0
    %v750 = vsel %vm94, %v746, 0.0
    %v751 = vadd.f32 %v749, %v750
    %v752 = vrot.slane %v751, 4
    %v753 = vadd.f32 %v751, %v752
    %v754 = vrot.slane %v753, 2
    %v755 = vadd.f32 %v753, %v754
    %v756 = vrot.slane %v755, 1
    %v757 = vadd.f32 %v755, %v756
    %v758 = vsel %vm94, %v747, 0.0
    %v759 = vsel %vm94, %v748, 0.0
    %v760 = vadd.f32 %v758, %v759
    %v761 = vrot.slane %v760, 4
    %v762 = vadd.f32 %v760, %v761
    %v763 = vrot.slane %v762, 2
    %v764 = vadd.f32 %v762, %v763
    %v765 = vrot.slane %v764, 1
    %v766 = vadd.f32 %v764, %v765
    %v767 = vrcp.pop 16.0
    %v768 = vmul.f32 %v757, %v767
    %v769 = vmul.f32 %v766, %v767
    %v770 = vpack.c.bf16 %v768, %v768
    %v771 = vpack.c.bf16 %v769, %v769
    %v772 = vld [vmem:[%s15] sm:$0xf]
    %v773 = vld [vmem:[%s15 + $0x4] sm:$0xf]
    %v774 = vld [vmem:[%s15 + $0x8] sm:$0xf]
    %v775 = vld [vmem:[%s15 + $0xc] sm:$0xf]
    %v776 = vld [vmem:[%s16] sm:$0x1]
    %v778 = vlaneseq
    %v779 = vshrl.u32 %v778, 7
    %v780 = vsub.s32 0, %v779
    %v781 = vrot.slane %v776, %v780
    %v785 = vunpack.c.l.b16 %v770
    %v786 = vunpack.c.l.b16 %v771
    %vm787 = vcmask 1041409
    %v788 = vsel %vm787, %v786, %v785
    %v789 = vpack.c.b16 %v788, %v788
    %v794 = vunpack.c.l.b16 %v772
    %v795 = vunpack.c.l.b16 %v773
    %v796 = vunpack.c.l.b16 %v774
    %v797 = vunpack.c.l.b16 %v775
    %v798 = vpack.c.b16 %v795, %v794
    %v799 = vpack.c.b16 %v797, %v796
    %v803 = vsel %vm94, %v789, 0
    %805 = vmatprep.subr.bf16.mxu0 0
    %806 = vmatpush1.bf16.msra.mxu0 0
    %807 = vmatprep.subr.bf16.mxu0 0
    %808 = vmatpush1.bf16.msra.mxu0 0
    %809 = vmatprep.subr.bf16.mxu0 0
    %810 = vmatpush1.bf16.msra.mxu0 0
    %811 = vmatprep.subr.bf16.mxu0 0
    %812 = vmatpush1.bf16.msra.mxu0 0
    %813 = vmatprep.subr.bf16.mxu0 0
    %814 = vmatpush1.bf16.msra.mxu0 0
    %815 = vmatprep.subr.bf16.mxu0 0
    %816 = vmatpush1.bf16.msra.mxu0 0
    %817 = vmatprep.subr.bf16.mxu0 0
    %818 = vmatpush1.bf16.msra.mxu0 %v799
    %819 = vmatprep.subr.bf16.mxu0 0
    %820 = vmatpush1.bf16.msra.mxu0 %v798
    %821 = vmatprep.subr.bf16.mxu0 0
    %822 = vmatpush2.bf16.msra.mxu0 0
    %823 = vmatprep.subr.bf16.mxu0 0
    %824 = vmatpush2.bf16.msra.mxu0 0
    %825 = vmatprep.subr.bf16.mxu0 0
    %826 = vmatpush2.bf16.msra.mxu0 0
    %827 = vmatprep.subr.bf16.mxu0 0
    %828 = vmatpush2.bf16.msra.mxu0 0
    %829 = vmatprep.subr.bf16.mxu0 0
    %830 = vmatpush2.bf16.msra.mxu0 0
    %831 = vmatprep.subr.bf16.mxu0 0
    %832 = vmatpush2.bf16.msra.mxu0 0
    %833 = vmatprep.subr.bf16.mxu0 0
    %834 = vmatpush2.bf16.msra.mxu0 0
    %835 = vmatprep.subr.bf16.mxu0 0
    %836 = vmatpush2.bf16.msra.mxu0 0
    %837 = vmatprep.mubr.bf16.mxu0 0
    %838 = vmatmul.mubr.bf16.gmra.mxu0 %v803
    %v839 = vpop.f32.mrf.mxu0
    %v840 = vadd.f32 %v781, %v839
    %v841 = vpop.f32.mrf.mxu0
    %v842 = vpop.f32.mrf.mxu0
    %v843 = vpop.f32.mrf.mxu0
    %844 = vdwg.mxu0
    %845 = vst [vmem:[#allocation2] sm:$0x3] %v840
    // Predicated region
    $region70: #{mlp_mixer_forward.5} parent=1 // pred_check
      _
    $region71: #{mlp_mixer_forward.5} parent=1 // pred_check_branch
      %847 = sbr.rel (0) target = $region73
    $region72: #{mlp_mixer_forward.5} parent=1 // pred_region
      %s849 = ssub.s32 32, 32
      %850 = vsyncadd [#allocation3], %s849
      %s852 = sshll.u32 [#allocation2], 4
      %s853 = int_to_ptr.vmem [resolvable:$true] %s852
      %855 = dma.vmem_to_hbm [thread:$0]  %s853, 32, %s17, [#allocation3]
    $region73: #{mlp_mixer_forward.5} parent=1 // pred_fallthru
      _
    // Predicated region
    $region74: #{mlp_mixer_forward.5} parent=1 // pred_check
      _
    $region75: #{mlp_mixer_forward.5} parent=1 // pred_check_branch
      %857 = sbr.rel (0) target = $region77
    $region76: #{mlp_mixer_forward.5} parent=1 // pred_region
      %858 = dma.done [#allocation3], 32
    $region77: #{mlp_mixer_forward.5} parent=1 // pred_fallthru
      _
    %859 = vsyncpa [#allocation3], 1

// kernel: mlp_mixer_forward.4
$region0: #{mlp_mixer_forward.4}
  #allocation0 [shape = 'u32[]', space=smem, size = 0x4, offset = 0x4, fixed_abs, tag = 'smem constant byte address 0x4 - core index']
  #allocation1 [shape = 'u32[144,128]{1,0:T(1,128)}', space=vmem, size = 0x12000, scoped, tag = 'internal scratch']
  %s0 = inlined_call_operand.vmem [shape: f32[2,16,32], index: 0, kind: input, shape index: {}, may-alias: {0,13}]
  %s1 = inlined_call_operand.vmem [shape: f32[1,32], index: 1, kind: input, shape index: {}]
  %s2 = inlined_call_operand.vmem [shape: f32[1,32], index: 2, kind: input, shape index: {}]
  %s3 = inlined_call_operand.vmem [shape: bf16[16,16], index: 3, kind: input, shape index: {}]
  %s4 = inlined_call_operand.vmem [shape: f32[16,1], index: 4, kind: input, shape index: {}]
  %s5 = inlined_call_operand.vmem [shape: bf16[16,16], index: 5, kind: input, shape index: {}]
  %s6 = inlined_call_operand.vmem [shape: f32[16,1], index: 6, kind: input, shape index: {}]
  %s7 = inlined_call_operand.vmem [shape: f32[1,32], index: 7, kind: input, shape index: {}]
  %s8 = inlined_call_operand.vmem [shape: f32[1,32], index: 8, kind: input, shape index: {}]
  %s9 = inlined_call_operand.vmem [shape: bf16[32,128], index: 9, kind: input, shape index: {}]
  %s10 = inlined_call_operand.vmem [shape: f32[1,128], index: 10, kind: input, shape index: {}]
  %s11 = inlined_call_operand.vmem [shape: bf16[128,32], index: 11, kind: input, shape index: {}]
  %s12 = inlined_call_operand.vmem [shape: f32[1,32], index: 12, kind: input, shape index: {}]
  %s13 = inlined_call_operand.vmem [shape: f32[2,16,32], index: 13, kind: output, shape index: {}, may-alias: {0,13}]
  %s14 = sld [smem:[#allocation0]]
  $region62: #{mlp_mixer_forward.4} parent=0
    _
  %s16 = ssub.s32 1, %s14
  %s17 = scalar_select 0, %s16, %s14
  // Predicated region
  $region2: #{mlp_mixer_forward.4} parent=0 // pred_check
    _
  $region3: #{mlp_mixer_forward.4} parent=0 // pred_check_branch
    %19 = sbr.rel (0) target = $region5
  $region4: #{mlp_mixer_forward.4} parent=0 // pred_region
    _
  $region5: #{mlp_mixer_forward.4} parent=0 // pred_fallthru
    _
  // Predicated region
  $region6: #{mlp_mixer_forward.4} parent=0 // pred_check
    _
  $region7: #{mlp_mixer_forward.4} parent=0 // pred_check_branch
    %21 = sbr.rel (0) target = $region9
  $region8: #{mlp_mixer_forward.4} parent=0 // pred_region
    _
  $region9: #{mlp_mixer_forward.4} parent=0 // pred_fallthru
    _
  // Predicated region
  $region10: #{mlp_mixer_forward.4} parent=0 // pred_check
    _
  $region11: #{mlp_mixer_forward.4} parent=0 // pred_check_branch
    %23 = sbr.rel (0) target = $region13
  $region12: #{mlp_mixer_forward.4} parent=0 // pred_region
    _
  $region13: #{mlp_mixer_forward.4} parent=0 // pred_fallthru
    _
  // Predicated region
  $region14: #{mlp_mixer_forward.4} parent=0 // pred_check
    _
  $region15: #{mlp_mixer_forward.4} parent=0 // pred_check_branch
    %25 = sbr.rel (0) target = $region17
  $region16: #{mlp_mixer_forward.4} parent=0 // pred_region
    _
  $region17: #{mlp_mixer_forward.4} parent=0 // pred_fallthru
    _
  // Predicated region
  $region18: #{mlp_mixer_forward.4} parent=0 // pred_check
    _
  $region19: #{mlp_mixer_forward.4} parent=0 // pred_check_branch
    %27 = sbr.rel (0) target = $region21
  $region20: #{mlp_mixer_forward.4} parent=0 // pred_region
    _
  $region21: #{mlp_mixer_forward.4} parent=0 // pred_fallthru
    _
  // Predicated region
  $region22: #{mlp_mixer_forward.4} parent=0 // pred_check
    _
  $region23: #{mlp_mixer_forward.4} parent=0 // pred_check_branch
    %29 = sbr.rel (0) target = $region25
  $region24: #{mlp_mixer_forward.4} parent=0 // pred_region
    _
  $region25: #{mlp_mixer_forward.4} parent=0 // pred_fallthru
    _
  // Predicated region
  $region26: #{mlp_mixer_forward.4} parent=0 // pred_check
    _
  $region27: #{mlp_mixer_forward.4} parent=0 // pred_check_branch
    %31 = sbr.rel (0) target = $region29
  $region28: #{mlp_mixer_forward.4} parent=0 // pred_region
    _
  $region29: #{mlp_mixer_forward.4} parent=0 // pred_fallthru
    _
  // Predicated region
  $region30: #{mlp_mixer_forward.4} parent=0 // pred_check
    _
  $region31: #{mlp_mixer_forward.4} parent=0 // pred_check_branch
    %33 = sbr.rel (0) target = $region33
  $region32: #{mlp_mixer_forward.4} parent=0 // pred_region
    _
  $region33: #{mlp_mixer_forward.4} parent=0 // pred_fallthru
    _
  // Predicated region
  $region34: #{mlp_mixer_forward.4} parent=0 // pred_check
    _
  $region35: #{mlp_mixer_forward.4} parent=0 // pred_check_branch
    %35 = sbr.rel (0) target = $region37
  $region36: #{mlp_mixer_forward.4} parent=0 // pred_region
    _
  $region37: #{mlp_mixer_forward.4} parent=0 // pred_fallthru
    _
  // Predicated region
  $region38: #{mlp_mixer_forward.4} parent=0 // pred_check
    _
  $region39: #{mlp_mixer_forward.4} parent=0 // pred_check_branch
    %37 = sbr.rel (0) target = $region41
  $region40: #{mlp_mixer_forward.4} parent=0 // pred_region
    _
  $region41: #{mlp_mixer_forward.4} parent=0 // pred_fallthru
    _
  // Predicated region
  $region42: #{mlp_mixer_forward.4} parent=0 // pred_check
    _
  $region43: #{mlp_mixer_forward.4} parent=0 // pred_check_branch
    %39 = sbr.rel (0) target = $region45
  $region44: #{mlp_mixer_forward.4} parent=0 // pred_region
    _
  $region45: #{mlp_mixer_forward.4} parent=0 // pred_fallthru
    _
  // Predicated region
  $region46: #{mlp_mixer_forward.4} parent=0 // pred_check
    _
  $region47: #{mlp_mixer_forward.4} parent=0 // pred_check_branch
    %41 = sbr.rel (0) target = $region49
  $region48: #{mlp_mixer_forward.4} parent=0 // pred_region
    _
  $region49: #{mlp_mixer_forward.4} parent=0 // pred_fallthru
    _
  // Predicated region
  $region50: #{mlp_mixer_forward.4} parent=0 // pred_check
    _
  $region51: #{mlp_mixer_forward.4} parent=0 // pred_check_branch
    %43 = sbr.rel (0) target = $region53
  $region52: #{mlp_mixer_forward.4} parent=0 // pred_region
    _
  $region53: #{mlp_mixer_forward.4} parent=0 // pred_fallthru
    _
  %v45 = vld [vmem:[%s0] sm:$0xff]
  %v46 = vld [vmem:[%s0 + $0x8] sm:$0xff]
  %v47 = vld [vmem:[%s0 + $0x10] sm:$0xff]
  %v48 = vld [vmem:[%s0 + $0x18] sm:$0xff]
  %v49 = vld [vmem:[%s4] sm:$0xff]
  %v50 = vld [vmem:[%s4 + $0x8] sm:$0xff]
  %v51 = vld [vmem:[%s6] sm:$0xff]
  %v52 = vld [vmem:[%s6 + $0x8] sm:$0xff]
  %v53 = vld [vmem:[%s3] sm:$0xf]
  %v54 = vld [vmem:[%s3 + $0x4] sm:$0xf]
  %v55 = vld [vmem:[%s5] sm:$0xf]
  %v56 = vld [vmem:[%s5 + $0x4] sm:$0xf]
  %v57 = vld [vmem:[%s9] sm:$0xf]
  %v58 = vld [vmem:[%s9 + $0x4] sm:$0xf]
  %v59 = vld [vmem:[%s9 + $0x8] sm:$0xf]
  %v60 = vld [vmem:[%s9 + $0xc] sm:$0xf]
  %v61 = vld [vmem:[%s10] sm:$0x1]
  %v62 = vld [vmem:[%s11] sm:$0xf]
  %v63 = vld [vmem:[%s11 + $0x4] sm:$0xf]
  %v64 = vld [vmem:[%s11 + $0x8] sm:$0xf]
  %v65 = vld [vmem:[%s11 + $0xc] sm:$0xf]
  %v66 = vld [vmem:[%s11 + $0x10] sm:$0xf]
  %v67 = vld [vmem:[%s11 + $0x14] sm:$0xf]
  %v68 = vld [vmem:[%s11 + $0x18] sm:$0xf]
  %v69 = vld [vmem:[%s11 + $0x1c] sm:$0xf]
  %v70 = vld [vmem:[%s11 + $0x20] sm:$0xf]
  %v71 = vld [vmem:[%s11 + $0x24] sm:$0xf]
  %v72 = vld [vmem:[%s11 + $0x28] sm:$0xf]
  %v73 = vld [vmem:[%s11 + $0x2c] sm:$0xf]
  %v74 = vld [vmem:[%s11 + $0x30] sm:$0xf]
  %v75 = vld [vmem:[%s11 + $0x34] sm:$0xf]
  %v76 = vld [vmem:[%s11 + $0x38] sm:$0xf]
  %v77 = vld [vmem:[%s11 + $0x3c] sm:$0xf]
  %v78 = vld [vmem:[%s12] sm:$0x1]
  %v79 = vld [vmem:[%s1] sm:$0x1]
  %v80 = vld [vmem:[%s2] sm:$0x1]
  %vm81 = vcmask 261120
  %v82 = vsel %vm81, %v45, 0.0
  %83 = vadd.xlane.f32.xlu0 %v82
  %v84 = vpop.xlane.xlu0 %83
  %v85 = vsel %vm81, %v46, 0.0
  %86 = vadd.xlane.f32.xlu0 %v85
  %v87 = vpop.xlane.xlu0 %86
  %v88 = vsel %vm81, %v47, 0.0
  %89 = vadd.xlane.f32.xlu0 %v88
  %v90 = vpop.xlane.xlu0 %89
  %v91 = vsel %vm81, %v48, 0.0
  %92 = vadd.xlane.f32.xlu0 %v91
  %v93 = vpop.xlane.xlu0 %92
  %v94 = vrcp.pop 32.0
  %v95 = vmul.f32 %v84, %v94
  %v96 = vmul.f32 %v87, %v94
  %v97 = vmul.f32 %v90, %v94
  %v98 = vmul.f32 %v93, %v94
  %v99 = vsub.f32 %v45, %v95
  %v100 = vsub.f32 %v46, %v96
  %v101 = vsub.f32 %v47, %v97
  %v102 = vsub.f32 %v48, %v98
  %v103 = vmul.f32 %v99, %v99
  %v104 = vmul.f32 %v100, %v100
  %v105 = vmul.f32 %v101, %v101
  %v106 = vmul.f32 %v102, %v102
  %v107 = vsel %vm81, %v103, 0.0
  %108 = vadd.xlane.f32.xlu0 %v107
  %v109 = vpop.xlane.xlu0 %108
  %v110 = vsel %vm81, %v104, 0.0
  %111 = vadd.xlane.f32.xlu0 %v110
  %v112 = vpop.xlane.xlu0 %111
  %v113 = vsel %vm81, %v105, 0.0
  %114 = vadd.xlane.f32.xlu0 %v113
  %v115 = vpop.xlane.xlu0 %114
  %v116 = vsel %vm81, %v106, 0.0
  %117 = vadd.xlane.f32.xlu0 %v116
  %v118 = vpop.xlane.xlu0 %117
  %v119 = vmul.f32 %v109, %v94
  %v120 = vmul.f32 %v112, %v94
  %v121 = vmul.f32 %v115, %v94
  %v122 = vmul.f32 %v118, %v94
  %v123 = vadd.f32 %v119, 1e-06
  %v124 = vadd.f32 %v120, 1e-06
  %v125 = vadd.f32 %v121, 1e-06
  %v126 = vadd.f32 %v122, 1e-06
  %v127 = vrsqrt.pop %v123
  %v128 = vrsqrt.pop %v124
  %v129 = vrsqrt.pop %v125
  %v130 = vrsqrt.pop %v126
  %v131 = vmul.f32 %v99, %v127
  %v132 = vmul.f32 %v100, %v128
  %v133 = vmul.f32 %v101, %v129
  %v134 = vmul.f32 %v102, %v130
  %v136 = vlaneseq
  %v137 = vshrl.u32 %v136, 7
  %v138 = vsub.s32 0, %v137
  %v139 = vrot.slane %v79, %v138
  %v141 = vmul.f32 %v131, %v139
  %v142 = vmul.f32 %v132, %v139
  %v143 = vmul.f32 %v133, %v139
  %v144 = vmul.f32 %v134, %v139
  %v146 = vlaneseq
  %v147 = vshrl.u32 %v146, 7
  %v148 = vsub.s32 0, %v147
  %v149 = vrot.slane %v80, %v148
  %v151 = vadd.f32 %v141, %v149
  %v152 = vadd.f32 %v142, %v149
  %v153 = vadd.f32 %v143, %v149
  %v154 = vadd.f32 %v144, %v149
  %v155 = vpack.c.bf16 %v152, %v151
  %v156 = vpack.c.bf16 %v154, %v153
  %158 = vset.pattern.permute.xlu0 0
  %159 = vperm.xlu0 %158, %v49
  %v160 = vpop.permute.xlu0 %159
  %163 = vset.pattern.permute.xlu0 0
  %164 = vperm.xlu0 %163, %v50
  %v165 = vpop.permute.xlu0 %164
  %v169 = vunpack.c.l.b16 %v53
  %v170 = vunpack.c.l.b16 %v54
  %v171 = vpack.c.b16 %v170, %v169
  %vm172 = vcmask 130048
  %v174 = vsel %vm172, %v171, 0
  %176 = vmatprep.subr.bf16.mxu0 0
  %177 = vmatpush1.bf16.msra.mxu0 0
  %178 = vmatprep.subr.bf16.mxu0 0
  %179 = vmatpush1.bf16.msra.mxu0 0
  %180 = vmatprep.subr.bf16.mxu0 0
  %181 = vmatpush1.bf16.msra.mxu0 0
  %182 = vmatprep.subr.bf16.mxu0 0
  %183 = vmatpush1.bf16.msra.mxu0 0
  %184 = vmatprep.subr.bf16.mxu0 0
  %185 = vmatpush1.bf16.msra.mxu0 0
  %186 = vmatprep.subr.bf16.mxu0 0
  %187 = vmatpush1.bf16.msra.mxu0 0
  %188 = vmatprep.subr.bf16.mxu0 0
  %189 = vmatpush1.bf16.msra.mxu0 0
  %190 = vmatprep.subr.bf16.mxu0 0
  %191 = vmatpush1.bf16.msra.mxu0 %v155
  %192 = vmatprep.subr.bf16.mxu0 0
  %193 = vmatpush2.bf16.msra.mxu0 0
  %194 = vmatprep.subr.bf16.mxu0 0
  %195 = vmatpush2.bf16.msra.mxu0 0
  %196 = vmatprep.subr.bf16.mxu0 0
  %197 = vmatpush2.bf16.msra.mxu0 0
  %198 = vmatprep.subr.bf16.mxu0 0
  %199 = vmatpush2.bf16.msra.mxu0 0
  %200 = vmatprep.subr.bf16.mxu0 0
  %201 = vmatpush2.bf16.msra.mxu0 0
  %202 = vmatprep.subr.bf16.mxu0 0
  %203 = vmatpush2.bf16.msra.mxu0 0
  %204 = vmatprep.subr.bf16.mxu0 0
  %205 = vmatpush2.bf16.msra.mxu0 0
  %206 = vmatprep.subr.bf16.mxu0 0
  %207 = vmatpush2.bf16.msra.mxu0 0
  %208 = vmatprep.mubr.bf16.mxu0 0
  %209 = vmatmul.mubr.bf16.gmra.mxu0 %v174
  %v210 = vpop.f32.mrf.mxu0
  %v211 = vadd.f32 %v160, %v210
  %v212 = vpop.f32.mrf.mxu0
  %v213 = vpop.f32.mrf.mxu0
  %v214 = vadd.f32 %v165, %v213
  %v215 = vpop.f32.mrf.mxu0
  %216 = vdwg.mxu0
  %217 = vmatprep.subr.bf16.mxu0 0
  %218 = vmatpush1.bf16.msra.mxu0 0
  %219 = vmatprep.subr.bf16.mxu0 0
  %220 = vmatpush1.bf16.msra.mxu0 0
  %221 = vmatprep.subr.bf16.mxu0 0
  %222 = vmatpush1.bf16.msra.mxu0 0
  %223 = vmatprep.subr.bf16.mxu0 0
  %224 = vmatpush1.bf16.msra.mxu0 0
  %225 = vmatprep.subr.bf16.mxu0 0
  %226 = vmatpush1.bf16.msra.mxu0 0
  %227 = vmatprep.subr.bf16.mxu0 0
  %228 = vmatpush1.bf16.msra.mxu0 0
  %229 = vmatprep.subr.bf16.mxu0 0
  %230 = vmatpush1.bf16.msra.mxu0 0
  %231 = vmatprep.subr.bf16.mxu0 0
  %232 = vmatpush1.bf16.msra.mxu0 %v156
  %233 = vmatprep.subr.bf16.mxu0 0
  %234 = vmatpush2.bf16.msra.mxu0 0
  %235 = vmatprep.subr.bf16.mxu0 0
  %236 = vmatpush2.bf16.msra.mxu0 0
  %237 = vmatprep.subr.bf16.mxu0 0
  %238 = vmatpush2.bf16.msra.mxu0 0
  %239 = vmatprep.subr.bf16.mxu0 0
  %240 = vmatpush2.bf16.msra.mxu0 0
  %241 = vmatprep.subr.bf16.mxu0 0
  %242 = vmatpush2.bf16.msra.mxu0 0
  %243 = vmatprep.subr.bf16.mxu0 0
  %244 = vmatpush2.bf16.msra.mxu0 0
  %245 = vmatprep.subr.bf16.mxu0 0
  %246 = vmatpush2.bf16.msra.mxu0 0
  %247 = vmatprep.subr.bf16.mxu0 0
  %248 = vmatpush2.bf16.msra.mxu0 0
  %249 = vmatprep.mubr.bf16.mxu0 0
  %250 = vmatmul.mubr.bf16.gmra.mxu0 %v174
  %v251 = vpop.f32.mrf.mxu0
  %v252 = vadd.f32 %v160, %v251
  %v253 = vpop.f32.mrf.mxu0
  %v254 = vpop.f32.mrf.mxu0
  %v255 = vadd.f32 %v165, %v254
  %v256 = vpop.f32.mrf.mxu0
  %257 = vdwg.mxu0
  %v258 = vmul.f32 %v211, 0.5
  %v259 = vmul.f32 %v214, 0.5
  %v260 = vmul.f32 %v252, 0.5
  %v261 = vmul.f32 %v255, 0.5
  %v262 = vmul.f32 %v211, 0.70710677
  %v263 = vmul.f32 %v214, 0.70710677
  %v264 = vmul.f32 %v252, 0.70710677
  %v265 = vmul.f32 %v255, 0.70710677
  %v266 = verf.f32.pop %v262
  %v267 = verf.f32.pop %v263
  %v268 = verf.f32.pop %v264
  %v269 = verf.f32.pop %v265
  %v270 = vadd.f32 %v266, 1.0
  %v271 = vadd.f32 %v267, 1.0
  %v272 = vadd.f32 %v268, 1.0
  %v273 = vadd.f32 %v269, 1.0
  %v274 = vmul.f32 %v258, %v270
  %v275 = vmul.f32 %v259, %v271
  %v276 = vmul.f32 %v260, %v272
  %v277 = vmul.f32 %v261, %v273
  %v278 = vpack.c.bf16 %v275, %v274
  %v279 = vpack.c.bf16 %v277, %v276
  %281 = vset.pattern.permute.xlu0 0
  %282 = vperm.xlu0 %281, %v51
  %v283 = vpop.permute.xlu0 %282
  %286 = vset.pattern.permute.xlu0 0
  %287 = vperm.xlu0 %286, %v52
  %v288 = vpop.permute.xlu0 %287
  %v292 = vunpack.c.l.b16 %v55
  %v293 = vunpack.c.l.b16 %v56
  %v294 = vpack.c.b16 %v293, %v292
  %v296 = vsel %vm172, %v294, 0
  %298 = vmatprep.subr.bf16.mxu0 0
  %299 = vmatpush1.bf16.msra.mxu0 0
  %300 = vmatprep.subr.bf16.mxu0 0
  %301 = vmatpush1.bf16.msra.mxu0 0
  %302 = vmatprep.subr.bf16.mxu0 0
  %303 = vmatpush1.bf16.msra.mxu0 0
  %304 = vmatprep.subr.bf16.mxu0 0
  %305 = vmatpush1.bf16.msra.mxu0 0
  %306 = vmatprep.subr.bf16.mxu0 0
  %307 = vmatpush1.bf16.msra.mxu0 0
  %308 = vmatprep.subr.bf16.mxu0 0
  %309 = vmatpush1.bf16.msra.mxu0 0
  %310 = vmatprep.subr.bf16.mxu0 0
  %311 = vmatpush1.bf16.msra.mxu0 0
  %312 = vmatprep.subr.bf16.mxu0 0
  %313 = vmatpush1.bf16.msra.mxu0 %v278
  %314 = vmatprep.subr.bf16.mxu0 0
  %315 = vmatpush2.bf16.msra.mxu0 0
  %316 = vmatprep.subr.bf16.mxu0 0
  %317 = vmatpush2.bf16.msra.mxu0 0
  %318 = vmatprep.subr.bf16.mxu0 0
  %319 = vmatpush2.bf16.msra.mxu0 0
  %320 = vmatprep.subr.bf16.mxu0 0
  %321 = vmatpush2.bf16.msra.mxu0 0
  %322 = vmatprep.subr.bf16.mxu0 0
  %323 = vmatpush2.bf16.msra.mxu0 0
  %324 = vmatprep.subr.bf16.mxu0 0
  %325 = vmatpush2.bf16.msra.mxu0 0
  %326 = vmatprep.subr.bf16.mxu0 0
  %327 = vmatpush2.bf16.msra.mxu0 0
  %328 = vmatprep.subr.bf16.mxu0 0
  %329 = vmatpush2.bf16.msra.mxu0 0
  %330 = vmatprep.mubr.bf16.mxu0 0
  %331 = vmatmul.mubr.bf16.gmra.mxu0 %v296
  %v332 = vpop.f32.mrf.mxu0
  %v333 = vadd.f32 %v283, %v332
  %v334 = vpop.f32.mrf.mxu0
  %v335 = vpop.f32.mrf.mxu0
  %v336 = vadd.f32 %v288, %v335
  %v337 = vpop.f32.mrf.mxu0
  %338 = vdwg.mxu0
  %339 = vmatprep.subr.bf16.mxu0 0
  %340 = vmatpush1.bf16.msra.mxu0 0
  %341 = vmatprep.subr.bf16.mxu0 0
  %342 = vmatpush1.bf16.msra.mxu0 0
  %343 = vmatprep.subr.bf16.mxu0 0
  %344 = vmatpush1.bf16.msra.mxu0 0
  %345 = vmatprep.subr.bf16.mxu0 0
  %346 = vmatpush1.bf16.msra.mxu0 0
  %347 = vmatprep.subr.bf16.mxu0 0
  %348 = vmatpush1.bf16.msra.mxu0 0
  %349 = vmatprep.subr.bf16.mxu0 0
  %350 = vmatpush1.bf16.msra.mxu0 0
  %351 = vmatprep.subr.bf16.mxu0 0
  %352 = vmatpush1.bf16.msra.mxu0 0
  %353 = vmatprep.subr.bf16.mxu0 0
  %354 = vmatpush1.bf16.msra.mxu0 %v279
  %355 = vmatprep.subr.bf16.mxu0 0
  %356 = vmatpush2.bf16.msra.mxu0 0
  %357 = vmatprep.subr.bf16.mxu0 0
  %358 = vmatpush2.bf16.msra.mxu0 0
  %359 = vmatprep.subr.bf16.mxu0 0
  %360 = vmatpush2.bf16.msra.mxu0 0
  %361 = vmatprep.subr.bf16.mxu0 0
  %362 = vmatpush2.bf16.msra.mxu0 0
  %363 = vmatprep.subr.bf16.mxu0 0
  %364 = vmatpush2.bf16.msra.mxu0 0
  %365 = vmatprep.subr.bf16.mxu0 0
  %366 = vmatpush2.bf16.msra.mxu0 0
  %367 = vmatprep.subr.bf16.mxu0 0
  %368 = vmatpush2.bf16.msra.mxu0 0
  %369 = vmatprep.subr.bf16.mxu0 0
  %370 = vmatpush2.bf16.msra.mxu0 0
  %371 = vmatprep.mubr.bf16.mxu0 0
  %372 = vmatmul.mubr.bf16.gmra.mxu0 %v296
  %v373 = vpop.f32.mrf.mxu0
  %v374 = vadd.f32 %v283, %v373
  %v375 = vpop.f32.mrf.mxu0
  %v376 = vpop.f32.mrf.mxu0
  %v377 = vadd.f32 %v288, %v376
  %v378 = vpop.f32.mrf.mxu0
  %379 = vdwg.mxu0
  %v380 = vadd.f32 %v45, %v333
  %v381 = vadd.f32 %v46, %v336
  %v382 = vadd.f32 %v47, %v374
  %v383 = vadd.f32 %v48, %v377
  %v384 = vld [vmem:[%s7] sm:$0x1]
  %v385 = vld [vmem:[%s8] sm:$0x1]
  %v386 = vsel %vm81, %v380, 0.0
  %387 = vadd.xlane.f32.xlu0 %v386
  %v388 = vpop.xlane.xlu0 %387
  %v389 = vsel %vm81, %v381, 0.0
  %390 = vadd.xlane.f32.xlu0 %v389
  %v391 = vpop.xlane.xlu0 %390
  %v392 = vsel %vm81, %v382, 0.0
  %393 = vadd.xlane.f32.xlu0 %v392
  %v394 = vpop.xlane.xlu0 %393
  %v395 = vsel %vm81, %v383, 0.0
  %396 = vadd.xlane.f32.xlu0 %v395
  %v397 = vpop.xlane.xlu0 %396
  %v398 = vmul.f32 %v388, %v94
  %v399 = vmul.f32 %v391, %v94
  %v400 = vmul.f32 %v394, %v94
  %v401 = vmul.f32 %v397, %v94
  %v402 = vsub.f32 %v380, %v398
  %v403 = vsub.f32 %v381, %v399
  %v404 = vsub.f32 %v382, %v400
  %v405 = vsub.f32 %v383, %v401
  %v406 = vmul.f32 %v402, %v402
  %v407 = vmul.f32 %v403, %v403
  %v408 = vmul.f32 %v404, %v404
  %v409 = vmul.f32 %v405, %v405
  %v410 = vsel %vm81, %v406, 0.0
  %411 = vadd.xlane.f32.xlu0 %v410
  %v412 = vpop.xlane.xlu0 %411
  %v413 = vsel %vm81, %v407, 0.0
  %414 = vadd.xlane.f32.xlu0 %v413
  %v415 = vpop.xlane.xlu0 %414
  %v416 = vsel %vm81, %v408, 0.0
  %417 = vadd.xlane.f32.xlu0 %v416
  %v418 = vpop.xlane.xlu0 %417
  %v419 = vsel %vm81, %v409, 0.0
  %420 = vadd.xlane.f32.xlu0 %v419
  %v421 = vpop.xlane.xlu0 %420
  %v422 = vmul.f32 %v412, %v94
  %v423 = vmul.f32 %v415, %v94
  %v424 = vmul.f32 %v418, %v94
  %v425 = vmul.f32 %v421, %v94
  %v426 = vadd.f32 %v422, 1e-06
  %v427 = vadd.f32 %v423, 1e-06
  %v428 = vadd.f32 %v424, 1e-06
  %v429 = vadd.f32 %v425, 1e-06
  %v430 = vrsqrt.pop %v426
  %v431 = vrsqrt.pop %v427
  %v432 = vrsqrt.pop %v428
  %v433 = vrsqrt.pop %v429
  %v434 = vmul.f32 %v402, %v430
  %v435 = vmul.f32 %v403, %v431
  %v436 = vmul.f32 %v404, %v432
  %v437 = vmul.f32 %v405, %v433
  %v439 = vlaneseq
  %v440 = vshrl.u32 %v439, 7
  %v441 = vsub.s32 0, %v440
  %v442 = vrot.slane %v384, %v441
  %v444 = vmul.f32 %v434, %v442
  %v445 = vmul.f32 %v435, %v442
  %v446 = vmul.f32 %v436, %v442
  %v447 = vmul.f32 %v437, %v442
  %v449 = vlaneseq
  %v450 = vshrl.u32 %v449, 7
  %v451 = vsub.s32 0, %v450
  %v452 = vrot.slane %v385, %v451
  %v454 = vadd.f32 %v444, %v452
  %v455 = vadd.f32 %v445, %v452
  %v456 = vadd.f32 %v446, %v452
  %v457 = vadd.f32 %v447, %v452
  %v458 = vpack.c.bf16 %v455, %v454
  %v459 = vpack.c.bf16 %v457, %v456
  %v461 = vlaneseq
  %v462 = vshrl.u32 %v461, 7
  %v463 = vsub.s32 0, %v462
  %v464 = vrot.slane %v61, %v463
  %v470 = vunpack.c.l.b16 %v57
  %v471 = vunpack.c.l.b16 %v58
  %v472 = vunpack.c.l.b16 %v59
  %v473 = vunpack.c.l.b16 %v60
  %v474 = vpack.c.b16 %v471, %v470
  %v475 = vpack.c.b16 %v473, %v472
  %v479 = vsel %vm81, %v458, 0
  %v482 = vsel %vm81, %v459, 0
  %484 = vmatprep.subr.bf16.mxu0 0
  %485 = vmatpush1.bf16.msra.mxu0 0
  %486 = vmatprep.subr.bf16.mxu0 0
  %487 = vmatpush1.bf16.msra.mxu0 0
  %488 = vmatprep.subr.bf16.mxu0 0
  %489 = vmatpush1.bf16.msra.mxu0 0
  %490 = vmatprep.subr.bf16.mxu0 0
  %491 = vmatpush1.bf16.msra.mxu0 0
  %492 = vmatprep.subr.bf16.mxu0 0
  %493 = vmatpush1.bf16.msra.mxu0 0
  %494 = vmatprep.subr.bf16.mxu0 0
  %495 = vmatpush1.bf16.msra.mxu0 0
  %496 = vmatprep.subr.bf16.mxu0 0
  %497 = vmatpush1.bf16.msra.mxu0 %v475
  %498 = vmatprep.subr.bf16.mxu0 0
  %499 = vmatpush1.bf16.msra.mxu0 %v474
  %500 = vmatprep.subr.bf16.mxu0 0
  %501 = vmatpush2.bf16.msra.mxu0 0
  %502 = vmatprep.subr.bf16.mxu0 0
  %503 = vmatpush2.bf16.msra.mxu0 0
  %504 = vmatprep.subr.bf16.mxu0 0
  %505 = vmatpush2.bf16.msra.mxu0 0
  %506 = vmatprep.subr.bf16.mxu0 0
  %507 = vmatpush2.bf16.msra.mxu0 0
  %508 = vmatprep.subr.bf16.mxu0 0
  %509 = vmatpush2.bf16.msra.mxu0 0
  %510 = vmatprep.subr.bf16.mxu0 0
  %511 = vmatpush2.bf16.msra.mxu0 0
  %512 = vmatprep.subr.bf16.mxu0 0
  %513 = vmatpush2.bf16.msra.mxu0 0
  %514 = vmatprep.subr.bf16.mxu0 0
  %515 = vmatpush2.bf16.msra.mxu0 0
  %516 = vmatprep.mubr.bf16.mxu0 0
  %517 = vmatmul.mubr.bf16.gmra.mxu0 %v479
  %v518 = vpop.f32.mrf.mxu0
  %v519 = vadd.f32 %v464, %v518
  %v520 = vpop.f32.mrf.mxu0
  %v521 = vpop.f32.mrf.mxu0
  %v522 = vadd.f32 %v464, %v521
  %v523 = vpop.f32.mrf.mxu0
  %524 = vmatprep.mubr.bf16.mxu0 0
  %525 = vmatmul.mubr.bf16.gmra.mxu0 %v482
  %v526 = vpop.f32.mrf.mxu0
  %v527 = vadd.f32 %v464, %v526
  %v528 = vpop.f32.mrf.mxu0
  %v529 = vpop.f32.mrf.mxu0
  %v530 = vadd.f32 %v464, %v529
  %v531 = vpop.f32.mrf.mxu0
  %532 = vdwg.mxu0
  %v533 = vmul.f32 %v519, 0.5
  %v534 = vmul.f32 %v522, 0.5
  %v535 = vmul.f32 %v527, 0.5
  %v536 = vmul.f32 %v530, 0.5
  %v537 = vmul.f32 %v519, 0.70710677
  %v538 = vmul.f32 %v522, 0.70710677
  %v539 = vmul.f32 %v527, 0.70710677
  %v540 = vmul.f32 %v530, 0.70710677
  %v541 = verf.f32.pop %v537
  %v542 = verf.f32.pop %v538
  %v543 = verf.f32.pop %v539
  %v544 = verf.f32.pop %v540
  %v545 = vadd.f32 %v541, 1.0
  %v546 = vadd.f32 %v542, 1.0
  %v547 = vadd.f32 %v543, 1.0
  %v548 = vadd.f32 %v544, 1.0
  %v549 = vmul.f32 %v533, %v545
  %v550 = vmul.f32 %v534, %v546
  %v551 = vmul.f32 %v535, %v547
  %v552 = vmul.f32 %v536, %v548
  %v553 = vpack.c.bf16 %v550, %v549
  %v554 = vpack.c.bf16 %v552, %v551
  %v556 = vlaneseq
  %v557 = vshrl.u32 %v556, 7
  %v558 = vsub.s32 0, %v557
  %v559 = vrot.slane %v78, %v558
  %v577 = vunpack.c.l.b16 %v62
  %v578 = vunpack.c.l.b16 %v63
  %v579 = vunpack.c.l.b16 %v64
  %v580 = vunpack.c.l.b16 %v65
  %v581 = vunpack.c.l.b16 %v66
  %v582 = vunpack.c.l.b16 %v67
  %v583 = vunpack.c.l.b16 %v68
  %v584 = vunpack.c.l.b16 %v69
  %v585 = vunpack.c.l.b16 %v70
  %v586 = vunpack.c.l.b16 %v71
  %v587 = vunpack.c.l.b16 %v72
  %v588 = vunpack.c.l.b16 %v73
  %v589 = vunpack.c.l.b16 %v74
  %v590 = vunpack.c.l.b16 %v75
  %v591 = vunpack.c.l.b16 %v76
  %v592 = vunpack.c.l.b16 %v77
  %v593 = vpack.c.b16 %v578, %v577
  %v594 = vpack.c.b16 %v580, %v579
  %v595 = vpack.c.b16 %v582, %v581
  %v596 = vpack.c.b16 %v584, %v583
  %v597 = vpack.c.b16 %v586, %v585
  %v598 = vpack.c.b16 %v588, %v587
  %v599 = vpack.c.b16 %v590, %v589
  %v600 = vpack.c.b16 %v592, %v591
  %609 = vmatprep.subr.bf16.mxu0 0
  %610 = vmatpush1.bf16.msra.mxu0 %v600
  %611 = vmatprep.subr.bf16.mxu0 0
  %612 = vmatpush1.bf16.msra.mxu0 %v599
  %613 = vmatprep.subr.bf16.mxu0 0
  %614 = vmatpush1.bf16.msra.mxu0 %v598
  %615 = vmatprep.subr.bf16.mxu0 0
  %616 = vmatpush1.bf16.msra.mxu0 %v597
  %617 = vmatprep.subr.bf16.mxu0 0
  %618 = vmatpush1.bf16.msra.mxu0 %v596
  %619 = vmatprep.subr.bf16.mxu0 0
  %620 = vmatpush1.bf16.msra.mxu0 %v595
  %621 = vmatprep.subr.bf16.mxu0 0
  %622 = vmatpush1.bf16.msra.mxu0 %v594
  %623 = vmatprep.subr.bf16.mxu0 0
  %624 = vmatpush1.bf16.msra.mxu0 %v593
  %625 = vmatprep.subr.bf16.mxu0 0
  %626 = vmatpush2.bf16.msra.mxu0 0
  %627 = vmatprep.subr.bf16.mxu0 0
  %628 = vmatpush2.bf16.msra.mxu0 0
  %629 = vmatprep.subr.bf16.mxu0 0
  %630 = vmatpush2.bf16.msra.mxu0 0
  %631 = vmatprep.subr.bf16.mxu0 0
  %632 = vmatpush2.bf16.msra.mxu0 0
  %633 = vmatprep.subr.bf16.mxu0 0
  %634 = vmatpush2.bf16.msra.mxu0 0
  %635 = vmatprep.subr.bf16.mxu0 0
  %636 = vmatpush2.bf16.msra.mxu0 0
  %637 = vmatprep.subr.bf16.mxu0 0
  %638 = vmatpush2.bf16.msra.mxu0 0
  %639 = vmatprep.subr.bf16.mxu0 0
  %640 = vmatpush2.bf16.msra.mxu0 0
  %641 = vmatprep.mubr.bf16.mxu0 0
  %642 = vmatmul.mubr.bf16.gmra.mxu0 %v553
  %v643 = vpop.f32.mrf.mxu0
  %v644 = vadd.f32 %v559, %v643
  %v645 = vpop.f32.mrf.mxu0
  %v646 = vpop.f32.mrf.mxu0
  %v647 = vadd.f32 %v559, %v646
  %v648 = vpop.f32.mrf.mxu0
  %649 = vmatprep.mubr.bf16.mxu0 0
  %650 = vmatmul.mubr.bf16.gmra.mxu0 %v554
  %v651 = vpop.f32.mrf.mxu0
  %v652 = vadd.f32 %v559, %v651
  %v653 = vpop.f32.mrf.mxu0
  %v654 = vpop.f32.mrf.mxu0
  %v655 = vadd.f32 %v559, %v654
  %v656 = vpop.f32.mrf.mxu0
  %657 = vdwg.mxu0
  %v658 = vadd.f32 %v380, %v644
  %v659 = vadd.f32 %v381, %v647
  %v660 = vadd.f32 %v382, %v652
  %v661 = vadd.f32 %v383, %v655
  %662 = vst.msk [vmem:[%s13] sm:$0xff] %vm81, %v658
  %663 = vst.msk [vmem:[%s13 + $0x8] sm:$0xff] %vm81, %v659
  %664 = vst.msk [vmem:[%s13 + $0x10] sm:$0xff] %vm81, %v660
  %665 = vst.msk [vmem:[%s13 + $0x18] sm:$0xff] %vm81, %v661
  // Predicated region
  $region54: #{mlp_mixer_forward.4} parent=0 // pred_check
    _
  $region55: #{mlp_mixer_forward.4} parent=0 // pred_check_branch
    %667 = sbr.rel (0) target = $region57
  $region56: #{mlp_mixer_forward.4} parent=0 // pred_region
    _
  $region57: #{mlp_mixer_forward.4} parent=0 // pred_fallthru
    _
  // Predicated region
  $region58: #{mlp_mixer_forward.4} parent=0 // pred_check
    _
  $region59: #{mlp_mixer_forward.4} parent=0 // pred_check_branch
    %669 = sbr.rel (0) target = $region61
  $region60: #{mlp_mixer_forward.4} parent=0 // pred_region
    _
  $region61: #{mlp_mixer_forward.4} parent=0 // pred_fallthru
    _

</llo_original>
